<compile_context>
chip_gen: v6e
topology: v6e:2x2x1
jax: 0.10.0
libtpu: 0.0.40
codegen_flags: <defaults>
</compile_context>

<pallas_src>
import functools

import numpy as np
import jax
import jax.numpy as jnp
from jax import lax
from jax.experimental import pallas as pl
from jax.experimental.pallas import tpu as pltpu

BN_EPS = 1e-5
LRELU_SLOPE = 0.2
BLEND_EPS = 1e-4


def _round_up(x, m):
    return (x + m - 1) // m * m


# ----------------------------------------------------------------------------
# Per-generation budgets
# ----------------------------------------------------------------------------
def _vmem_capacity_bytes():
    try:
        info = pltpu.get_tpu_info()
        for name in ("vmem_capacity_bytes", "vmem_size_bytes", "vmem_bytes"):
            v = getattr(info, name, None)
            if v:
                return int(v)
    except Exception:
        pass
    # Conservative fallback (safe on every generation, incl. v7x's 64 MiB/TC).
    return 64 * 1024 * 1024


def make_conv_cfg(band_cap=None):
    cap = _vmem_capacity_bytes()
    if cap <= 80 * 1024 * 1024:          # v7x-class: 64 MiB per TensorCore
        vmem_limit = 48 * 1024 * 1024
        max_cout_tile = 256
    else:                                 # v5e / v6e: 128 MiB
        vmem_limit = 96 * 1024 * 1024
        max_cout_tile = 512
    return dict(vmem_limit=vmem_limit,
                max_cout_tile=max_cout_tile,
                band_budget=vmem_limit // 2,
                band_cap=band_cap)


def _pick_band(Ho, bytes_fn, budget, cap=None):
    """Largest divisor of Ho (<= cap) whose VMEM estimate fits the budget."""
    divisors = [d for d in range(1, Ho + 1) if Ho % d == 0]
    if cap is not None:
        capped = [d for d in divisors if d <= cap]
        if capped:
            divisors = capped
    best = divisors[0]
    for d in divisors:
        if bytes_fn(d) <= budget:
            best = d
    return best


def _conv3_bytes(hb, Wp, Wo, cins, t_cout):
    inp = sum((hb + 2) * Wp * c for c in cins) * 2 * 2          # bf16, double-buffered
    wgt = sum(9 * c for c in cins) * t_cout * 2 * 2
    outb = hb * Wo * t_cout * 2 * 2
    acc = hb * Wo * t_cout * 4
    tmp = hb * Wp * t_cout * 4 * 2                              # f32 matmul intermediates
    return inp + wgt + outb + acc + tmp


def _pool_bytes(hb, Wo8, Wo, cin2, t_cout):
    inp = hb * Wo8 * cin2 * 2 * 2
    wgt = 2 * cin2 * t_cout * 2 * 2
    outb = hb * Wo * t_cout * 2 * 2
    acc = hb * Wo * t_cout * 4
    tmp = hb * Wo8 * t_cout * 4 * 2
    return inp + wgt + outb + acc + tmp


# ----------------------------------------------------------------------------
# Generic tap-decomposed conv kernel (multi-input, Cout-tiled, fused BN/LReLU)
# ----------------------------------------------------------------------------
def _make_conv_kernel(descs, Hb, Wo, leaky, total_t):
    n = len(descs)

    def kernel(*refs):
        x_refs = refs[:n]
        w_refs = refs[n:2 * n]
        scale_ref = refs[2 * n]
        shift_ref = refs[2 * n + 1]
        o_ref = refs[2 * n + 2]
        acc_ref = refs[2 * n + 3]
        t = pl.program_id(2)

        @pl.when(t == 0)
        def _init():
            acc_ref[...] = jnp.zeros_like(acc_ref)

        step = 0
        for i, d in enumerate(descs):
            for ky in range(d['kh']):
                def tap(i=i, ky=ky, d=d):
                    x_ref = x_refs[i]
                    w_ref = w_refs[i]
                    if d['mode'] == 'shift':
                        # rows [ky, ky+Hb) of the halo'd band (static slice).
                        slab = x_ref[0, ky:ky + Hb, :, :]         # (Hb, Wp, Cin) bf16
                    else:
                        # 'plane': the stride-2 row-parity plane was selected by the
                        # BlockSpec index_map, so the block already is the slab.
                        slab = x_ref[0, :, 0, :, :]               # (Hb, Wp, Cin) bf16
                    slab2 = slab.reshape(Hb * d['Wp'], d['Cin'])
                    part = None
                    for dx in range(d['kw']):                     # static unroll
                        w = w_ref[ky, dx]                         # (Cin, TCout) bf16
                        y = jnp.dot(slab2, w,
                                    preferred_element_type=jnp.float32)
                        y = y.reshape(Hb, d['Wp'], y.shape[-1])
                        c = y[:, dx:dx + Wo, :]                   # static dx slice
                        part = c if part is None else part + c
                    acc_ref[...] += part                          # one RMW per tap row

                pl.when(t == step)(tap)
                step += 1

        @pl.when(t == total_t - 1)
        def _finalize():
            yv = acc_ref[...] * scale_ref[...] + shift_ref[...]   # f32 epilogue
            if leaky:
                yv = jnp.where(yv >= 0, yv, LRELU_SLOPE * yv)
            o_ref[0] = yv.astype(o_ref.dtype)

    return kernel


def _plane_x_index_map(j, bh, t, *, off, kh):
    dy = jnp.minimum(jnp.maximum(t - off, 0), kh - 1)
    return (bh, 0, dy, 0, 0)


def _run_conv(entries, scaleP, shiftP, *, B, nH, Hb, Wo, leaky, t_cout, nj,
              coutP, vmem_limit):
    """entries: list of dicts with keys
         x    : 'shift': (B*nH, Hb+2, Wp, Cin) bf16 ; 'plane': (B*nH, Hb, 2, Wp, Cin)
         w    : (kh, kw, Cin, CoutP) bf16 tap weights
         mode, kh, kw, Wp, Cin : static descriptors
       All entries accumulate into the same (B*nH, Hb, Wo, CoutP) bf16 output."""
    BH = B * nH
    total_t = sum(e['kh'] for e in entries)

    offs = []
    o = 0
    for e in entries:
        offs.append(o)
        o += e['kh']

    in_specs = []
    args = []
    for e, off in zip(entries, offs):
        if e['mode'] == 'shift':
            blk = (1, Hb + 2, e['Wp'], e['Cin'])
            in_specs.append(pl.BlockSpec(blk, lambda j, bh, t: (bh, 0, 0, 0)))
        else:
            blk = (1, Hb, 1, e['Wp'], e['Cin'])
            in_specs.append(pl.BlockSpec(
                blk, functools.partial(_plane_x_index_map, off=off, kh=e['kh'])))
        args.append(e['x'])

    for e in entries:
        # Full-tap weight block, resident per Cout tile (DMA'd once per j).
        in_specs.append(pl.BlockSpec((e['kh'], e['kw'], e['Cin'], t_cout),
                                     lambda j, bh, t: (0, 0, 0, j)))
        args.append(e['w'])

    in_specs.append(pl.BlockSpec((1, t_cout), lambda j, bh, t: (0, j)))
    in_specs.append(pl.BlockSpec((1, t_cout), lambda j, bh, t: (0, j)))
    args.append(scaleP)
    args.append(shiftP)

    descs = [dict(mode=e['mode'], kh=e['kh'], kw=e['kw'], Wp=e['Wp'], Cin=e['Cin'])
             for e in entries]
    kernel = _make_conv_kernel(descs, Hb, Wo, leaky, total_t)

    return pl.pallas_call(
        kernel,
        out_shape=jax.ShapeDtypeStruct((BH, Hb, Wo, coutP), jnp.bfloat16),
        grid_spec=pltpu.PrefetchScalarGridSpec(
            num_scalar_prefetch=0,
            grid=(nj, BH, total_t),
            in_specs=in_specs,
            out_specs=pl.BlockSpec((1, Hb, Wo, t_cout),
                                   lambda j, bh, t: (bh, 0, 0, j)),
            scratch_shapes=[pltpu.VMEM((Hb, Wo, t_cout), jnp.float32)],
        ),
        compiler_params=pltpu.CompilerParams(
            dimension_semantics=("parallel", "parallel", "arbitrary"),
            vmem_limit_bytes=vmem_limit,
        ),
    )(*args)


# ----------------------------------------------------------------------------
# Conv wrappers
# ----------------------------------------------------------------------------
def conv3x3_pallas(xs, p, cfg):
    """3x3 conv (pad=1, stride=1) over the channel-concat of the inputs in `xs`
    (the concat itself is never materialized)."""
    B, H, W, _ = xs[0].shape
    coutP = p['coutP']
    t_cout = min(coutP, cfg['max_cout_tile'])
    nj = coutP // t_cout
    Wp = _round_up(W + 2, 8)
    cins = [x.shape[-1] for x in xs]
    assert len(xs) == len(p['w_parts'])
    for x, wpart in zip(xs, p['w_parts']):
        assert x.shape[-1] == wpart.shape[2]

    Hb = _pick_band(H, lambda hb: _conv3_bytes(hb, Wp, W, cins, t_cout),
                    cfg['band_budget'], cfg.get('band_cap'))
    nH = H // Hb

    entries = []
    for x, wpart in zip(xs, p['w_parts']):
        cin = x.shape[-1]
        xp = jnp.pad(x, ((0, 0), (1, 1), (1, Wp - W - 1), (0, 0)))
        if nH > 1:
            # halo'd H-bands: band h = padded rows [h*Hb, h*Hb + Hb + 2)
            idx = (np.arange(nH) * Hb)[:, None] + np.arange(Hb + 2)[None, :]
            xb = xp[:, idx].reshape(B * nH, Hb + 2, Wp, cin)
        else:
            xb = xp
        entries.append(dict(x=xb, w=wpart, mode='shift', kh=3, kw=3, Wp=Wp, Cin=cin))

    out = _run_conv(entries, p['scaleP'], p['shiftP'], B=B, nH=nH, Hb=Hb, Wo=W,
                    leaky=p['leaky'], t_cout=t_cout, nj=nj, coutP=coutP,
                    vmem_limit=cfg['vmem_limit'])
    out = out.reshape(B, nH * Hb, W, coutP)
    return out if coutP == p['cout'] else out[..., :p['cout']]


def pool_conv2x2s2_pallas(x, p, cfg):
    """2x2 stride-2 conv.  Space-to-depth uses only free contiguous reshapes
    (w-pair -> channels, row-parity -> plane axis); the kernel does 2 tap matmuls."""
    B, H, W, cin = x.shape
    ho, wo = H // 2, W // 2
    coutP = p['coutP']
    t_cout = min(coutP, cfg['max_cout_tile'])
    nj = coutP // t_cout
    wo8 = _round_up(wo, 8)

    Hb = _pick_band(ho, lambda hb: _pool_bytes(hb, wo8, wo, 2 * cin, t_cout),
                    cfg['band_budget'], cfg.get('band_cap'))
    nH = ho // Hb

    xr = x.reshape(B, H, wo, 2 * cin).reshape(B, ho, 2, wo, 2 * cin)
    xr = xr.reshape(B * nH, Hb, 2, wo, 2 * cin)        # free contiguous reshapes
    if wo8 != wo:
        xr = jnp.pad(xr, ((0, 0), (0, 0), (0, 0), (0, wo8 - wo), (0, 0)))

    entries = [dict(x=xr, w=p['w_parts'][0], mode='plane', kh=2, kw=1,
                    Wp=wo8, Cin=2 * cin)]
    out = _run_conv(entries, p['scaleP'], p['shiftP'], B=B, nH=nH, Hb=Hb, Wo=wo,
                    leaky=p['leaky'], t_cout=t_cout, nj=nj, coutP=coutP,
                    vmem_limit=cfg['vmem_limit'])
    out = out.reshape(B, nH * Hb, wo, coutP)
    return out if coutP == p['cout'] else out[..., :p['cout']]


def apply_conv_pallas(xs, p, cfg):
    if p['k'] == 3:
        return conv3x3_pallas(xs, p, cfg)
    assert len(xs) == 1
    return pool_conv2x2s2_pallas(xs[0], p, cfg)


# ----------------------------------------------------------------------------
# Rain-noise add/blend kernel (two-plane output; concat is never materialized)
# ----------------------------------------------------------------------------
def _blend_kernel(x_ref, r_ref, o_ref):
    x = x_ref[0].astype(jnp.float32)
    r = r_ref[0].astype(jnp.float32)
    add = x - r
    blend = add / (1.0 - r + BLEND_EPS)      # exact division (accuracy vs approx recip)
    o_ref[0, 0] = add.astype(o_ref.dtype)
    o_ref[1, 0] = blend.astype(o_ref.dtype)


def blend_pallas(x, rain, vmem_limit):
    B, H, W, C = x.shape
    WC = W * C
    x2 = x.reshape(B, H, WC)                 # free reshape, lane-merged layout
    r2 = rain.reshape(B, H, WC)
    out = pl.pallas_call(
        _blend_kernel,
        out_shape=jax.ShapeDtypeStruct((2, B, H, WC), x.dtype),
        grid_spec=pltpu.PrefetchScalarGridSpec(
            num_scalar_prefetch=0,
            grid=(B,),
            in_specs=[pl.BlockSpec((1, H, WC), lambda b: (b, 0, 0)),
                      pl.BlockSpec((1, H, WC), lambda b: (b, 0, 0))],
            out_specs=pl.BlockSpec((2, 1, H, WC), lambda b: (0, b, 0, 0)),
        ),
        compiler_params=pltpu.CompilerParams(
            dimension_semantics=("parallel",),
            vmem_limit_bytes=vmem_limit,
        ),
    )(x2, r2)
    add = out[0].reshape(B, H, W, C)
    blend = out[1].reshape(B, H, W, C)
    return add, blend


# ----------------------------------------------------------------------------
# Bilinear x2 upsampling (F.interpolate, align_corners=False) — plain JAX glue
# ----------------------------------------------------------------------------
def upsample2x_bilinear(x):
    B, H, W, C = x.shape
    xf = x.astype(jnp.float32)

    def idx_w(n):
        s = (jnp.arange(2 * n, dtype=jnp.float32) + 0.5) / 2.0 - 0.5
        s = jnp.clip(s, 0.0, float(n - 1))
        i0 = jnp.floor(s).astype(jnp.int32)
        i1 = jnp.minimum(i0 + 1, n - 1)
        f = s - i0.astype(jnp.float32)
        return i0, i1, f

    hi0, hi1, hf = idx_w(H)
    xf = (xf[:, hi0, :, :] * (1.0 - hf)[None, :, None, None]
          + xf[:, hi1, :, :] * hf[None, :, None, None])
    wi0, wi1, wf = idx_w(W)
    xf = (xf[:, :, wi0, :] * (1.0 - wf)[None, None, :, None]
          + xf[:, :, wi1, :] * wf[None, None, :, None])
    return xf.astype(x.dtype)


# ----------------------------------------------------------------------------
# Parameters: deterministic PyTorch-default-style init; BN eval-mode (folded);
# Pallas-ready weights (transposed, Cout-padded, Cin-split, bf16) built ONCE here.
# ----------------------------------------------------------------------------
def make_conv_params(key, cin, cout, k, bn, leaky, splits=None):
    kw_, kb_ = jax.random.split(key)
    fan_in = cin * k * k
    bound = 1.0 / float(np.sqrt(fan_in))
    w = jax.random.uniform(kw_, (cout, cin, k, k), jnp.float32, -bound, bound)
    b = jax.random.uniform(kb_, (cout,), jnp.float32, -bound, bound)
    if bn:
        gamma = jnp.ones((cout,), jnp.float32)
        beta = jnp.zeros((cout,), jnp.float32)
        mean = jnp.zeros((cout,), jnp.float32)
        var = jnp.ones((cout,), jnp.float32)
        scale = gamma / jnp.sqrt(var + BN_EPS)
        shift = (b - mean) * scale + beta
    else:
        scale = jnp.ones((cout,), jnp.float32)
        shift = b
    p = dict(k=k, leaky=leaky, cout=cout, w=w, scale=scale, shift=shift)

    # --- prepared (Pallas) weights ---
    coutP = max(_round_up(cout, 8), 8)               # lane-pad tiny output channels
    wP = jnp.pad(w, ((0, coutP - cout), (0, 0), (0, 0), (0, 0)))
    scaleP = jnp.pad(scale, (0, coutP - cout), constant_values=1.0)
    shiftP = jnp.pad(shift, (0, coutP - cout))
    wt = jnp.transpose(wP, (2, 3, 1, 0)).astype(jnp.bfloat16)   # (k, k, cin, coutP)
    if k == 3:
        if splits is None:
            splits = (cin,)
        parts = []
        off = 0
        for c in splits:
            parts.append(wt[:, :, off:off + c, :])
            off += c
        assert off == cin
    else:
        # 2x2 stride-2: merge (kw, cin) -> 2*cin (kw-major) to match space-to-depth.
        parts = [wt.reshape(2, 1, 2 * cin, coutP)]
    p.update(coutP=coutP,
             w_parts=parts,
             scaleP=scaleP.reshape(1, coutP).astype(jnp.float32),
             shiftP=shiftP.reshape(1, coutP).astype(jnp.float32))
    return p


def init_params(key):
    nb = [64, 128, 256, 512, 1024]
    cin, cimg = 3, 3
    ks = iter(jax.random.split(key, 40))

    def dconv(c_in, c_out, splits=None):
        return [make_conv_params(next(ks), c_in, c_out, 3, True, True, splits=splits),
                make_conv_params(next(ks), c_out, c_out, 3, True, True)]

    P = {}
    P['enc0'] = dconv(cin, nb[0])
    P['pool0'] = [make_conv_params(next(ks), nb[0], nb[0], 2, False, False)]
    P['enc1'] = dconv(nb[0], nb[1])
    P['pool1'] = [make_conv_params(next(ks), nb[1], nb[1], 2, False, False)]
    P['enc2'] = dconv(nb[1], nb[2])
    P['pool2'] = [make_conv_params(next(ks), nb[2], nb[2], 2, False, False)]
    P['enc3'] = dconv(nb[2], nb[3])
    P['pool3'] = [make_conv_params(next(ks), nb[3], nb[3], 2, False, False)]
    P['enc4'] = dconv(nb[3], nb[4])
    P['dec3'] = dconv(nb[4] + nb[3], nb[3], splits=(nb[4], nb[3]))
    P['dec2'] = dconv(nb[3] + nb[2], nb[2], splits=(nb[3], nb[2]))
    P['dec1'] = dconv(nb[2] + nb[1], nb[1], splits=(nb[2], nb[1]))
    P['dec0'] = dconv(nb[1] + nb[0], nb[0], splits=(nb[1], nb[0])) + \
        [make_conv_params(next(ks), nb[0], cimg, 3, False, False)]
    P['convb'] = [make_conv_params(next(ks), cimg * 2, nb[0], 3, True, True,
                                   splits=(cimg, cimg)),
                  make_conv_params(next(ks), nb[0], nb[0], 3, True, True),
                  make_conv_params(next(ks), nb[0], cimg, 3, False, False)]
    return P


# ----------------------------------------------------------------------------
# Reference (pure-JAX) path — same bf16-storage / bf16-MXU / f32-accumulate policy
# ----------------------------------------------------------------------------
def apply_conv_ref(xs, p):
    x = xs[0] if len(xs) == 1 else jnp.concatenate(xs, axis=-1)
    w = jnp.transpose(p['w'], (2, 3, 1, 0)).astype(jnp.bfloat16)
    if p['k'] == 3:
        stride, pad = (1, 1), 'SAME'
    else:
        stride, pad = (2, 2), 'VALID'
    y = lax.conv_general_dilated(
        x, w, stride, pad,
        dimension_numbers=('NHWC', 'HWIO', 'NHWC'),
        preferred_element_type=jnp.float32)
    y = y * p['scale'] + p['shift']
    if p['leaky']:
        y = jnp.where(y >= 0, y, LRELU_SLOPE * y)
    return y.astype(jnp.bfloat16)


# ----------------------------------------------------------------------------
# Forward pass
# ----------------------------------------------------------------------------
def generator_unet4_forward(x_nchw, P, use_pallas=True, band_cap=None):
    cfg = make_conv_cfg(band_cap)
    if use_pallas:
        conv = lambda xs, p: apply_conv_pallas(xs, p, cfg)
    else:
        conv = apply_conv_ref

    x = jnp.transpose(x_nchw, (0, 2, 3, 1)).astype(jnp.bfloat16)  # NCHW -> NHWC, bf16

    def block(name, first_inputs):
        z = None
        for i, p in enumerate(P[name]):
            z = conv(first_inputs if i == 0 else [z], p)
        return z

    x0_0 = block('enc0', [x])
    x0_1 = block('pool0', [x0_0])
    x1_0 = block('enc1', [x0_1])
    x1_1 = block('pool1', [x1_0])
    x2_0 = block('enc2', [x1_1])
    x2_1 = block('pool2', [x2_0])
    x3_0 = block('enc3', [x2_1])
    x3_1 = block('pool3', [x3_0])
    x4_0 = block('enc4', [x3_1])

    # decoder: the channel concat with the skip connection is folded into the first
    # conv of each decoder block (two-input kernel), never materialized in HBM.
    x3_3 = block('dec3', [upsample2x_bilinear(x4_0), x3_0])
    x2_3 = block('dec2', [upsample2x_bilinear(x3_3), x2_0])
    x1_3 = block('dec1', [upsample2x_bilinear(x2_3), x1_0])
    x0_3 = block('dec0', [upsample2x_bilinear(x1_3), x0_0])

    rain_noise = x0_3
    if use_pallas:
        add, blend = blend_pallas(x, rain_noise, cfg['vmem_limit'])
    else:
        xf = x.astype(jnp.float32)
        rf = rain_noise.astype(jnp.float32)
        add = (xf - rf).astype(jnp.bfloat16)
        blend = ((xf - rf) / (1.0 - rf + BLEND_EPS)).astype(jnp.bfloat16)

    output = block('convb', [add, blend])        # concat([add, blend]) never materialized
    out = jnp.concatenate([output, rain_noise], axis=-1)
    return jnp.transpose(out, (0, 3, 1, 2)).astype(jnp.float32)   # NHWC -> NCHW


if __name__ == "__main__":
    key = jax.random.PRNGKey(0)
    pkey, xkey = jax.random.split(key)
    params = init_params(pkey)
    x = jax.random.normal(xkey, (2, 3, 16, 16), jnp.float32)   # NCHW like PyTorch

    # Pallas path, default band selection (whole-image bands at this tiny size).
    out = generator_unet4_forward(x, params, use_pallas=True)
    out = jax.block_until_ready(out)
    assert out.shape == (2, 6, 16, 16), out.shape

    # Pallas path with forced H-banding (exercises the halo'd band machinery).
    out_banded = generator_unet4_forward(x, params, use_pallas=True, band_cap=8)
    out_banded = jax.block_until_ready(out_banded)
    assert out_banded.shape == (2, 6, 16, 16), out_banded.shape

    # Pure-JAX reference with the same bf16-storage / f32-accumulate policy.
    ref = generator_unet4_forward(x, params, use_pallas=False)
    ref = jax.block_until_ready(ref)

    err = float(jnp.max(jnp.abs(out - ref)))
    err_b = float(jnp.max(jnp.abs(out_banded - ref)))
    # Both paths use bf16 MXU inputs with f32 accumulation and bf16 inter-layer
    # storage; remaining differences are accumulation order / rounding only.
    assert np.isfinite(err) and err < 6e-2, f"Pallas vs reference mismatch: {err}"
    assert np.isfinite(err_b) and err_b < 6e-2, f"banded Pallas vs reference: {err_b}"

    print("KERNEL_OK")
</pallas_src>

<mosaic_0001>
module attributes {stable_mosaic.version = 11 : i64} {
  func.func @kernel(%arg0: i32, %arg1: i32, %arg2: i32, %arg3: memref<1x18x24x3xbf16, #tpu.memory_space<vmem>>, %arg4: memref<3x3x3x64xbf16, #tpu.memory_space<vmem>>, %arg5: memref<1x64xf32, #tpu.memory_space<vmem>>, %arg6: memref<1x64xf32, #tpu.memory_space<vmem>>, %arg7: memref<1x16x16x64xbf16, #tpu.memory_space<vmem>>, %arg8: memref<16x16x64xf32, #tpu.memory_space<vmem>>) attributes {dimension_semantics = [#tpu.dimension_semantics<parallel>, #tpu.dimension_semantics<parallel>, #tpu.dimension_semantics<arbitrary>], iteration_bounds = array<i64: 1, 2, 3>, scalar_prefetch = 0 : i64, scratch_operands = 1 : i64, tpu.core_type = #tpu.core_type<tc>, window_params = [{transform_indices = @transform_0, window_bounds = array<i64: 1, 18, 24, 3>}, {transform_indices = @transform_1, window_bounds = array<i64: 3, 3, 3, 64>}, {transform_indices = @transform_2, window_bounds = array<i64: 1, 64>}, {transform_indices = @transform_3, window_bounds = array<i64: 1, 64>}, {transform_indices = @transform_4, window_bounds = array<i64: 1, 16, 16, 64>}]} {
    %c0_i32 = arith.constant 0 : i32
    %0 = arith.cmpi eq, %arg2, %c0_i32 : i32
    %1 = arith.extui %0 : i1 to i32
    %c0_i32_0 = arith.constant 0 : i32
    %2 = arith.cmpi ne, %1, %c0_i32_0 : i32
    scf.if %2 {
      %cst = arith.constant 0.000000e+00 : f32
      %15 = vector.broadcast %cst : f32 to vector<16x16x64xf32>
      %c0 = arith.constant 0 : index
      %c0_7 = arith.constant 0 : index
      %c0_8 = arith.constant 0 : index
      %16 = vector.load %arg8[%c0, %c0_7, %c0_8] : memref<16x16x64xf32, #tpu.memory_space<vmem>>, vector<16x16x64xf32>
      tpu.vector_store %arg8[%c0, %c0_7, %c0_8], %15 {strides = array<i32>} : memref<16x16x64xf32, #tpu.memory_space<vmem>>, vector<16x16x64xf32>,
    } else {
    }
    %c0_i32_1 = arith.constant 0 : i32
    %3 = arith.cmpi eq, %arg2, %c0_i32_1 : i32
    %4 = arith.extui %3 : i1 to i32
    %c0_i32_2 = arith.constant 0 : i32
    %5 = arith.cmpi ne, %4, %c0_i32_2 : i32
    scf.if %5 {
      %c0 = arith.constant 0 : index
      %c0_7 = arith.constant 0 : index
      %c0_8 = arith.constant 0 : index
      %c0_9 = arith.constant 0 : index
      %15 = vector.load %arg3[%c0, %c0_7, %c0_8, %c0_9] : memref<1x18x24x3xbf16, #tpu.memory_space<vmem>>, vector<1x16x24x3xbf16>
      %16 = vector.shape_cast %15 : vector<1x16x24x3xbf16> to vector<16x24x3xbf16>
      %17 = vector.shape_cast %16 : vector<16x24x3xbf16> to vector<384x3xbf16>
      %c0_10 = arith.constant 0 : index
      %c0_11 = arith.constant 0 : index
      %c0_12 = arith.constant 0 : index
      %c0_13 = arith.constant 0 : index
      %18 = vector.load %arg4[%c0_10, %c0_11, %c0_12, %c0_13] : memref<3x3x3x64xbf16, #tpu.memory_space<vmem>>, vector<1x1x3x64xbf16>
      %19 = vector.shape_cast %18 : vector<1x1x3x64xbf16> to vector<3x64xbf16>
      %cst = arith.constant dense<0.000000e+00> : vector<384x64xf32>
      %20 = tpu.matmul %17, %19, %cst {dimension_numbers = #tpu.dot_dimension_numbers<[1], [0], [0], [1], [0, 0, 1, 1], [], []>} : vector<384x3xbf16>, vector<3x64xbf16>, vector<384x64xf32> -> vector<384x64xf32>
      %21 = vector.shape_cast %20 : vector<384x64xf32> to vector<16x24x64xf32>
      %22 = vector.extract_strided_slice %21 {offsets = [0, 0, 0], sizes = [16, 16, 64], strides = [1, 1, 1]} : vector<16x24x64xf32> to vector<16x16x64xf32>
      %c0_14 = arith.constant 0 : index
      %c1 = arith.constant 1 : index
      %c0_15 = arith.constant 0 : index
      %c0_16 = arith.constant 0 : index
      %23 = vector.load %arg4[%c0_14, %c1, %c0_15, %c0_16] : memref<3x3x3x64xbf16, #tpu.memory_space<vmem>>, vector<1x1x3x64xbf16>
      %24 = vector.shape_cast %23 : vector<1x1x3x64xbf16> to vector<3x64xbf16>
      %cst_17 = arith.constant dense<0.000000e+00> : vector<384x64xf32>
      %25 = tpu.matmul %17, %24, %cst_17 {dimension_numbers = #tpu.dot_dimension_numbers<[1], [0], [0], [1], [0, 0, 1, 1], [], []>} : vector<384x3xbf16>, vector<3x64xbf16>, vector<384x64xf32> -> vector<384x64xf32>
      %26 = vector.shape_cast %25 : vector<384x64xf32> to vector<16x24x64xf32>
      %27 = vector.extract_strided_slice %26 {offsets = [0, 1, 0], sizes = [16, 16, 64], strides = [1, 1, 1]} : vector<16x24x64xf32> to vector<16x16x64xf32>
      %28 = arith.addf %22, %27 : vector<16x16x64xf32>
      %c0_18 = arith.constant 0 : index
      %c2 = arith.constant 2 : index
      %c0_19 = arith.constant 0 : index
      %c0_20 = arith.constant 0 : index
      %29 = vector.load %arg4[%c0_18, %c2, %c0_19, %c0_20] : memref<3x3x3x64xbf16, #tpu.memory_space<vmem>>, vector<1x1x3x64xbf16>
      %30 = vector.shape_cast %29 : vector<1x1x3x64xbf16> to vector<3x64xbf16>
      %cst_21 = arith.constant dense<0.000000e+00> : vector<384x64xf32>
      %31 = tpu.matmul %17, %30, %cst_21 {dimension_numbers = #tpu.dot_dimension_numbers<[1], [0], [0], [1], [0, 0, 1, 1], [], []>} : vector<384x3xbf16>, vector<3x64xbf16>, vector<384x64xf32> -> vector<384x64xf32>
      %32 = vector.shape_cast %31 : vector<384x64xf32> to vector<16x24x64xf32>
      %33 = vector.extract_strided_slice %32 {offsets = [0, 2, 0], sizes = [16, 16, 64], strides = [1, 1, 1]} : vector<16x24x64xf32> to vector<16x16x64xf32>
      %34 = arith.addf %28, %33 : vector<16x16x64xf32>
      %c0_22 = arith.constant 0 : index
      %c0_23 = arith.constant 0 : index
      %c0_24 = arith.constant 0 : index
      %35 = vector.load %arg8[%c0_22, %c0_23, %c0_24] : memref<16x16x64xf32, #tpu.memory_space<vmem>>, vector<16x16x64xf32>
      %36 = arith.addf %35, %34 : vector<16x16x64xf32>
      %c0_25 = arith.constant 0 : index
      %c0_26 = arith.constant 0 : index
      %c0_27 = arith.constant 0 : index
      %37 = vector.load %arg8[%c0_25, %c0_26, %c0_27] : memref<16x16x64xf32, #tpu.memory_space<vmem>>, vector<16x16x64xf32>
      tpu.vector_store %arg8[%c0_25, %c0_26, %c0_27], %36 {strides = array<i32>} : memref<16x16x64xf32, #tpu.memory_space<vmem>>, vector<16x16x64xf32>,
    } else {
    }
    %c1_i32 = arith.constant 1 : i32
    %6 = arith.cmpi eq, %arg2, %c1_i32 : i32
    %7 = arith.extui %6 : i1 to i32
    %c0_i32_3 = arith.constant 0 : i32
    %8 = arith.cmpi ne, %7, %c0_i32_3 : i32
    scf.if %8 {
      %c0 = arith.constant 0 : index
      %c1 = arith.constant 1 : index
      %c0_7 = arith.constant 0 : index
      %c0_8 = arith.constant 0 : index
      %15 = vector.load %arg3[%c0, %c1, %c0_7, %c0_8] : memref<1x18x24x3xbf16, #tpu.memory_space<vmem>>, vector<1x16x24x3xbf16>
      %16 = vector.shape_cast %15 : vector<1x16x24x3xbf16> to vector<16x24x3xbf16>
      %17 = vector.shape_cast %16 : vector<16x24x3xbf16> to vector<384x3xbf16>
      %c1_9 = arith.constant 1 : index
      %c0_10 = arith.constant 0 : index
      %c0_11 = arith.constant 0 : index
      %c0_12 = arith.constant 0 : index
      %18 = vector.load %arg4[%c1_9, %c0_10, %c0_11, %c0_12] : memref<3x3x3x64xbf16, #tpu.memory_space<vmem>>, vector<1x1x3x64xbf16>
      %19 = vector.shape_cast %18 : vector<1x1x3x64xbf16> to vector<3x64xbf16>
      %cst = arith.constant dense<0.000000e+00> : vector<384x64xf32>
      %20 = tpu.matmul %17, %19, %cst {dimension_numbers = #tpu.dot_dimension_numbers<[1], [0], [0], [1], [0, 0, 1, 1], [], []>} : vector<384x3xbf16>, vector<3x64xbf16>, vector<384x64xf32> -> vector<384x64xf32>
      %21 = vector.shape_cast %20 : vector<384x64xf32> to vector<16x24x64xf32>
      %22 = vector.extract_strided_slice %21 {offsets = [0, 0, 0], sizes = [16, 16, 64], strides = [1, 1, 1]} : vector<16x24x64xf32> to vector<16x16x64xf32>
      %c1_13 = arith.constant 1 : index
      %c1_14 = arith.constant 1 : index
      %c0_15 = arith.constant 0 : index
      %c0_16 = arith.constant 0 : index
      %23 = vector.load %arg4[%c1_13, %c1_14, %c0_15, %c0_16] : memref<3x3x3x64xbf16, #tpu.memory_space<vmem>>, vector<1x1x3x64xbf16>
      %24 = vector.shape_cast %23 : vector<1x1x3x64xbf16> to vector<3x64xbf16>
      %cst_17 = arith.constant dense<0.000000e+00> : vector<384x64xf32>
      %25 = tpu.matmul %17, %24, %cst_17 {dimension_numbers = #tpu.dot_dimension_numbers<[1], [0], [0], [1], [0, 0, 1, 1], [], []>} : vector<384x3xbf16>, vector<3x64xbf16>, vector<384x64xf32> -> vector<384x64xf32>
      %26 = vector.shape_cast %25 : vector<384x64xf32> to vector<16x24x64xf32>
      %27 = vector.extract_strided_slice %26 {offsets = [0, 1, 0], sizes = [16, 16, 64], strides = [1, 1, 1]} : vector<16x24x64xf32> to vector<16x16x64xf32>
      %28 = arith.addf %22, %27 : vector<16x16x64xf32>
      %c1_18 = arith.constant 1 : index
      %c2 = arith.constant 2 : index
      %c0_19 = arith.constant 0 : index
      %c0_20 = arith.constant 0 : index
      %29 = vector.load %arg4[%c1_18, %c2, %c0_19, %c0_20] : memref<3x3x3x64xbf16, #tpu.memory_space<vmem>>, vector<1x1x3x64xbf16>
      %30 = vector.shape_cast %29 : vector<1x1x3x64xbf16> to vector<3x64xbf16>
      %cst_21 = arith.constant dense<0.000000e+00> : vector<384x64xf32>
      %31 = tpu.matmul %17, %30, %cst_21 {dimension_numbers = #tpu.dot_dimension_numbers<[1], [0], [0], [1], [0, 0, 1, 1], [], []>} : vector<384x3xbf16>, vector<3x64xbf16>, vector<384x64xf32> -> vector<384x64xf32>
      %32 = vector.shape_cast %31 : vector<384x64xf32> to vector<16x24x64xf32>
      %33 = vector.extract_strided_slice %32 {offsets = [0, 2, 0], sizes = [16, 16, 64], strides = [1, 1, 1]} : vector<16x24x64xf32> to vector<16x16x64xf32>
      %34 = arith.addf %28, %33 : vector<16x16x64xf32>
      %c0_22 = arith.constant 0 : index
      %c0_23 = arith.constant 0 : index
      %c0_24 = arith.constant 0 : index
      %35 = vector.load %arg8[%c0_22, %c0_23, %c0_24] : memref<16x16x64xf32, #tpu.memory_space<vmem>>, vector<16x16x64xf32>
      %36 = arith.addf %35, %34 : vector<16x16x64xf32>
      %c0_25 = arith.constant 0 : index
      %c0_26 = arith.constant 0 : index
      %c0_27 = arith.constant 0 : index
      %37 = vector.load %arg8[%c0_25, %c0_26, %c0_27] : memref<16x16x64xf32, #tpu.memory_space<vmem>>, vector<16x16x64xf32>
      tpu.vector_store %arg8[%c0_25, %c0_26, %c0_27], %36 {strides = array<i32>} : memref<16x16x64xf32, #tpu.memory_space<vmem>>, vector<16x16x64xf32>,
    } else {
    }
    %c2_i32 = arith.constant 2 : i32
    %9 = arith.cmpi eq, %arg2, %c2_i32 : i32
    %10 = arith.extui %9 : i1 to i32
    %c0_i32_4 = arith.constant 0 : i32
    %11 = arith.cmpi ne, %10, %c0_i32_4 : i32
    scf.if %11 {
      %c0 = arith.constant 0 : index
      %c2 = arith.constant 2 : index
      %c0_7 = arith.constant 0 : index
      %c0_8 = arith.constant 0 : index
      %15 = vector.load %arg3[%c0, %c2, %c0_7, %c0_8] : memref<1x18x24x3xbf16, #tpu.memory_space<vmem>>, vector<1x16x24x3xbf16>
      %16 = vector.shape_cast %15 : vector<1x16x24x3xbf16> to vector<16x24x3xbf16>
      %17 = vector.shape_cast %16 : vector<16x24x3xbf16> to vector<384x3xbf16>
      %c2_9 = arith.constant 2 : index
      %c0_10 = arith.constant 0 : index
      %c0_11 = arith.constant 0 : index
      %c0_12 = arith.constant 0 : index
      %18 = vector.load %arg4[%c2_9, %c0_10, %c0_11, %c0_12] : memref<3x3x3x64xbf16, #tpu.memory_space<vmem>>, vector<1x1x3x64xbf16>
      %19 = vector.shape_cast %18 : vector<1x1x3x64xbf16> to vector<3x64xbf16>
      %cst = arith.constant dense<0.000000e+00> : vector<384x64xf32>
      %20 = tpu.matmul %17, %19, %cst {dimension_numbers = #tpu.dot_dimension_numbers<[1], [0], [0], [1], [0, 0, 1, 1], [], []>} : vector<384x3xbf16>, vector<3x64xbf16>, vector<384x64xf32> -> vector<384x64xf32>
      %21 = vector.shape_cast %20 : vector<384x64xf32> to vector<16x24x64xf32>
      %22 = vector.extract_strided_slice %21 {offsets = [0, 0, 0], sizes = [16, 16, 64], strides = [1, 1, 1]} : vector<16x24x64xf32> to vector<16x16x64xf32>
      %c2_13 = arith.constant 2 : index
      %c1 = arith.constant 1 : index
      %c0_14 = arith.constant 0 : index
      %c0_15 = arith.constant 0 : index
      %23 = vector.load %arg4[%c2_13, %c1, %c0_14, %c0_15] : memref<3x3x3x64xbf16, #tpu.memory_space<vmem>>, vector<1x1x3x64xbf16>
      %24 = vector.shape_cast %23 : vector<1x1x3x64xbf16> to vector<3x64xbf16>
      %cst_16 = arith.constant dense<0.000000e+00> : vector<384x64xf32>
      %25 = tpu.matmul %17, %24, %cst_16 {dimension_numbers = #tpu.dot_dimension_numbers<[1], [0], [0], [1], [0, 0, 1, 1], [], []>} : vector<384x3xbf16>, vector<3x64xbf16>, vector<384x64xf32> -> vector<384x64xf32>
      %26 = vector.shape_cast %25 : vector<384x64xf32> to vector<16x24x64xf32>
      %27 = vector.extract_strided_slice %26 {offsets = [0, 1, 0], sizes = [16, 16, 64], strides = [1, 1, 1]} : vector<16x24x64xf32> to vector<16x16x64xf32>
      %28 = arith.addf %22, %27 : vector<16x16x64xf32>
      %c2_17 = arith.constant 2 : index
      %c2_18 = arith.constant 2 : index
      %c0_19 = arith.constant 0 : index
      %c0_20 = arith.constant 0 : index
      %29 = vector.load %arg4[%c2_17, %c2_18, %c0_19, %c0_20] : memref<3x3x3x64xbf16, #tpu.memory_space<vmem>>, vector<1x1x3x64xbf16>
      %30 = vector.shape_cast %29 : vector<1x1x3x64xbf16> to vector<3x64xbf16>
      %cst_21 = arith.constant dense<0.000000e+00> : vector<384x64xf32>
      %31 = tpu.matmul %17, %30, %cst_21 {dimension_numbers = #tpu.dot_dimension_numbers<[1], [0], [0], [1], [0, 0, 1, 1], [], []>} : vector<384x3xbf16>, vector<3x64xbf16>, vector<384x64xf32> -> vector<384x64xf32>
      %32 = vector.shape_cast %31 : vector<384x64xf32> to vector<16x24x64xf32>
      %33 = vector.extract_strided_slice %32 {offsets = [0, 2, 0], sizes = [16, 16, 64], strides = [1, 1, 1]} : vector<16x24x64xf32> to vector<16x16x64xf32>
      %34 = arith.addf %28, %33 : vector<16x16x64xf32>
      %c0_22 = arith.constant 0 : index
      %c0_23 = arith.constant 0 : index
      %c0_24 = arith.constant 0 : index
      %35 = vector.load %arg8[%c0_22, %c0_23, %c0_24] : memref<16x16x64xf32, #tpu.memory_space<vmem>>, vector<16x16x64xf32>
      %36 = arith.addf %35, %34 : vector<16x16x64xf32>
      %c0_25 = arith.constant 0 : index
      %c0_26 = arith.constant 0 : index
      %c0_27 = arith.constant 0 : index
      %37 = vector.load %arg8[%c0_25, %c0_26, %c0_27] : memref<16x16x64xf32, #tpu.memory_space<vmem>>, vector<16x16x64xf32>
      tpu.vector_store %arg8[%c0_25, %c0_26, %c0_27], %36 {strides = array<i32>} : memref<16x16x64xf32, #tpu.memory_space<vmem>>, vector<16x16x64xf32>,
    } else {
    }
    %c2_i32_5 = arith.constant 2 : i32
    %12 = arith.cmpi eq, %arg2, %c2_i32_5 : i32
    %13 = arith.extui %12 : i1 to i32
    %c0_i32_6 = arith.constant 0 : i32
    %14 = arith.cmpi ne, %13, %c0_i32_6 : i32
    scf.if %14 {
      %c0 = arith.constant 0 : index
      %c0_7 = arith.constant 0 : index
      %c0_8 = arith.constant 0 : index
      %15 = vector.load %arg8[%c0, %c0_7, %c0_8] : memref<16x16x64xf32, #tpu.memory_space<vmem>>, vector<16x16x64xf32>
      %c0_9 = arith.constant 0 : index
      %c0_10 = arith.constant 0 : index
      %16 = vector.load %arg5[%c0_9, %c0_10] : memref<1x64xf32, #tpu.memory_space<vmem>>, vector<1x64xf32>
      %17 = vector.shape_cast %16 : vector<1x64xf32> to vector<1x1x64xf32>
      %18 = vector.broadcast %17 : vector<1x1x64xf32> to vector<16x16x64xf32>
      %19 = arith.mulf %15, %18 : vector<16x16x64xf32>
      %c0_11 = arith.constant 0 : index
      %c0_12 = arith.constant 0 : index
      %20 = vector.load %arg6[%c0_11, %c0_12] : memref<1x64xf32, #tpu.memory_space<vmem>>, vector<1x64xf32>
      %21 = vector.shape_cast %20 : vector<1x64xf32> to vector<1x1x64xf32>
      %22 = vector.broadcast %21 : vector<1x1x64xf32> to vector<16x16x64xf32>
      %23 = arith.addf %19, %22 : vector<16x16x64xf32>
      %cst = arith.constant 0.000000e+00 : f32
      %24 = vector.broadcast %cst : f32 to vector<16x16x64xf32>
      %25 = arith.cmpf oge, %23, %24 : vector<16x16x64xf32>
      %cst_13 = arith.constant 2.000000e-01 : f32
      %26 = vector.broadcast %cst_13 : f32 to vector<16x16x64xf32>
      %27 = arith.mulf %26, %23 : vector<16x16x64xf32>
      %28 = arith.select %25, %23, %27 : vector<16x16x64xi1>, vector<16x16x64xf32>
      %29 = arith.truncf %28 : vector<16x16x64xf32> to vector<16x16x64xbf16>
      %c0_14 = arith.constant 0 : index
      %c0_15 = arith.constant 0 : index
      %c0_16 = arith.constant 0 : index
      %c0_17 = arith.constant 0 : index
      %30 = vector.load %arg7[%c0_14, %c0_15, %c0_16, %c0_17] : memref<1x16x16x64xbf16, #tpu.memory_space<vmem>>, vector<1x16x16x64xbf16>
      %31 = vector.shape_cast %30 : vector<1x16x16x64xbf16> to vector<16x16x64xbf16>
      %32 = vector.shape_cast %29 : vector<16x16x64xbf16> to vector<1x16x16x64xbf16>
      tpu.vector_store %arg7[%c0_14, %c0_15, %c0_16, %c0_17], %32 {strides = array<i32>} : memref<1x16x16x64xbf16, #tpu.memory_space<vmem>>, vector<1x16x16x64xbf16>,
    } else {
    }
    return
  }
  func.func @transform_0(%arg0: i32, %arg1: i32, %arg2: i32) -> (i32, i32, i32, i32) {
    %c0_i32 = arith.constant 0 : i32
    %c0_i32_0 = arith.constant 0 : i32
    %c0_i32_1 = arith.constant 0 : i32
    %c0_i32_2 = arith.constant 0 : i32
    return %arg1, %c0_i32, %c0_i32_0, %c0_i32_1 : i32, i32, i32, i32
  }
  func.func @transform_1(%arg0: i32, %arg1: i32, %arg2: i32) -> (i32, i32, i32, i32) {
    %c0_i32 = arith.constant 0 : i32
    %c0_i32_0 = arith.constant 0 : i32
    %c0_i32_1 = arith.constant 0 : i32
    %c0_i32_2 = arith.constant 0 : i32
    return %c0_i32, %c0_i32_0, %c0_i32_1, %arg0 : i32, i32, i32, i32
  }
  func.func @transform_2(%arg0: i32, %arg1: i32, %arg2: i32) -> (i32, i32) {
    %c0_i32 = arith.constant 0 : i32
    %c0_i32_0 = arith.constant 0 : i32
    return %c0_i32, %arg0 : i32, i32
  }
  func.func @transform_3(%arg0: i32, %arg1: i32, %arg2: i32) -> (i32, i32) {
    %c0_i32 = arith.constant 0 : i32
    %c0_i32_0 = arith.constant 0 : i32
    return %c0_i32, %arg0 : i32, i32
  }
  func.func @transform_4(%arg0: i32, %arg1: i32, %arg2: i32) -> (i32, i32, i32, i32) {
    %c0_i32 = arith.constant 0 : i32
    %c0_i32_0 = arith.constant 0 : i32
    %c0_i32_1 = arith.constant 0 : i32
    return %arg1, %c0_i32, %c0_i32_0, %arg0 : i32, i32, i32, i32
  }
}

</mosaic_0001>

<llo_original>
// kernel: tpu_custom_call.1
$region0: #{tpu_custom_call.1}
  #allocation0 [shape = 'u32[]', space=smem, size = 0x4, offset = 0x4, fixed_abs, tag = 'smem constant byte address 0x4 - core index']
  #allocation1 [shape = 'u32[144,128]{1,0:T(1,128)}', space=vmem, size = 0x12000, scoped, tag = 'internal scratch']
  #allocation2 [shape = 'f32[16,16,64]{2,1,0:T(8,128)}', space=vmem, size = 0x20000, scoped, tag = 'scratch operand']
  %s0 = inlined_call_operand.vmem [shape: bf16[2,18,24,3], index: 0, kind: input, shape index: {}]
  %s1 = inlined_call_operand.vmem [shape: bf16[3,3,3,64], index: 1, kind: input, shape index: {}]
  %s2 = inlined_call_operand.vmem [shape: f32[1,64], index: 2, kind: input, shape index: {}]
  %s3 = inlined_call_operand.vmem [shape: f32[1,64], index: 3, kind: input, shape index: {}]
  %s4 = inlined_call_operand.hbm [shape: bf16[2,16,16,64], index: 4, kind: output, shape index: {}]
  %s5 = sld [smem:[#allocation0]]
  $region61: #{tpu_custom_call.1} parent=0
    _
  %s7 = ssub.s32 1, %s5
  %s8 = scalar_select 0, %s7, %s5
  $region1: #{tpu_custom_call.1} parent=0
    #allocation3 [shape = 'u8[131072]{0}', space=vmem, size = 0x20000, scoped, tag = 'output window, operand 0']
    #allocation4 [shape = 's32[2]{0}', space=sflag, size = 0x8, scoped, tag = 'scoped memory for tpu_custom_call.1']
    %9 = vsyncpa [#allocation4], 0
    %s10 = scalar_lea.sflag [#allocation4], 1
    %11 = vsyncpa %s10, 0
    loop: start=0, step=1, limit=8
    $region2: #{tpu_custom_call.1} parent=1 // loop_pre_header
      _
    $region3: #{tpu_custom_call.1} parent=1 // loop_header
      %s13 = sphi 0, %s17
      %p14 = scmp.ge.s32.totalorder %s13, 8
      %s20 = sphi 0, %s39
      %s21 = sphi 0, %s35
      %s22 = sphi 0, %s31
      %s23 = sphi 0, %s20
      %s24 = sphi 0, %s21
      %s25 = sphi 0, %s22
      %s26 = sphi 0, %s23
      %s27 = sphi 0, %s24
      %s28 = sphi 0, %s25
      %s42 = sphi 0, %s44
      %s45 = sphi 0, %s42
      %s46 = sphi 0, %s45
      %s62 = sphi 0, %s46
      %s68 = sphi 0, %s70
      %s71 = sphi 0, %s68
      %s72 = sphi 0, %s71
      %s88 = sphi 0, %s72
      %s94 = sphi 0, %s96
      %s97 = sphi 0, %s94
      %s98 = sphi 0, %s97
      %s114 = sphi 0, %s98
      %s120 = sphi 0, %s122
      %s123 = sphi 0, %s120
      %s124 = sphi 0, %s123
      %s140 = sphi 0, %s124
      %s148 = sphi 0, %s150
      %s151 = sphi 0, %s148
      %s152 = sphi 0, %s151
      %s168 = sphi 0, %s152
    $region4: #{tpu_custom_call.1} parent=1 // loop_header_branch
      %16 = sbr.rel (%p14) target = $region8
    $region5: #{tpu_custom_call.1} parent=1 // loop_body
      %s18 = ssub.s32 %s13, 1
      %s19 = ssub.s32 %s13, 2
      %s29 = sadd.s32 1, %s22
      %p30 = scmp.ge.s32.totalorder %s29, 3
      %s31 = scalar_select %p30, 0, %s29
      %s32 = sadd.s32 1, %s21
      %s33 = scalar_select %p30, %s32, %s21
      %p34 = scmp.ge.s32.totalorder %s33, 2
      %s35 = scalar_select %p34, 0, %s33
      %s36 = sadd.s32 1, %s20
      %s37 = scalar_select %p34, %s36, %s20
      %p38 = scmp.ge.s32.totalorder %s37, 1
      %s39 = scalar_select %p38, 0, %s37
      %s40 = ssub.s32 %s21, %s35
      %p41 = scmp.eq.s32.totalorder %s40, 0
      %s43 = sadd.s32 %s42, 1
      %s44 = scalar_select %p41, %s42, %s43
      %p47 = pneg %p41
      %p48 = scmp.eq.s32.totalorder %s13, 5
      %p49 = por %p47, %p48
      %p50 = scmp.ne.s32.totalorder %s42, %s45
      %p51 = scmp.eq.s32.totalorder %s13, 0
      %p52 = por %p50, %p51
      %p53 = scmp.ne.s32.totalorder %s42, %s45
      %p54 = scmp.eq.s32.totalorder %s18, 5
      %p55 = por %p53, %p54
      %p56 = scmp.ne.s32.totalorder %s45, %s46
      %p57 = scmp.eq.s32.totalorder %s18, 0
      %p58 = por %p56, %p57
      %p59 = scmp.ne.s32.totalorder %s45, %s46
      %p60 = scmp.eq.s32.totalorder %s19, 5
      %p61 = por %p59, %p60
      %p63 = scmp.ne.s32.totalorder %s46, %s62
      %p64 = scmp.eq.s32.totalorder %s19, 0
      %p65 = por %p63, %p64
      %s66 = ssub.s32 %s20, %s39
      %p67 = scmp.eq.s32.totalorder %s66, 0
      %s69 = sadd.s32 %s68, 1
      %s70 = scalar_select %p67, %s68, %s69
      %p73 = pneg %p67
      %p74 = scmp.eq.s32.totalorder %s13, 5
      %p75 = por %p73, %p74
      %p76 = scmp.ne.s32.totalorder %s68, %s71
      %p77 = scmp.eq.s32.totalorder %s13, 0
      %p78 = por %p76, %p77
      %p79 = scmp.ne.s32.totalorder %s68, %s71
      %p80 = scmp.eq.s32.totalorder %s18, 5
      %p81 = por %p79, %p80
      %p82 = scmp.ne.s32.totalorder %s71, %s72
      %p83 = scmp.eq.s32.totalorder %s18, 0
      %p84 = por %p82, %p83
      %p85 = scmp.ne.s32.totalorder %s71, %s72
      %p86 = scmp.eq.s32.totalorder %s19, 5
      %p87 = por %p85, %p86
      %p89 = scmp.ne.s32.totalorder %s72, %s88
      %p90 = scmp.eq.s32.totalorder %s19, 0
      %p91 = por %p89, %p90
      %s92 = ssub.s32 %s20, %s39
      %p93 = scmp.eq.s32.totalorder %s92, 0
      %s95 = sadd.s32 %s94, 1
      %s96 = scalar_select %p93, %s94, %s95
      %p99 = pneg %p93
      %p100 = scmp.eq.s32.totalorder %s13, 5
      %p101 = por %p99, %p100
      %p102 = scmp.ne.s32.totalorder %s94, %s97
      %p103 = scmp.eq.s32.totalorder %s13, 0
      %p104 = por %p102, %p103
      %p105 = scmp.ne.s32.totalorder %s94, %s97
      %p106 = scmp.eq.s32.totalorder %s18, 5
      %p107 = por %p105, %p106
      %p108 = scmp.ne.s32.totalorder %s97, %s98
      %p109 = scmp.eq.s32.totalorder %s18, 0
      %p110 = por %p108, %p109
      %p111 = scmp.ne.s32.totalorder %s97, %s98
      %p112 = scmp.eq.s32.totalorder %s19, 5
      %p113 = por %p111, %p112
      %p115 = scmp.ne.s32.totalorder %s98, %s114
      %p116 = scmp.eq.s32.totalorder %s19, 0
      %p117 = por %p115, %p116
      %s118 = ssub.s32 %s20, %s39
      %p119 = scmp.eq.s32.totalorder %s118, 0
      %s121 = sadd.s32 %s120, 1
      %s122 = scalar_select %p119, %s120, %s121
      %p125 = pneg %p119
      %p126 = scmp.eq.s32.totalorder %s13, 5
      %p127 = por %p125, %p126
      %p128 = scmp.ne.s32.totalorder %s120, %s123
      %p129 = scmp.eq.s32.totalorder %s13, 0
      %p130 = por %p128, %p129
      %p131 = scmp.ne.s32.totalorder %s120, %s123
      %p132 = scmp.eq.s32.totalorder %s18, 5
      %p133 = por %p131, %p132
      %p134 = scmp.ne.s32.totalorder %s123, %s124
      %p135 = scmp.eq.s32.totalorder %s18, 0
      %p136 = por %p134, %p135
      %p137 = scmp.ne.s32.totalorder %s123, %s124
      %p138 = scmp.eq.s32.totalorder %s19, 5
      %p139 = por %p137, %p138
      %p141 = scmp.ne.s32.totalorder %s124, %s140
      %p142 = scmp.eq.s32.totalorder %s19, 0
      %p143 = por %p141, %p142
      %s144 = ssub.s32 %s21, %s35
      %s145 = ssub.s32 %s20, %s39
      %s146 = sor.u32 %s144, %s145
      %p147 = scmp.eq.s32.totalorder %s146, 0
      %s149 = sadd.s32 %s148, 1
      %s150 = scalar_select %p147, %s148, %s149
      %p153 = pneg %p147
      %p154 = scmp.eq.s32.totalorder %s13, 5
      %p155 = por %p153, %p154
      %p156 = scmp.ne.s32.totalorder %s148, %s151
      %p157 = scmp.eq.s32.totalorder %s13, 0
      %p158 = por %p156, %p157
      %p159 = scmp.ne.s32.totalorder %s148, %s151
      %p160 = scmp.eq.s32.totalorder %s18, 5
      %p161 = por %p159, %p160
      %p162 = scmp.ne.s32.totalorder %s151, %s152
      %p163 = scmp.eq.s32.totalorder %s18, 0
      %p164 = por %p162, %p163
      %p165 = scmp.ne.s32.totalorder %s151, %s152
      %p166 = scmp.eq.s32.totalorder %s19, 5
      %p167 = por %p165, %p166
      %p169 = scmp.ne.s32.totalorder %s152, %s168
      %p170 = scmp.eq.s32.totalorder %s19, 0
      %p171 = por %p169, %p170
      %p172 = scmp.le.s32.totalorder 1, %s13
      %p173 = scmp.lt.s32.totalorder %s13, 7
      %p174 = pnand %p172, %p173
      %p175 = pneg %p174
      // Predicated region
      $region9: #{tpu_custom_call.1} parent=5 // pred_check
        _
      $region10: #{tpu_custom_call.1} parent=5 // pred_check_branch
        %177 = sbr.rel (%p174) target = $region12
      $region11: #{tpu_custom_call.1} parent=5 // pred_region
        %s178 = ssub.s32 %s13, 1
        // Predicated region
        $region13: #{tpu_custom_call.1} parent=11 // pred_check
          %p179 = pneg %p84
        $region14: #{tpu_custom_call.1} parent=11 // pred_check_branch
          %181 = sbr.rel (%p179) target = $region16
        $region15: #{tpu_custom_call.1} parent=11 // pred_region
          %p182 = scmp.lt.s32.totalorder %s23, 0
          %s183 = scalar_select %p182, %s23, 0
          %s184 = smul.addr %s183, 2
          %s185 = scalar_lea.vmem %s1, %s184
        $region16: #{tpu_custom_call.1} parent=11 // pred_fallthru
          _
        // Predicated region
        $region17: #{tpu_custom_call.1} parent=11 // pred_check
          %p186 = pneg %p110
        $region18: #{tpu_custom_call.1} parent=11 // pred_check_branch
          %188 = sbr.rel (%p186) target = $region20
        $region19: #{tpu_custom_call.1} parent=11 // pred_region
          %p189 = scmp.lt.s32.totalorder %s23, 0
          %s190 = scalar_select %p189, %s23, 0
          %s191 = scalar_lea.vmem %s2, %s190
        $region20: #{tpu_custom_call.1} parent=11 // pred_fallthru
          _
        // Predicated region
        $region21: #{tpu_custom_call.1} parent=11 // pred_check
          %p192 = pneg %p136
        $region22: #{tpu_custom_call.1} parent=11 // pred_check_branch
          %194 = sbr.rel (%p192) target = $region24
        $region23: #{tpu_custom_call.1} parent=11 // pred_region
          %p195 = scmp.lt.s32.totalorder %s23, 0
          %s196 = scalar_select %p195, %s23, 0
          %s197 = scalar_lea.vmem %s3, %s196
        $region24: #{tpu_custom_call.1} parent=11 // pred_fallthru
          _
      $region12: #{tpu_custom_call.1} parent=5 // pred_fallthru
        _
      %p198 = scmp.lt.s32.totalorder %s13, 6
      // Predicated region
      $region25: #{tpu_custom_call.1} parent=5 // pred_check
        %p199 = pneg %p198
      $region26: #{tpu_custom_call.1} parent=5 // pred_check_branch
        %201 = sbr.rel (%p199) target = $region28
      $region27: #{tpu_custom_call.1} parent=5 // pred_region
        // Predicated region
        $region29: #{tpu_custom_call.1} parent=27 // pred_check
          %p202 = pneg %p52
        $region30: #{tpu_custom_call.1} parent=27 // pred_check_branch
          %204 = sbr.rel (%p202) target = $region32
        $region31: #{tpu_custom_call.1} parent=27 // pred_region
          %p205 = scmp.lt.s32.totalorder %s21, 1
          %s206 = scalar_select %p205, %s21, 1
          %s207 = smul.addr %s206, 54
          %s208 = smul.addr %s207, 4
          %s209 = scalar_lea.vmem %s0, %s208
        $region32: #{tpu_custom_call.1} parent=27 // pred_fallthru
          _
      $region28: #{tpu_custom_call.1} parent=5 // pred_fallthru
        _
      %p210 = scmp.le.s32.totalorder 1, %s13
      %p211 = scmp.lt.s32.totalorder %s13, 7
      %p212 = pnand %p210, %p211
      %p213 = pneg %p212
      // Predicated region
      $region33: #{tpu_custom_call.1} parent=5 // pred_check
        _
      $region34: #{tpu_custom_call.1} parent=5 // pred_check_branch
        %215 = sbr.rel (%p212) target = $region36
      $region35: #{tpu_custom_call.1} parent=5 // pred_region
        %s216 = ssub.s32 %s13, 1
        %p217 = scmp.lt.s32.totalorder %s24, 1
        %s218 = scalar_select %p217, %s24, 1
        %s219 = smul.addr %s218, 54
        %s220 = smul.addr %s219, 4
        %s221 = scalar_lea.vmem %s0, %s220
        %p222 = pneg %p58
        %p223 = pneg %p55
        %p224 = scmp.lt.s32.totalorder %s23, 0
        %s225 = scalar_select %p224, %s23, 0
        %s226 = smul.addr %s225, 2
        %s227 = scalar_lea.vmem %s1, %s226
        %p228 = pneg %p84
        %p229 = pneg %p81
        %p230 = scmp.lt.s32.totalorder %s23, 0
        %s231 = scalar_select %p230, %s23, 0
        %s232 = scalar_lea.vmem %s2, %s231
        %p233 = pneg %p110
        %p234 = pneg %p107
        %p235 = scmp.lt.s32.totalorder %s23, 0
        %s236 = scalar_select %p235, %s23, 0
        %s237 = scalar_lea.vmem %s3, %s236
        %p238 = pneg %p136
        %p239 = pneg %p133
        %p240 = pneg %p164
        %p241 = pneg %p161
        %s242 = sand.u32 %s151, 1
        %s243 = scalar_lea.sflag [#allocation4], %s242
        %s244 = sand.u32 %s151, 1
        %s245 = smul.addr %s244, 128
        %s246 = scalar_lea.vmem [#allocation3], %s245
        %p247 = scmp.lt.s32.totalorder %s24, 1
        %s248 = scalar_select %p247, %s24, 1
        %s249 = smul.addr %s248, 54
        %s250 = smul.addr %s249, 4
        %s251 = scalar_lea.vmem %s0, %s250
        %p252 = scmp.lt.s32.totalorder %s23, 0
        %s253 = scalar_select %p252, %s23, 0
        %s254 = smul.addr %s253, 2
        %s255 = scalar_lea.vmem %s1, %s254
        %p256 = scmp.lt.s32.totalorder %s23, 0
        %s257 = scalar_select %p256, %s23, 0
        %s258 = scalar_lea.vmem %s2, %s257
        %p259 = scmp.lt.s32.totalorder %s23, 0
        %s260 = scalar_select %p259, %s23, 0
        %s261 = scalar_lea.vmem %s3, %s260
        %p263 = scmp.eq.s32.totalorder %s25, 0
        // Predicated region
        $region37: #{tpu_custom_call.1} parent=35 // pred_check
          %p264 = pneg %p263
        $region38: #{tpu_custom_call.1} parent=35 // pred_check_branch
          %266 = sbr.rel (%p264) target = $region40
        $region39: #{tpu_custom_call.1} parent=35 // pred_region
          %vm267 = vcmask 523264
          %268 = vst.msk [vmem:[#allocation2] sm:$0xff] %vm267, 0.0
          %269 = vst.msk [vmem:[#allocation2 + $0x8] sm:$0xff] %vm267, 0.0
          %270 = vst.msk [vmem:[#allocation2 + $0x10] sm:$0xff] %vm267, 0.0
          %271 = vst.msk [vmem:[#allocation2 + $0x18] sm:$0xff] %vm267, 0.0
          %272 = vst.msk [vmem:[#allocation2 + $0x20] sm:$0xff] %vm267, 0.0
          %273 = vst.msk [vmem:[#allocation2 + $0x28] sm:$0xff] %vm267, 0.0
          %274 = vst.msk [vmem:[#allocation2 + $0x30] sm:$0xff] %vm267, 0.0
          %275 = vst.msk [vmem:[#allocation2 + $0x38] sm:$0xff] %vm267, 0.0
          %276 = vst.msk [vmem:[#allocation2 + $0x40] sm:$0xff] %vm267, 0.0
          %277 = vst.msk [vmem:[#allocation2 + $0x48] sm:$0xff] %vm267, 0.0
          %278 = vst.msk [vmem:[#allocation2 + $0x50] sm:$0xff] %vm267, 0.0
          %279 = vst.msk [vmem:[#allocation2 + $0x58] sm:$0xff] %vm267, 0.0
          %280 = vst.msk [vmem:[#allocation2 + $0x60] sm:$0xff] %vm267, 0.0
          %281 = vst.msk [vmem:[#allocation2 + $0x68] sm:$0xff] %vm267, 0.0
          %282 = vst.msk [vmem:[#allocation2 + $0x70] sm:$0xff] %vm267, 0.0
          %283 = vst.msk [vmem:[#allocation2 + $0x78] sm:$0xff] %vm267, 0.0
          %284 = vst.msk [vmem:[#allocation2 + $0x80] sm:$0xff] %vm267, 0.0
          %285 = vst.msk [vmem:[#allocation2 + $0x88] sm:$0xff] %vm267, 0.0
          %286 = vst.msk [vmem:[#allocation2 + $0x90] sm:$0xff] %vm267, 0.0
          %287 = vst.msk [vmem:[#allocation2 + $0x98] sm:$0xff] %vm267, 0.0
          %288 = vst.msk [vmem:[#allocation2 + $0xa0] sm:$0xff] %vm267, 0.0
          %289 = vst.msk [vmem:[#allocation2 + $0xa8] sm:$0xff] %vm267, 0.0
          %290 = vst.msk [vmem:[#allocation2 + $0xb0] sm:$0xff] %vm267, 0.0
          %291 = vst.msk [vmem:[#allocation2 + $0xb8] sm:$0xff] %vm267, 0.0
          %292 = vst.msk [vmem:[#allocation2 + $0xc0] sm:$0xff] %vm267, 0.0
          %293 = vst.msk [vmem:[#allocation2 + $0xc8] sm:$0xff] %vm267, 0.0
          %294 = vst.msk [vmem:[#allocation2 + $0xd0] sm:$0xff] %vm267, 0.0
          %295 = vst.msk [vmem:[#allocation2 + $0xd8] sm:$0xff] %vm267, 0.0
          %296 = vst.msk [vmem:[#allocation2 + $0xe0] sm:$0xff] %vm267, 0.0
          %297 = vst.msk [vmem:[#allocation2 + $0xe8] sm:$0xff] %vm267, 0.0
          %298 = vst.msk [vmem:[#allocation2 + $0xf0] sm:$0xff] %vm267, 0.0
          %299 = vst.msk [vmem:[#allocation2 + $0xf8] sm:$0xff] %vm267, 0.0
          %v300 = vld [vmem:[%s251] sm:$0xf]
          %v301 = vld [vmem:[%s251 + $0x4] sm:$0xf]
          %v302 = vld [vmem:[%s251 + $0x8] sm:$0xf]
          %v303 = vld [vmem:[%s251 + $0xc] sm:$0xf]
          %v304 = vld [vmem:[%s251 + $0x10] sm:$0xf]
          %v305 = vld [vmem:[%s251 + $0x14] sm:$0xf]
          %v306 = vld [vmem:[%s251 + $0x18] sm:$0xf]
          %v307 = vld [vmem:[%s251 + $0x1c] sm:$0xf]
          %v308 = vld [vmem:[%s251 + $0x20] sm:$0xf]
          %v309 = vld [vmem:[%s251 + $0x24] sm:$0xf]
          %v310 = vld [vmem:[%s251 + $0x28] sm:$0xf]
          %v311 = vld [vmem:[%s251 + $0x2c] sm:$0xf]
          %v312 = vld [vmem:[%s251 + $0x30] sm:$0xf]
          %v313 = vld [vmem:[%s251 + $0x34] sm:$0xf]
          %v314 = vld [vmem:[%s251 + $0x38] sm:$0xf]
          %v315 = vld [vmem:[%s251 + $0x3c] sm:$0xf]
          %v316 = vld [vmem:[%s251 + $0x40] sm:$0xf]
          %v317 = vld [vmem:[%s251 + $0x44] sm:$0xf]
          %v318 = vld [vmem:[%s251 + $0x48] sm:$0xf]
          %v319 = vld [vmem:[%s251 + $0x4c] sm:$0xf]
          %v320 = vld [vmem:[%s251 + $0x50] sm:$0xf]
          %v321 = vld [vmem:[%s251 + $0x54] sm:$0xf]
          %v322 = vld [vmem:[%s251 + $0x58] sm:$0xf]
          %v323 = vld [vmem:[%s251 + $0x5c] sm:$0xf]
          %v324 = vld [vmem:[%s251 + $0x60] sm:$0xf]
          %v325 = vld [vmem:[%s251 + $0x64] sm:$0xf]
          %v326 = vld [vmem:[%s251 + $0x68] sm:$0xf]
          %v327 = vld [vmem:[%s251 + $0x6c] sm:$0xf]
          %v328 = vld [vmem:[%s251 + $0x70] sm:$0xf]
          %v329 = vld [vmem:[%s251 + $0x74] sm:$0xf]
          %v330 = vld [vmem:[%s251 + $0x78] sm:$0xf]
          %v331 = vld [vmem:[%s251 + $0x7c] sm:$0xf]
          %v332 = vld [vmem:[%s251 + $0x80] sm:$0xf]
          %v333 = vld [vmem:[%s251 + $0x84] sm:$0xf]
          %v334 = vld [vmem:[%s251 + $0x88] sm:$0xf]
          %v335 = vld [vmem:[%s251 + $0x8c] sm:$0xf]
          %v336 = vld [vmem:[%s251 + $0x90] sm:$0xf]
          %v337 = vld [vmem:[%s251 + $0x94] sm:$0xf]
          %v338 = vld [vmem:[%s251 + $0x98] sm:$0xf]
          %v339 = vld [vmem:[%s251 + $0x9c] sm:$0xf]
          %v340 = vld [vmem:[%s251 + $0xa0] sm:$0xf]
          %v341 = vld [vmem:[%s251 + $0xa4] sm:$0xf]
          %v342 = vld [vmem:[%s251 + $0xa8] sm:$0xf]
          %v343 = vld [vmem:[%s251 + $0xac] sm:$0xf]
          %v344 = vld [vmem:[%s251 + $0xb0] sm:$0xf]
          %v345 = vld [vmem:[%s251 + $0xb4] sm:$0xf]
          %v346 = vld [vmem:[%s251 + $0xb8] sm:$0xf]
          %v347 = vld [vmem:[%s251 + $0xbc] sm:$0xf]
          %v348 = vld [vmem:[%s255] sm:$0x3]
          %v397 = vunpack.c.l.b16 %v300
          %v398 = vunpack.c.l.b16 %v301
          %v399 = vunpack.c.l.b16 %v302
          %v400 = vunpack.c.l.b16 %v303
          %v401 = vunpack.c.l.b16 %v304
          %v402 = vunpack.c.l.b16 %v305
          %v403 = vunpack.c.l.b16 %v306
          %v404 = vunpack.c.l.b16 %v307
          %v405 = vunpack.c.l.b16 %v308
          %v406 = vunpack.c.l.b16 %v309
          %v407 = vunpack.c.l.b16 %v310
          %v408 = vunpack.c.l.b16 %v311
          %v409 = vunpack.c.l.b16 %v312
          %v410 = vunpack.c.l.b16 %v313
          %v411 = vunpack.c.l.b16 %v314
          %v412 = vunpack.c.l.b16 %v315
          %v413 = vunpack.c.l.b16 %v316
          %v414 = vunpack.c.l.b16 %v317
          %v415 = vunpack.c.l.b16 %v318
          %v416 = vunpack.c.l.b16 %v319
          %v417 = vunpack.c.l.b16 %v320
          %v418 = vunpack.c.l.b16 %v321
          %v419 = vunpack.c.l.b16 %v322
          %v420 = vunpack.c.l.b16 %v323
          %v421 = vunpack.c.l.b16 %v324
          %v422 = vunpack.c.l.b16 %v325
          %v423 = vunpack.c.l.b16 %v326
          %v424 = vunpack.c.l.b16 %v327
          %v425 = vunpack.c.l.b16 %v328
          %v426 = vunpack.c.l.b16 %v329
          %v427 = vunpack.c.l.b16 %v330
          %v428 = vunpack.c.l.b16 %v331
          %v429 = vunpack.c.l.b16 %v332
          %v430 = vunpack.c.l.b16 %v333
          %v431 = vunpack.c.l.b16 %v334
          %v432 = vunpack.c.l.b16 %v335
          %v433 = vunpack.c.l.b16 %v336
          %v434 = vunpack.c.l.b16 %v337
          %v435 = vunpack.c.l.b16 %v338
          %v436 = vunpack.c.l.b16 %v339
          %v437 = vunpack.c.l.b16 %v340
          %v438 = vunpack.c.l.b16 %v341
          %v439 = vunpack.c.l.b16 %v342
          %v440 = vunpack.c.l.b16 %v343
          %v441 = vunpack.c.l.b16 %v344
          %v442 = vunpack.c.l.b16 %v345
          %v443 = vunpack.c.l.b16 %v346
          %v444 = vunpack.c.l.b16 %v347
          %v445 = vpack.c.b16 %v398, %v397
          %v446 = vpack.c.b16 %v400, %v399
          %v447 = vpack.c.b16 %v402, %v401
          %v448 = vpack.c.b16 %v404, %v403
          %v449 = vpack.c.b16 %v406, %v405
          %v450 = vpack.c.b16 %v408, %v407
          %v451 = vpack.c.b16 %v410, %v409
          %v452 = vpack.c.b16 %v412, %v411
          %v453 = vpack.c.b16 %v414, %v413
          %v454 = vpack.c.b16 %v416, %v415
          %v455 = vpack.c.b16 %v418, %v417
          %v456 = vpack.c.b16 %v420, %v419
          %v457 = vpack.c.b16 %v422, %v421
          %v458 = vpack.c.b16 %v424, %v423
          %v459 = vpack.c.b16 %v426, %v425
          %v460 = vpack.c.b16 %v428, %v427
          %v461 = vpack.c.b16 %v430, %v429
          %v462 = vpack.c.b16 %v432, %v431
          %v463 = vpack.c.b16 %v434, %v433
          %v464 = vpack.c.b16 %v436, %v435
          %v465 = vpack.c.b16 %v438, %v437
          %v466 = vpack.c.b16 %v440, %v439
          %v467 = vpack.c.b16 %v442, %v441
          %v468 = vpack.c.b16 %v444, %v443
          %vm469 = vcmask 23552
          %v471 = vsel %vm469, %v445, 0
          %v474 = vsel %vm469, %v446, 0
          %v477 = vsel %vm469, %v447, 0
          %v480 = vsel %vm469, %v448, 0
          %v483 = vsel %vm469, %v449, 0
          %v486 = vsel %vm469, %v450, 0
          %v489 = vsel %vm469, %v451, 0
          %v492 = vsel %vm469, %v452, 0
          %v495 = vsel %vm469, %v453, 0
          %v498 = vsel %vm469, %v454, 0
          %v501 = vsel %vm469, %v455, 0
          %v504 = vsel %vm469, %v456, 0
          %v507 = vsel %vm469, %v457, 0
          %v510 = vsel %vm469, %v458, 0
          %v513 = vsel %vm469, %v459, 0
          %v516 = vsel %vm469, %v460, 0
          %v519 = vsel %vm469, %v461, 0
          %v522 = vsel %vm469, %v462, 0
          %v525 = vsel %vm469, %v463, 0
          %v528 = vsel %vm469, %v464, 0
          %v531 = vsel %vm469, %v465, 0
          %v534 = vsel %vm469, %v466, 0
          %v537 = vsel %vm469, %v467, 0
          %v540 = vsel %vm469, %v468, 0
          %vm542 = vcmask 1040384
          %vm543 = vcmask 1041408
          %v544 = vsel %vm542, 4294967295, 65535
          %v545 = vsel %vm543, %v544, 0
          %v547 = vand.u32 %v348, %v545
          %549 = vmatprep.subr.bf16.mxu0 0
          %550 = vmatpush1.bf16.msra.mxu0 0
          %551 = vmatprep.subr.bf16.mxu0 0
          %552 = vmatpush1.bf16.msra.mxu0 0
          %553 = vmatprep.subr.bf16.mxu0 0
          %554 = vmatpush1.bf16.msra.mxu0 0
          %555 = vmatprep.subr.bf16.mxu0 0
          %556 = vmatpush1.bf16.msra.mxu0 0
          %557 = vmatprep.subr.bf16.mxu0 0
          %558 = vmatpush1.bf16.msra.mxu0 0
          %559 = vmatprep.subr.bf16.mxu0 0
          %560 = vmatpush1.bf16.msra.mxu0 0
          %561 = vmatprep.subr.bf16.mxu0 0
          %562 = vmatpush1.bf16.msra.mxu0 0
          %563 = vmatprep.subr.bf16.mxu0 0
          %564 = vmatpush1.bf16.msra.mxu0 %v547
          %565 = vmatprep.subr.bf16.mxu0 0
          %566 = vmatpush2.bf16.msra.mxu0 0
          %567 = vmatprep.subr.bf16.mxu0 0
          %568 = vmatpush2.bf16.msra.mxu0 0
          %569 = vmatprep.subr.bf16.mxu0 0
          %570 = vmatpush2.bf16.msra.mxu0 0
          %571 = vmatprep.subr.bf16.mxu0 0
          %572 = vmatpush2.bf16.msra.mxu0 0
          %573 = vmatprep.subr.bf16.mxu0 0
          %574 = vmatpush2.bf16.msra.mxu0 0
          %575 = vmatprep.subr.bf16.mxu0 0
          %576 = vmatpush2.bf16.msra.mxu0 0
          %577 = vmatprep.subr.bf16.mxu0 0
          %578 = vmatpush2.bf16.msra.mxu0 0
          %579 = vmatprep.subr.bf16.mxu0 0
          %580 = vmatpush2.bf16.msra.mxu0 0
          %581 = vmatprep.mubr.bf16.mxu0 0
          %582 = vmatmul.mubr.bf16.gmra.mxu0 %v471
          %v583 = vpop.f32.mrf.mxu0
          %v584 = vadd.f32 0.0, %v583
          %v585 = vpop.f32.mrf.mxu0
          %v586 = vpop.f32.mrf.mxu0
          %v587 = vadd.f32 0.0, %v586
          %v588 = vpop.f32.mrf.mxu0
          %589 = vmatprep.mubr.bf16.mxu0 0
          %590 = vmatmul.mubr.bf16.gmra.mxu0 %v474
          %v591 = vpop.f32.mrf.mxu0
          %v592 = vpop.f32.mrf.mxu0
          %v593 = vpop.f32.mrf.mxu0
          %v594 = vadd.f32 0.0, %v593
          %v595 = vpop.f32.mrf.mxu0
          %596 = vmatprep.mubr.bf16.mxu0 0
          %597 = vmatmul.mubr.bf16.gmra.mxu0 %v477
          %v598 = vpop.f32.mrf.mxu0
          %v599 = vadd.f32 0.0, %v598
          %v600 = vpop.f32.mrf.mxu0
          %v601 = vpop.f32.mrf.mxu0
          %v602 = vpop.f32.mrf.mxu0
          %603 = vmatprep.mubr.bf16.mxu0 0
          %604 = vmatmul.mubr.bf16.gmra.mxu0 %v480
          %v605 = vpop.f32.mrf.mxu0
          %v606 = vadd.f32 0.0, %v605
          %v607 = vpop.f32.mrf.mxu0
          %v608 = vpop.f32.mrf.mxu0
          %v609 = vadd.f32 0.0, %v608
          %v610 = vpop.f32.mrf.mxu0
          %611 = vmatprep.mubr.bf16.mxu0 0
          %612 = vmatmul.mubr.bf16.gmra.mxu0 %v483
          %v613 = vpop.f32.mrf.mxu0
          %v614 = vpop.f32.mrf.mxu0
          %v615 = vpop.f32.mrf.mxu0
          %v616 = vadd.f32 0.0, %v615
          %v617 = vpop.f32.mrf.mxu0
          %618 = vmatprep.mubr.bf16.mxu0 0
          %619 = vmatmul.mubr.bf16.gmra.mxu0 %v486
          %v620 = vpop.f32.mrf.mxu0
          %v621 = vadd.f32 0.0, %v620
          %v622 = vpop.f32.mrf.mxu0
          %v623 = vpop.f32.mrf.mxu0
          %v624 = vpop.f32.mrf.mxu0
          %625 = vmatprep.mubr.bf16.mxu0 0
          %626 = vmatmul.mubr.bf16.gmra.mxu0 %v489
          %v627 = vpop.f32.mrf.mxu0
          %v628 = vadd.f32 0.0, %v627
          %v629 = vpop.f32.mrf.mxu0
          %v630 = vpop.f32.mrf.mxu0
          %v631 = vadd.f32 0.0, %v630
          %v632 = vpop.f32.mrf.mxu0
          %633 = vmatprep.mubr.bf16.mxu0 0
          %634 = vmatmul.mubr.bf16.gmra.mxu0 %v492
          %v635 = vpop.f32.mrf.mxu0
          %v636 = vpop.f32.mrf.mxu0
          %v637 = vpop.f32.mrf.mxu0
          %v638 = vadd.f32 0.0, %v637
          %v639 = vpop.f32.mrf.mxu0
          %640 = vmatprep.mubr.bf16.mxu0 0
          %641 = vmatmul.mubr.bf16.gmra.mxu0 %v495
          %v642 = vpop.f32.mrf.mxu0
          %v643 = vadd.f32 0.0, %v642
          %v644 = vpop.f32.mrf.mxu0
          %v645 = vpop.f32.mrf.mxu0
          %v646 = vpop.f32.mrf.mxu0
          %647 = vmatprep.mubr.bf16.mxu0 0
          %648 = vmatmul.mubr.bf16.gmra.mxu0 %v498
          %v649 = vpop.f32.mrf.mxu0
          %v650 = vadd.f32 0.0, %v649
          %v651 = vpop.f32.mrf.mxu0
          %v652 = vpop.f32.mrf.mxu0
          %v653 = vadd.f32 0.0, %v652
          %v654 = vpop.f32.mrf.mxu0
          %655 = vmatprep.mubr.bf16.mxu0 0
          %656 = vmatmul.mubr.bf16.gmra.mxu0 %v501
          %v657 = vpop.f32.mrf.mxu0
          %v658 = vpop.f32.mrf.mxu0
          %v659 = vpop.f32.mrf.mxu0
          %v660 = vadd.f32 0.0, %v659
          %v661 = vpop.f32.mrf.mxu0
          %662 = vmatprep.mubr.bf16.mxu0 0
          %663 = vmatmul.mubr.bf16.gmra.mxu0 %v504
          %v664 = vpop.f32.mrf.mxu0
          %v665 = vadd.f32 0.0, %v664
          %v666 = vpop.f32.mrf.mxu0
          %v667 = vpop.f32.mrf.mxu0
          %v668 = vpop.f32.mrf.mxu0
          %669 = vmatprep.mubr.bf16.mxu0 0
          %670 = vmatmul.mubr.bf16.gmra.mxu0 %v507
          %v671 = vpop.f32.mrf.mxu0
          %v672 = vadd.f32 0.0, %v671
          %v673 = vpop.f32.mrf.mxu0
          %v674 = vpop.f32.mrf.mxu0
          %v675 = vadd.f32 0.0, %v674
          %v676 = vpop.f32.mrf.mxu0
          %677 = vmatprep.mubr.bf16.mxu0 0
          %678 = vmatmul.mubr.bf16.gmra.mxu0 %v510
          %v679 = vpop.f32.mrf.mxu0
          %v680 = vpop.f32.mrf.mxu0
          %v681 = vpop.f32.mrf.mxu0
          %v682 = vadd.f32 0.0, %v681
          %v683 = vpop.f32.mrf.mxu0
          %684 = vmatprep.mubr.bf16.mxu0 0
          %685 = vmatmul.mubr.bf16.gmra.mxu0 %v513
          %v686 = vpop.f32.mrf.mxu0
          %v687 = vadd.f32 0.0, %v686
          %v688 = vpop.f32.mrf.mxu0
          %v689 = vpop.f32.mrf.mxu0
          %v690 = vpop.f32.mrf.mxu0
          %691 = vmatprep.mubr.bf16.mxu0 0
          %692 = vmatmul.mubr.bf16.gmra.mxu0 %v516
          %v693 = vpop.f32.mrf.mxu0
          %v694 = vadd.f32 0.0, %v693
          %v695 = vpop.f32.mrf.mxu0
          %v696 = vpop.f32.mrf.mxu0
          %v697 = vadd.f32 0.0, %v696
          %v698 = vpop.f32.mrf.mxu0
          %699 = vmatprep.mubr.bf16.mxu0 0
          %700 = vmatmul.mubr.bf16.gmra.mxu0 %v519
          %v701 = vpop.f32.mrf.mxu0
          %v702 = vpop.f32.mrf.mxu0
          %v703 = vpop.f32.mrf.mxu0
          %v704 = vadd.f32 0.0, %v703
          %v705 = vpop.f32.mrf.mxu0
          %706 = vmatprep.mubr.bf16.mxu0 0
          %707 = vmatmul.mubr.bf16.gmra.mxu0 %v522
          %v708 = vpop.f32.mrf.mxu0
          %v709 = vadd.f32 0.0, %v708
          %v710 = vpop.f32.mrf.mxu0
          %v711 = vpop.f32.mrf.mxu0
          %v712 = vpop.f32.mrf.mxu0
          %713 = vmatprep.mubr.bf16.mxu0 0
          %714 = vmatmul.mubr.bf16.gmra.mxu0 %v525
          %v715 = vpop.f32.mrf.mxu0
          %v716 = vadd.f32 0.0, %v715
          %v717 = vpop.f32.mrf.mxu0
          %v718 = vpop.f32.mrf.mxu0
          %v719 = vadd.f32 0.0, %v718
          %v720 = vpop.f32.mrf.mxu0
          %721 = vmatprep.mubr.bf16.mxu0 0
          %722 = vmatmul.mubr.bf16.gmra.mxu0 %v528
          %v723 = vpop.f32.mrf.mxu0
          %v724 = vpop.f32.mrf.mxu0
          %v725 = vpop.f32.mrf.mxu0
          %v726 = vadd.f32 0.0, %v725
          %v727 = vpop.f32.mrf.mxu0
          %728 = vmatprep.mubr.bf16.mxu0 0
          %729 = vmatmul.mubr.bf16.gmra.mxu0 %v531
          %v730 = vpop.f32.mrf.mxu0
          %v731 = vadd.f32 0.0, %v730
          %v732 = vpop.f32.mrf.mxu0
          %v733 = vpop.f32.mrf.mxu0
          %v734 = vpop.f32.mrf.mxu0
          %735 = vmatprep.mubr.bf16.mxu0 0
          %736 = vmatmul.mubr.bf16.gmra.mxu0 %v534
          %v737 = vpop.f32.mrf.mxu0
          %v738 = vadd.f32 0.0, %v737
          %v739 = vpop.f32.mrf.mxu0
          %v740 = vpop.f32.mrf.mxu0
          %v741 = vadd.f32 0.0, %v740
          %v742 = vpop.f32.mrf.mxu0
          %743 = vmatprep.mubr.bf16.mxu0 0
          %744 = vmatmul.mubr.bf16.gmra.mxu0 %v537
          %v745 = vpop.f32.mrf.mxu0
          %v746 = vpop.f32.mrf.mxu0
          %v747 = vpop.f32.mrf.mxu0
          %v748 = vadd.f32 0.0, %v747
          %v749 = vpop.f32.mrf.mxu0
          %750 = vmatprep.mubr.bf16.mxu0 0
          %751 = vmatmul.mubr.bf16.gmra.mxu0 %v540
          %v752 = vpop.f32.mrf.mxu0
          %v753 = vadd.f32 0.0, %v752
          %v754 = vpop.f32.mrf.mxu0
          %v755 = vpop.f32.mrf.mxu0
          %v756 = vpop.f32.mrf.mxu0
          %757 = vdwg.mxu0
          %s758 = scalar_lea.vmem %s255, 2
          %v759 = vld [vmem:[%s758] sm:$0x3]
          %v761 = vand.u32 %v759, %v545
          %763 = vmatprep.subr.bf16.mxu0 0
          %764 = vmatpush1.bf16.msra.mxu0 0
          %765 = vmatprep.subr.bf16.mxu0 0
          %766 = vmatpush1.bf16.msra.mxu0 0
          %767 = vmatprep.subr.bf16.mxu0 0
          %768 = vmatpush1.bf16.msra.mxu0 0
          %769 = vmatprep.subr.bf16.mxu0 0
          %770 = vmatpush1.bf16.msra.mxu0 0
          %771 = vmatprep.subr.bf16.mxu0 0
          %772 = vmatpush1.bf16.msra.mxu0 0
          %773 = vmatprep.subr.bf16.mxu0 0
          %774 = vmatpush1.bf16.msra.mxu0 0
          %775 = vmatprep.subr.bf16.mxu0 0
          %776 = vmatpush1.bf16.msra.mxu0 0
          %777 = vmatprep.subr.bf16.mxu0 0
          %778 = vmatpush1.bf16.msra.mxu0 %v761
          %779 = vmatprep.subr.bf16.mxu0 0
          %780 = vmatpush2.bf16.msra.mxu0 0
          %781 = vmatprep.subr.bf16.mxu0 0
          %782 = vmatpush2.bf16.msra.mxu0 0
          %783 = vmatprep.subr.bf16.mxu0 0
          %784 = vmatpush2.bf16.msra.mxu0 0
          %785 = vmatprep.subr.bf16.mxu0 0
          %786 = vmatpush2.bf16.msra.mxu0 0
          %787 = vmatprep.subr.bf16.mxu0 0
          %788 = vmatpush2.bf16.msra.mxu0 0
          %789 = vmatprep.subr.bf16.mxu0 0
          %790 = vmatpush2.bf16.msra.mxu0 0
          %791 = vmatprep.subr.bf16.mxu0 0
          %792 = vmatpush2.bf16.msra.mxu0 0
          %793 = vmatprep.subr.bf16.mxu0 0
          %794 = vmatpush2.bf16.msra.mxu0 0
          %795 = vmatprep.mubr.bf16.mxu0 0
          %796 = vmatmul.mubr.bf16.gmra.mxu0 %v471
          %v797 = vpop.f32.mrf.mxu0
          %v798 = vadd.f32 0.0, %v797
          %v799 = vpop.f32.mrf.mxu0
          %v800 = vpop.f32.mrf.mxu0
          %v801 = vadd.f32 0.0, %v800
          %v802 = vpop.f32.mrf.mxu0
          %803 = vmatprep.mubr.bf16.mxu0 0
          %804 = vmatmul.mubr.bf16.gmra.mxu0 %v474
          %v805 = vpop.f32.mrf.mxu0
          %v806 = vadd.f32 0.0, %v805
          %v807 = vpop.f32.mrf.mxu0
          %v808 = vpop.f32.mrf.mxu0
          %v809 = vadd.f32 0.0, %v808
          %v810 = vpop.f32.mrf.mxu0
          %811 = vmatprep.mubr.bf16.mxu0 0
          %812 = vmatmul.mubr.bf16.gmra.mxu0 %v477
          %v813 = vpop.f32.mrf.mxu0
          %v814 = vadd.f32 0.0, %v813
          %v815 = vpop.f32.mrf.mxu0
          %v816 = vpop.f32.mrf.mxu0
          %v817 = vadd.f32 0.0, %v816
          %v818 = vpop.f32.mrf.mxu0
          %819 = vmatprep.mubr.bf16.mxu0 0
          %820 = vmatmul.mubr.bf16.gmra.mxu0 %v480
          %v821 = vpop.f32.mrf.mxu0
          %v822 = vadd.f32 0.0, %v821
          %v823 = vpop.f32.mrf.mxu0
          %v824 = vpop.f32.mrf.mxu0
          %v825 = vadd.f32 0.0, %v824
          %v826 = vpop.f32.mrf.mxu0
          %827 = vmatprep.mubr.bf16.mxu0 0
          %828 = vmatmul.mubr.bf16.gmra.mxu0 %v483
          %v829 = vpop.f32.mrf.mxu0
          %v830 = vadd.f32 0.0, %v829
          %v831 = vpop.f32.mrf.mxu0
          %v832 = vpop.f32.mrf.mxu0
          %v833 = vadd.f32 0.0, %v832
          %v834 = vpop.f32.mrf.mxu0
          %835 = vmatprep.mubr.bf16.mxu0 0
          %836 = vmatmul.mubr.bf16.gmra.mxu0 %v486
          %v837 = vpop.f32.mrf.mxu0
          %v838 = vadd.f32 0.0, %v837
          %v839 = vpop.f32.mrf.mxu0
          %v840 = vpop.f32.mrf.mxu0
          %v841 = vadd.f32 0.0, %v840
          %v842 = vpop.f32.mrf.mxu0
          %843 = vmatprep.mubr.bf16.mxu0 0
          %844 = vmatmul.mubr.bf16.gmra.mxu0 %v489
          %v845 = vpop.f32.mrf.mxu0
          %v846 = vadd.f32 0.0, %v845
          %v847 = vpop.f32.mrf.mxu0
          %v848 = vpop.f32.mrf.mxu0
          %v849 = vadd.f32 0.0, %v848
          %v850 = vpop.f32.mrf.mxu0
          %851 = vmatprep.mubr.bf16.mxu0 0
          %852 = vmatmul.mubr.bf16.gmra.mxu0 %v492
          %v853 = vpop.f32.mrf.mxu0
          %v854 = vadd.f32 0.0, %v853
          %v855 = vpop.f32.mrf.mxu0
          %v856 = vpop.f32.mrf.mxu0
          %v857 = vadd.f32 0.0, %v856
          %v858 = vpop.f32.mrf.mxu0
          %859 = vmatprep.mubr.bf16.mxu0 0
          %860 = vmatmul.mubr.bf16.gmra.mxu0 %v495
          %v861 = vpop.f32.mrf.mxu0
          %v862 = vadd.f32 0.0, %v861
          %v863 = vpop.f32.mrf.mxu0
          %v864 = vpop.f32.mrf.mxu0
          %v865 = vadd.f32 0.0, %v864
          %v866 = vpop.f32.mrf.mxu0
          %867 = vmatprep.mubr.bf16.mxu0 0
          %868 = vmatmul.mubr.bf16.gmra.mxu0 %v498
          %v869 = vpop.f32.mrf.mxu0
          %v870 = vadd.f32 0.0, %v869
          %v871 = vpop.f32.mrf.mxu0
          %v872 = vpop.f32.mrf.mxu0
          %v873 = vadd.f32 0.0, %v872
          %v874 = vpop.f32.mrf.mxu0
          %875 = vmatprep.mubr.bf16.mxu0 0
          %876 = vmatmul.mubr.bf16.gmra.mxu0 %v501
          %v877 = vpop.f32.mrf.mxu0
          %v878 = vadd.f32 0.0, %v877
          %v879 = vpop.f32.mrf.mxu0
          %v880 = vpop.f32.mrf.mxu0
          %v881 = vadd.f32 0.0, %v880
          %v882 = vpop.f32.mrf.mxu0
          %883 = vmatprep.mubr.bf16.mxu0 0
          %884 = vmatmul.mubr.bf16.gmra.mxu0 %v504
          %v885 = vpop.f32.mrf.mxu0
          %v886 = vadd.f32 0.0, %v885
          %v887 = vpop.f32.mrf.mxu0
          %v888 = vpop.f32.mrf.mxu0
          %v889 = vadd.f32 0.0, %v888
          %v890 = vpop.f32.mrf.mxu0
          %891 = vmatprep.mubr.bf16.mxu0 0
          %892 = vmatmul.mubr.bf16.gmra.mxu0 %v507
          %v893 = vpop.f32.mrf.mxu0
          %v894 = vadd.f32 0.0, %v893
          %v895 = vpop.f32.mrf.mxu0
          %v896 = vpop.f32.mrf.mxu0
          %v897 = vadd.f32 0.0, %v896
          %v898 = vpop.f32.mrf.mxu0
          %899 = vmatprep.mubr.bf16.mxu0 0
          %900 = vmatmul.mubr.bf16.gmra.mxu0 %v510
          %v901 = vpop.f32.mrf.mxu0
          %v902 = vadd.f32 0.0, %v901
          %v903 = vpop.f32.mrf.mxu0
          %v904 = vpop.f32.mrf.mxu0
          %v905 = vadd.f32 0.0, %v904
          %v906 = vpop.f32.mrf.mxu0
          %907 = vmatprep.mubr.bf16.mxu0 0
          %908 = vmatmul.mubr.bf16.gmra.mxu0 %v513
          %v909 = vpop.f32.mrf.mxu0
          %v910 = vadd.f32 0.0, %v909
          %v911 = vpop.f32.mrf.mxu0
          %v912 = vpop.f32.mrf.mxu0
          %v913 = vadd.f32 0.0, %v912
          %v914 = vpop.f32.mrf.mxu0
          %915 = vmatprep.mubr.bf16.mxu0 0
          %916 = vmatmul.mubr.bf16.gmra.mxu0 %v516
          %v917 = vpop.f32.mrf.mxu0
          %v918 = vadd.f32 0.0, %v917
          %v919 = vpop.f32.mrf.mxu0
          %v920 = vpop.f32.mrf.mxu0
          %v921 = vadd.f32 0.0, %v920
          %v922 = vpop.f32.mrf.mxu0
          %923 = vmatprep.mubr.bf16.mxu0 0
          %924 = vmatmul.mubr.bf16.gmra.mxu0 %v519
          %v925 = vpop.f32.mrf.mxu0
          %v926 = vadd.f32 0.0, %v925
          %v927 = vpop.f32.mrf.mxu0
          %v928 = vpop.f32.mrf.mxu0
          %v929 = vadd.f32 0.0, %v928
          %v930 = vpop.f32.mrf.mxu0
          %931 = vmatprep.mubr.bf16.mxu0 0
          %932 = vmatmul.mubr.bf16.gmra.mxu0 %v522
          %v933 = vpop.f32.mrf.mxu0
          %v934 = vadd.f32 0.0, %v933
          %v935 = vpop.f32.mrf.mxu0
          %v936 = vpop.f32.mrf.mxu0
          %v937 = vadd.f32 0.0, %v936
          %v938 = vpop.f32.mrf.mxu0
          %939 = vmatprep.mubr.bf16.mxu0 0
          %940 = vmatmul.mubr.bf16.gmra.mxu0 %v525
          %v941 = vpop.f32.mrf.mxu0
          %v942 = vadd.f32 0.0, %v941
          %v943 = vpop.f32.mrf.mxu0
          %v944 = vpop.f32.mrf.mxu0
          %v945 = vadd.f32 0.0, %v944
          %v946 = vpop.f32.mrf.mxu0
          %947 = vmatprep.mubr.bf16.mxu0 0
          %948 = vmatmul.mubr.bf16.gmra.mxu0 %v528
          %v949 = vpop.f32.mrf.mxu0
          %v950 = vadd.f32 0.0, %v949
          %v951 = vpop.f32.mrf.mxu0
          %v952 = vpop.f32.mrf.mxu0
          %v953 = vadd.f32 0.0, %v952
          %v954 = vpop.f32.mrf.mxu0
          %955 = vmatprep.mubr.bf16.mxu0 0
          %956 = vmatmul.mubr.bf16.gmra.mxu0 %v531
          %v957 = vpop.f32.mrf.mxu0
          %v958 = vadd.f32 0.0, %v957
          %v959 = vpop.f32.mrf.mxu0
          %v960 = vpop.f32.mrf.mxu0
          %v961 = vadd.f32 0.0, %v960
          %v962 = vpop.f32.mrf.mxu0
          %963 = vmatprep.mubr.bf16.mxu0 0
          %964 = vmatmul.mubr.bf16.gmra.mxu0 %v534
          %v965 = vpop.f32.mrf.mxu0
          %v966 = vadd.f32 0.0, %v965
          %v967 = vpop.f32.mrf.mxu0
          %v968 = vpop.f32.mrf.mxu0
          %v969 = vadd.f32 0.0, %v968
          %v970 = vpop.f32.mrf.mxu0
          %971 = vmatprep.mubr.bf16.mxu0 0
          %972 = vmatmul.mubr.bf16.gmra.mxu0 %v537
          %v973 = vpop.f32.mrf.mxu0
          %v974 = vadd.f32 0.0, %v973
          %v975 = vpop.f32.mrf.mxu0
          %v976 = vpop.f32.mrf.mxu0
          %v977 = vadd.f32 0.0, %v976
          %v978 = vpop.f32.mrf.mxu0
          %979 = vmatprep.mubr.bf16.mxu0 0
          %980 = vmatmul.mubr.bf16.gmra.mxu0 %v540
          %v981 = vpop.f32.mrf.mxu0
          %v982 = vadd.f32 0.0, %v981
          %v983 = vpop.f32.mrf.mxu0
          %v984 = vpop.f32.mrf.mxu0
          %v985 = vadd.f32 0.0, %v984
          %v986 = vpop.f32.mrf.mxu0
          %987 = vdwg.mxu0
          %vm1036 = vcmask 1046528
          %v1037 = vrot.slane %v798, 1
          %v1038 = vrot.slane %v801, 1
          %v1039 = vsel %vm1036, %v1037, %v1038
          %v1040 = vrot.slane %v806, 1
          %v1041 = vsel %vm1036, %v1038, %v1040
          %v1042 = vrot.slane %v809, 1
          %v1043 = vrot.slane %v814, 1
          %v1044 = vsel %vm1036, %v1042, %v1043
          %v1045 = vrot.slane %v817, 1
          %v1046 = vsel %vm1036, %v1043, %v1045
          %v1047 = vrot.slane %v822, 1
          %v1048 = vrot.slane %v825, 1
          %v1049 = vsel %vm1036, %v1047, %v1048
          %v1050 = vrot.slane %v830, 1
          %v1051 = vsel %vm1036, %v1048, %v1050
          %v1052 = vrot.slane %v833, 1
          %v1053 = vrot.slane %v838, 1
          %v1054 = vsel %vm1036, %v1052, %v1053
          %v1055 = vrot.slane %v841, 1
          %v1056 = vsel %vm1036, %v1053, %v1055
          %v1057 = vrot.slane %v846, 1
          %v1058 = vrot.slane %v849, 1
          %v1059 = vsel %vm1036, %v1057, %v1058
          %v1060 = vrot.slane %v854, 1
          %v1061 = vsel %vm1036, %v1058, %v1060
          %v1062 = vrot.slane %v857, 1
          %v1063 = vrot.slane %v862, 1
          %v1064 = vsel %vm1036, %v1062, %v1063
          %v1065 = vrot.slane %v865, 1
          %v1066 = vsel %vm1036, %v1063, %v1065
          %v1067 = vrot.slane %v870, 1
          %v1068 = vrot.slane %v873, 1
          %v1069 = vsel %vm1036, %v1067, %v1068
          %v1070 = vrot.slane %v878, 1
          %v1071 = vsel %vm1036, %v1068, %v1070
          %v1072 = vrot.slane %v881, 1
          %v1073 = vrot.slane %v886, 1
          %v1074 = vsel %vm1036, %v1072, %v1073
          %v1075 = vrot.slane %v889, 1
          %v1076 = vsel %vm1036, %v1073, %v1075
          %v1077 = vrot.slane %v894, 1
          %v1078 = vrot.slane %v897, 1
          %v1079 = vsel %vm1036, %v1077, %v1078
          %v1080 = vrot.slane %v902, 1
          %v1081 = vsel %vm1036, %v1078, %v1080
          %v1082 = vrot.slane %v905, 1
          %v1083 = vrot.slane %v910, 1
          %v1084 = vsel %vm1036, %v1082, %v1083
          %v1085 = vrot.slane %v913, 1
          %v1086 = vsel %vm1036, %v1083, %v1085
          %v1087 = vrot.slane %v918, 1
          %v1088 = vrot.slane %v921, 1
          %v1089 = vsel %vm1036, %v1087, %v1088
          %v1090 = vrot.slane %v926, 1
          %v1091 = vsel %vm1036, %v1088, %v1090
          %v1092 = vrot.slane %v929, 1
          %v1093 = vrot.slane %v934, 1
          %v1094 = vsel %vm1036, %v1092, %v1093
          %v1095 = vrot.slane %v937, 1
          %v1096 = vsel %vm1036, %v1093, %v1095
          %v1097 = vrot.slane %v942, 1
          %v1098 = vrot.slane %v945, 1
          %v1099 = vsel %vm1036, %v1097, %v1098
          %v1100 = vrot.slane %v950, 1
          %v1101 = vsel %vm1036, %v1098, %v1100
          %v1102 = vrot.slane %v953, 1
          %v1103 = vrot.slane %v958, 1
          %v1104 = vsel %vm1036, %v1102, %v1103
          %v1105 = vrot.slane %v961, 1
          %v1106 = vsel %vm1036, %v1103, %v1105
          %v1107 = vrot.slane %v966, 1
          %v1108 = vrot.slane %v969, 1
          %v1109 = vsel %vm1036, %v1107, %v1108
          %v1110 = vrot.slane %v974, 1
          %v1111 = vsel %vm1036, %v1108, %v1110
          %v1112 = vrot.slane %v977, 1
          %v1113 = vrot.slane %v982, 1
          %v1114 = vsel %vm1036, %v1112, %v1113
          %v1115 = vrot.slane %v985, 1
          %v1116 = vsel %vm1036, %v1113, %v1115
          %v1149 = vadd.f32 %v584, %v1039
          %v1150 = vadd.f32 %v587, %v1041
          %v1151 = vadd.f32 %v594, %v1044
          %v1152 = vadd.f32 %v599, %v1046
          %v1153 = vadd.f32 %v606, %v1049
          %v1154 = vadd.f32 %v609, %v1051
          %v1155 = vadd.f32 %v616, %v1054
          %v1156 = vadd.f32 %v621, %v1056
          %v1157 = vadd.f32 %v628, %v1059
          %v1158 = vadd.f32 %v631, %v1061
          %v1159 = vadd.f32 %v638, %v1064
          %v1160 = vadd.f32 %v643, %v1066
          %v1161 = vadd.f32 %v650, %v1069
          %v1162 = vadd.f32 %v653, %v1071
          %v1163 = vadd.f32 %v660, %v1074
          %v1164 = vadd.f32 %v665, %v1076
          %v1165 = vadd.f32 %v672, %v1079
          %v1166 = vadd.f32 %v675, %v1081
          %v1167 = vadd.f32 %v682, %v1084
          %v1168 = vadd.f32 %v687, %v1086
          %v1169 = vadd.f32 %v694, %v1089
          %v1170 = vadd.f32 %v697, %v1091
          %v1171 = vadd.f32 %v704, %v1094
          %v1172 = vadd.f32 %v709, %v1096
          %v1173 = vadd.f32 %v716, %v1099
          %v1174 = vadd.f32 %v719, %v1101
          %v1175 = vadd.f32 %v726, %v1104
          %v1176 = vadd.f32 %v731, %v1106
          %v1177 = vadd.f32 %v738, %v1109
          %v1178 = vadd.f32 %v741, %v1111
          %v1179 = vadd.f32 %v748, %v1114
          %v1180 = vadd.f32 %v753, %v1116
          %s1181 = scalar_lea.vmem %s255, 4
          %v1182 = vld [vmem:[%s1181] sm:$0x3]
          %v1184 = vand.u32 %v1182, %v545
          %1186 = vmatprep.subr.bf16.mxu0 0
          %1187 = vmatpush1.bf16.msra.mxu0 0
          %1188 = vmatprep.subr.bf16.mxu0 0
          %1189 = vmatpush1.bf16.msra.mxu0 0
          %1190 = vmatprep.subr.bf16.mxu0 0
          %1191 = vmatpush1.bf16.msra.mxu0 0
          %1192 = vmatprep.subr.bf16.mxu0 0
          %1193 = vmatpush1.bf16.msra.mxu0 0
          %1194 = vmatprep.subr.bf16.mxu0 0
          %1195 = vmatpush1.bf16.msra.mxu0 0
          %1196 = vmatprep.subr.bf16.mxu0 0
          %1197 = vmatpush1.bf16.msra.mxu0 0
          %1198 = vmatprep.subr.bf16.mxu0 0
          %1199 = vmatpush1.bf16.msra.mxu0 0
          %1200 = vmatprep.subr.bf16.mxu0 0
          %1201 = vmatpush1.bf16.msra.mxu0 %v1184
          %1202 = vmatprep.subr.bf16.mxu0 0
          %1203 = vmatpush2.bf16.msra.mxu0 0
          %1204 = vmatprep.subr.bf16.mxu0 0
          %1205 = vmatpush2.bf16.msra.mxu0 0
          %1206 = vmatprep.subr.bf16.mxu0 0
          %1207 = vmatpush2.bf16.msra.mxu0 0
          %1208 = vmatprep.subr.bf16.mxu0 0
          %1209 = vmatpush2.bf16.msra.mxu0 0
          %1210 = vmatprep.subr.bf16.mxu0 0
          %1211 = vmatpush2.bf16.msra.mxu0 0
          %1212 = vmatprep.subr.bf16.mxu0 0
          %1213 = vmatpush2.bf16.msra.mxu0 0
          %1214 = vmatprep.subr.bf16.mxu0 0
          %1215 = vmatpush2.bf16.msra.mxu0 0
          %1216 = vmatprep.subr.bf16.mxu0 0
          %1217 = vmatpush2.bf16.msra.mxu0 0
          %1218 = vmatprep.mubr.bf16.mxu0 0
          %1219 = vmatmul.mubr.bf16.gmra.mxu0 %v471
          %v1220 = vpop.f32.mrf.mxu0
          %v1221 = vadd.f32 0.0, %v1220
          %v1222 = vpop.f32.mrf.mxu0
          %v1223 = vpop.f32.mrf.mxu0
          %v1224 = vadd.f32 0.0, %v1223
          %v1225 = vpop.f32.mrf.mxu0
          %1226 = vmatprep.mubr.bf16.mxu0 0
          %1227 = vmatmul.mubr.bf16.gmra.mxu0 %v474
          %v1228 = vpop.f32.mrf.mxu0
          %v1229 = vadd.f32 0.0, %v1228
          %v1230 = vpop.f32.mrf.mxu0
          %v1231 = vpop.f32.mrf.mxu0
          %v1232 = vadd.f32 0.0, %v1231
          %v1233 = vpop.f32.mrf.mxu0
          %1234 = vmatprep.mubr.bf16.mxu0 0
          %1235 = vmatmul.mubr.bf16.gmra.mxu0 %v477
          %v1236 = vpop.f32.mrf.mxu0
          %v1237 = vadd.f32 0.0, %v1236
          %v1238 = vpop.f32.mrf.mxu0
          %v1239 = vpop.f32.mrf.mxu0
          %v1240 = vadd.f32 0.0, %v1239
          %v1241 = vpop.f32.mrf.mxu0
          %1242 = vmatprep.mubr.bf16.mxu0 0
          %1243 = vmatmul.mubr.bf16.gmra.mxu0 %v480
          %v1244 = vpop.f32.mrf.mxu0
          %v1245 = vadd.f32 0.0, %v1244
          %v1246 = vpop.f32.mrf.mxu0
          %v1247 = vpop.f32.mrf.mxu0
          %v1248 = vadd.f32 0.0, %v1247
          %v1249 = vpop.f32.mrf.mxu0
          %1250 = vmatprep.mubr.bf16.mxu0 0
          %1251 = vmatmul.mubr.bf16.gmra.mxu0 %v483
          %v1252 = vpop.f32.mrf.mxu0
          %v1253 = vadd.f32 0.0, %v1252
          %v1254 = vpop.f32.mrf.mxu0
          %v1255 = vpop.f32.mrf.mxu0
          %v1256 = vadd.f32 0.0, %v1255
          %v1257 = vpop.f32.mrf.mxu0
          %1258 = vmatprep.mubr.bf16.mxu0 0
          %1259 = vmatmul.mubr.bf16.gmra.mxu0 %v486
          %v1260 = vpop.f32.mrf.mxu0
          %v1261 = vadd.f32 0.0, %v1260
          %v1262 = vpop.f32.mrf.mxu0
          %v1263 = vpop.f32.mrf.mxu0
          %v1264 = vadd.f32 0.0, %v1263
          %v1265 = vpop.f32.mrf.mxu0
          %1266 = vmatprep.mubr.bf16.mxu0 0
          %1267 = vmatmul.mubr.bf16.gmra.mxu0 %v489
          %v1268 = vpop.f32.mrf.mxu0
          %v1269 = vadd.f32 0.0, %v1268
          %v1270 = vpop.f32.mrf.mxu0
          %v1271 = vpop.f32.mrf.mxu0
          %v1272 = vadd.f32 0.0, %v1271
          %v1273 = vpop.f32.mrf.mxu0
          %1274 = vmatprep.mubr.bf16.mxu0 0
          %1275 = vmatmul.mubr.bf16.gmra.mxu0 %v492
          %v1276 = vpop.f32.mrf.mxu0
          %v1277 = vadd.f32 0.0, %v1276
          %v1278 = vpop.f32.mrf.mxu0
          %v1279 = vpop.f32.mrf.mxu0
          %v1280 = vadd.f32 0.0, %v1279
          %v1281 = vpop.f32.mrf.mxu0
          %1282 = vmatprep.mubr.bf16.mxu0 0
          %1283 = vmatmul.mubr.bf16.gmra.mxu0 %v495
          %v1284 = vpop.f32.mrf.mxu0
          %v1285 = vadd.f32 0.0, %v1284
          %v1286 = vpop.f32.mrf.mxu0
          %v1287 = vpop.f32.mrf.mxu0
          %v1288 = vadd.f32 0.0, %v1287
          %v1289 = vpop.f32.mrf.mxu0
          %1290 = vmatprep.mubr.bf16.mxu0 0
          %1291 = vmatmul.mubr.bf16.gmra.mxu0 %v498
          %v1292 = vpop.f32.mrf.mxu0
          %v1293 = vadd.f32 0.0, %v1292
          %v1294 = vpop.f32.mrf.mxu0
          %v1295 = vpop.f32.mrf.mxu0
          %v1296 = vadd.f32 0.0, %v1295
          %v1297 = vpop.f32.mrf.mxu0
          %1298 = vmatprep.mubr.bf16.mxu0 0
          %1299 = vmatmul.mubr.bf16.gmra.mxu0 %v501
          %v1300 = vpop.f32.mrf.mxu0
          %v1301 = vadd.f32 0.0, %v1300
          %v1302 = vpop.f32.mrf.mxu0
          %v1303 = vpop.f32.mrf.mxu0
          %v1304 = vadd.f32 0.0, %v1303
          %v1305 = vpop.f32.mrf.mxu0
          %1306 = vmatprep.mubr.bf16.mxu0 0
          %1307 = vmatmul.mubr.bf16.gmra.mxu0 %v504
          %v1308 = vpop.f32.mrf.mxu0
          %v1309 = vadd.f32 0.0, %v1308
          %v1310 = vpop.f32.mrf.mxu0
          %v1311 = vpop.f32.mrf.mxu0
          %v1312 = vadd.f32 0.0, %v1311
          %v1313 = vpop.f32.mrf.mxu0
          %1314 = vmatprep.mubr.bf16.mxu0 0
          %1315 = vmatmul.mubr.bf16.gmra.mxu0 %v507
          %v1316 = vpop.f32.mrf.mxu0
          %v1317 = vadd.f32 0.0, %v1316
          %v1318 = vpop.f32.mrf.mxu0
          %v1319 = vpop.f32.mrf.mxu0
          %v1320 = vadd.f32 0.0, %v1319
          %v1321 = vpop.f32.mrf.mxu0
          %1322 = vmatprep.mubr.bf16.mxu0 0
          %1323 = vmatmul.mubr.bf16.gmra.mxu0 %v510
          %v1324 = vpop.f32.mrf.mxu0
          %v1325 = vadd.f32 0.0, %v1324
          %v1326 = vpop.f32.mrf.mxu0
          %v1327 = vpop.f32.mrf.mxu0
          %v1328 = vadd.f32 0.0, %v1327
          %v1329 = vpop.f32.mrf.mxu0
          %1330 = vmatprep.mubr.bf16.mxu0 0
          %1331 = vmatmul.mubr.bf16.gmra.mxu0 %v513
          %v1332 = vpop.f32.mrf.mxu0
          %v1333 = vadd.f32 0.0, %v1332
          %v1334 = vpop.f32.mrf.mxu0
          %v1335 = vpop.f32.mrf.mxu0
          %v1336 = vadd.f32 0.0, %v1335
          %v1337 = vpop.f32.mrf.mxu0
          %1338 = vmatprep.mubr.bf16.mxu0 0
          %1339 = vmatmul.mubr.bf16.gmra.mxu0 %v516
          %v1340 = vpop.f32.mrf.mxu0
          %v1341 = vadd.f32 0.0, %v1340
          %v1342 = vpop.f32.mrf.mxu0
          %v1343 = vpop.f32.mrf.mxu0
          %v1344 = vadd.f32 0.0, %v1343
          %v1345 = vpop.f32.mrf.mxu0
          %1346 = vmatprep.mubr.bf16.mxu0 0
          %1347 = vmatmul.mubr.bf16.gmra.mxu0 %v519
          %v1348 = vpop.f32.mrf.mxu0
          %v1349 = vadd.f32 0.0, %v1348
          %v1350 = vpop.f32.mrf.mxu0
          %v1351 = vpop.f32.mrf.mxu0
          %v1352 = vadd.f32 0.0, %v1351
          %v1353 = vpop.f32.mrf.mxu0
          %1354 = vmatprep.mubr.bf16.mxu0 0
          %1355 = vmatmul.mubr.bf16.gmra.mxu0 %v522
          %v1356 = vpop.f32.mrf.mxu0
          %v1357 = vadd.f32 0.0, %v1356
          %v1358 = vpop.f32.mrf.mxu0
          %v1359 = vpop.f32.mrf.mxu0
          %v1360 = vadd.f32 0.0, %v1359
          %v1361 = vpop.f32.mrf.mxu0
          %1362 = vmatprep.mubr.bf16.mxu0 0
          %1363 = vmatmul.mubr.bf16.gmra.mxu0 %v525
          %v1364 = vpop.f32.mrf.mxu0
          %v1365 = vadd.f32 0.0, %v1364
          %v1366 = vpop.f32.mrf.mxu0
          %v1367 = vpop.f32.mrf.mxu0
          %v1368 = vadd.f32 0.0, %v1367
          %v1369 = vpop.f32.mrf.mxu0
          %1370 = vmatprep.mubr.bf16.mxu0 0
          %1371 = vmatmul.mubr.bf16.gmra.mxu0 %v528
          %v1372 = vpop.f32.mrf.mxu0
          %v1373 = vadd.f32 0.0, %v1372
          %v1374 = vpop.f32.mrf.mxu0
          %v1375 = vpop.f32.mrf.mxu0
          %v1376 = vadd.f32 0.0, %v1375
          %v1377 = vpop.f32.mrf.mxu0
          %1378 = vmatprep.mubr.bf16.mxu0 0
          %1379 = vmatmul.mubr.bf16.gmra.mxu0 %v531
          %v1380 = vpop.f32.mrf.mxu0
          %v1381 = vadd.f32 0.0, %v1380
          %v1382 = vpop.f32.mrf.mxu0
          %v1383 = vpop.f32.mrf.mxu0
          %v1384 = vadd.f32 0.0, %v1383
          %v1385 = vpop.f32.mrf.mxu0
          %1386 = vmatprep.mubr.bf16.mxu0 0
          %1387 = vmatmul.mubr.bf16.gmra.mxu0 %v534
          %v1388 = vpop.f32.mrf.mxu0
          %v1389 = vadd.f32 0.0, %v1388
          %v1390 = vpop.f32.mrf.mxu0
          %v1391 = vpop.f32.mrf.mxu0
          %v1392 = vadd.f32 0.0, %v1391
          %v1393 = vpop.f32.mrf.mxu0
          %1394 = vmatprep.mubr.bf16.mxu0 0
          %1395 = vmatmul.mubr.bf16.gmra.mxu0 %v537
          %v1396 = vpop.f32.mrf.mxu0
          %v1397 = vadd.f32 0.0, %v1396
          %v1398 = vpop.f32.mrf.mxu0
          %v1399 = vpop.f32.mrf.mxu0
          %v1400 = vadd.f32 0.0, %v1399
          %v1401 = vpop.f32.mrf.mxu0
          %1402 = vmatprep.mubr.bf16.mxu0 0
          %1403 = vmatmul.mubr.bf16.gmra.mxu0 %v540
          %v1404 = vpop.f32.mrf.mxu0
          %v1405 = vadd.f32 0.0, %v1404
          %v1406 = vpop.f32.mrf.mxu0
          %v1407 = vpop.f32.mrf.mxu0
          %v1408 = vadd.f32 0.0, %v1407
          %v1409 = vpop.f32.mrf.mxu0
          %1410 = vdwg.mxu0
          %vm1459 = vcmask 1045504
          %v1460 = vrot.slane %v1221, 2
          %v1461 = vrot.slane %v1224, 2
          %v1462 = vsel %vm1459, %v1460, %v1461
          %v1463 = vrot.slane %v1229, 2
          %v1464 = vsel %vm1459, %v1461, %v1463
          %v1465 = vrot.slane %v1232, 2
          %v1466 = vrot.slane %v1237, 2
          %v1467 = vsel %vm1459, %v1465, %v1466
          %v1468 = vrot.slane %v1240, 2
          %v1469 = vsel %vm1459, %v1466, %v1468
          %v1470 = vrot.slane %v1245, 2
          %v1471 = vrot.slane %v1248, 2
          %v1472 = vsel %vm1459, %v1470, %v1471
          %v1473 = vrot.slane %v1253, 2
          %v1474 = vsel %vm1459, %v1471, %v1473
          %v1475 = vrot.slane %v1256, 2
          %v1476 = vrot.slane %v1261, 2
          %v1477 = vsel %vm1459, %v1475, %v1476
          %v1478 = vrot.slane %v1264, 2
          %v1479 = vsel %vm1459, %v1476, %v1478
          %v1480 = vrot.slane %v1269, 2
          %v1481 = vrot.slane %v1272, 2
          %v1482 = vsel %vm1459, %v1480, %v1481
          %v1483 = vrot.slane %v1277, 2
          %v1484 = vsel %vm1459, %v1481, %v1483
          %v1485 = vrot.slane %v1280, 2
          %v1486 = vrot.slane %v1285, 2
          %v1487 = vsel %vm1459, %v1485, %v1486
          %v1488 = vrot.slane %v1288, 2
          %v1489 = vsel %vm1459, %v1486, %v1488
          %v1490 = vrot.slane %v1293, 2
          %v1491 = vrot.slane %v1296, 2
          %v1492 = vsel %vm1459, %v1490, %v1491
          %v1493 = vrot.slane %v1301, 2
          %v1494 = vsel %vm1459, %v1491, %v1493
          %v1495 = vrot.slane %v1304, 2
          %v1496 = vrot.slane %v1309, 2
          %v1497 = vsel %vm1459, %v1495, %v1496
          %v1498 = vrot.slane %v1312, 2
          %v1499 = vsel %vm1459, %v1496, %v1498
          %v1500 = vrot.slane %v1317, 2
          %v1501 = vrot.slane %v1320, 2
          %v1502 = vsel %vm1459, %v1500, %v1501
          %v1503 = vrot.slane %v1325, 2
          %v1504 = vsel %vm1459, %v1501, %v1503
          %v1505 = vrot.slane %v1328, 2
          %v1506 = vrot.slane %v1333, 2
          %v1507 = vsel %vm1459, %v1505, %v1506
          %v1508 = vrot.slane %v1336, 2
          %v1509 = vsel %vm1459, %v1506, %v1508
          %v1510 = vrot.slane %v1341, 2
          %v1511 = vrot.slane %v1344, 2
          %v1512 = vsel %vm1459, %v1510, %v1511
          %v1513 = vrot.slane %v1349, 2
          %v1514 = vsel %vm1459, %v1511, %v1513
          %v1515 = vrot.slane %v1352, 2
          %v1516 = vrot.slane %v1357, 2
          %v1517 = vsel %vm1459, %v1515, %v1516
          %v1518 = vrot.slane %v1360, 2
          %v1519 = vsel %vm1459, %v1516, %v1518
          %v1520 = vrot.slane %v1365, 2
          %v1521 = vrot.slane %v1368, 2
          %v1522 = vsel %vm1459, %v1520, %v1521
          %v1523 = vrot.slane %v1373, 2
          %v1524 = vsel %vm1459, %v1521, %v1523
          %v1525 = vrot.slane %v1376, 2
          %v1526 = vrot.slane %v1381, 2
          %v1527 = vsel %vm1459, %v1525, %v1526
          %v1528 = vrot.slane %v1384, 2
          %v1529 = vsel %vm1459, %v1526, %v1528
          %v1530 = vrot.slane %v1389, 2
          %v1531 = vrot.slane %v1392, 2
          %v1532 = vsel %vm1459, %v1530, %v1531
          %v1533 = vrot.slane %v1397, 2
          %v1534 = vsel %vm1459, %v1531, %v1533
          %v1535 = vrot.slane %v1400, 2
          %v1536 = vrot.slane %v1405, 2
          %v1537 = vsel %vm1459, %v1535, %v1536
          %v1538 = vrot.slane %v1408, 2
          %v1539 = vsel %vm1459, %v1536, %v1538
          %v1572 = vadd.f32 %v1149, %v1462
          %v1573 = vadd.f32 %v1150, %v1464
          %v1574 = vadd.f32 %v1151, %v1467
          %v1575 = vadd.f32 %v1152, %v1469
          %v1576 = vadd.f32 %v1153, %v1472
          %v1577 = vadd.f32 %v1154, %v1474
          %v1578 = vadd.f32 %v1155, %v1477
          %v1579 = vadd.f32 %v1156, %v1479
          %v1580 = vadd.f32 %v1157, %v1482
          %v1581 = vadd.f32 %v1158, %v1484
          %v1582 = vadd.f32 %v1159, %v1487
          %v1583 = vadd.f32 %v1160, %v1489
          %v1584 = vadd.f32 %v1161, %v1492
          %v1585 = vadd.f32 %v1162, %v1494
          %v1586 = vadd.f32 %v1163, %v1497
          %v1587 = vadd.f32 %v1164, %v1499
          %v1588 = vadd.f32 %v1165, %v1502
          %v1589 = vadd.f32 %v1166, %v1504
          %v1590 = vadd.f32 %v1167, %v1507
          %v1591 = vadd.f32 %v1168, %v1509
          %v1592 = vadd.f32 %v1169, %v1512
          %v1593 = vadd.f32 %v1170, %v1514
          %v1594 = vadd.f32 %v1171, %v1517
          %v1595 = vadd.f32 %v1172, %v1519
          %v1596 = vadd.f32 %v1173, %v1522
          %v1597 = vadd.f32 %v1174, %v1524
          %v1598 = vadd.f32 %v1175, %v1527
          %v1599 = vadd.f32 %v1176, %v1529
          %v1600 = vadd.f32 %v1177, %v1532
          %v1601 = vadd.f32 %v1178, %v1534
          %v1602 = vadd.f32 %v1179, %v1537
          %v1603 = vadd.f32 %v1180, %v1539
          %v1604 = vld [vmem:[#allocation2] sm:$0xff]
          %v1605 = vld [vmem:[#allocation2 + $0x8] sm:$0xff]
          %v1606 = vld [vmem:[#allocation2 + $0x10] sm:$0xff]
          %v1607 = vld [vmem:[#allocation2 + $0x18] sm:$0xff]
          %v1608 = vld [vmem:[#allocation2 + $0x20] sm:$0xff]
          %v1609 = vld [vmem:[#allocation2 + $0x28] sm:$0xff]
          %v1610 = vld [vmem:[#allocation2 + $0x30] sm:$0xff]
          %v1611 = vld [vmem:[#allocation2 + $0x38] sm:$0xff]
          %v1612 = vld [vmem:[#allocation2 + $0x40] sm:$0xff]
          %v1613 = vld [vmem:[#allocation2 + $0x48] sm:$0xff]
          %v1614 = vld [vmem:[#allocation2 + $0x50] sm:$0xff]
          %v1615 = vld [vmem:[#allocation2 + $0x58] sm:$0xff]
          %v1616 = vld [vmem:[#allocation2 + $0x60] sm:$0xff]
          %v1617 = vld [vmem:[#allocation2 + $0x68] sm:$0xff]
          %v1618 = vld [vmem:[#allocation2 + $0x70] sm:$0xff]
          %v1619 = vld [vmem:[#allocation2 + $0x78] sm:$0xff]
          %v1620 = vld [vmem:[#allocation2 + $0x80] sm:$0xff]
          %v1621 = vld [vmem:[#allocation2 + $0x88] sm:$0xff]
          %v1622 = vld [vmem:[#allocation2 + $0x90] sm:$0xff]
          %v1623 = vld [vmem:[#allocation2 + $0x98] sm:$0xff]
          %v1624 = vld [vmem:[#allocation2 + $0xa0] sm:$0xff]
          %v1625 = vld [vmem:[#allocation2 + $0xa8] sm:$0xff]
          %v1626 = vld [vmem:[#allocation2 + $0xb0] sm:$0xff]
          %v1627 = vld [vmem:[#allocation2 + $0xb8] sm:$0xff]
          %v1628 = vld [vmem:[#allocation2 + $0xc0] sm:$0xff]
          %v1629 = vld [vmem:[#allocation2 + $0xc8] sm:$0xff]
          %v1630 = vld [vmem:[#allocation2 + $0xd0] sm:$0xff]
          %v1631 = vld [vmem:[#allocation2 + $0xd8] sm:$0xff]
          %v1632 = vld [vmem:[#allocation2 + $0xe0] sm:$0xff]
          %v1633 = vld [vmem:[#allocation2 + $0xe8] sm:$0xff]
          %v1634 = vld [vmem:[#allocation2 + $0xf0] sm:$0xff]
          %v1635 = vld [vmem:[#allocation2 + $0xf8] sm:$0xff]
          %v1636 = vadd.f32 %v1604, %v1572
          %v1637 = vadd.f32 %v1605, %v1573
          %v1638 = vadd.f32 %v1606, %v1574
          %v1639 = vadd.f32 %v1607, %v1575
          %v1640 = vadd.f32 %v1608, %v1576
          %v1641 = vadd.f32 %v1609, %v1577
          %v1642 = vadd.f32 %v1610, %v1578
          %v1643 = vadd.f32 %v1611, %v1579
          %v1644 = vadd.f32 %v1612, %v1580
          %v1645 = vadd.f32 %v1613, %v1581
          %v1646 = vadd.f32 %v1614, %v1582
          %v1647 = vadd.f32 %v1615, %v1583
          %v1648 = vadd.f32 %v1616, %v1584
          %v1649 = vadd.f32 %v1617, %v1585
          %v1650 = vadd.f32 %v1618, %v1586
          %v1651 = vadd.f32 %v1619, %v1587
          %v1652 = vadd.f32 %v1620, %v1588
          %v1653 = vadd.f32 %v1621, %v1589
          %v1654 = vadd.f32 %v1622, %v1590
          %v1655 = vadd.f32 %v1623, %v1591
          %v1656 = vadd.f32 %v1624, %v1592
          %v1657 = vadd.f32 %v1625, %v1593
          %v1658 = vadd.f32 %v1626, %v1594
          %v1659 = vadd.f32 %v1627, %v1595
          %v1660 = vadd.f32 %v1628, %v1596
          %v1661 = vadd.f32 %v1629, %v1597
          %v1662 = vadd.f32 %v1630, %v1598
          %v1663 = vadd.f32 %v1631, %v1599
          %v1664 = vadd.f32 %v1632, %v1600
          %v1665 = vadd.f32 %v1633, %v1601
          %v1666 = vadd.f32 %v1634, %v1602
          %v1667 = vadd.f32 %v1635, %v1603
          %1668 = vst.msk [vmem:[#allocation2] sm:$0xff] %vm267, %v1636
          %1669 = vst.msk [vmem:[#allocation2 + $0x8] sm:$0xff] %vm267, %v1637
          %1670 = vst.msk [vmem:[#allocation2 + $0x10] sm:$0xff] %vm267, %v1638
          %1671 = vst.msk [vmem:[#allocation2 + $0x18] sm:$0xff] %vm267, %v1639
          %1672 = vst.msk [vmem:[#allocation2 + $0x20] sm:$0xff] %vm267, %v1640
          %1673 = vst.msk [vmem:[#allocation2 + $0x28] sm:$0xff] %vm267, %v1641
          %1674 = vst.msk [vmem:[#allocation2 + $0x30] sm:$0xff] %vm267, %v1642
          %1675 = vst.msk [vmem:[#allocation2 + $0x38] sm:$0xff] %vm267, %v1643
          %1676 = vst.msk [vmem:[#allocation2 + $0x40] sm:$0xff] %vm267, %v1644
          %1677 = vst.msk [vmem:[#allocation2 + $0x48] sm:$0xff] %vm267, %v1645
          %1678 = vst.msk [vmem:[#allocation2 + $0x50] sm:$0xff] %vm267, %v1646
          %1679 = vst.msk [vmem:[#allocation2 + $0x58] sm:$0xff] %vm267, %v1647
          %1680 = vst.msk [vmem:[#allocation2 + $0x60] sm:$0xff] %vm267, %v1648
          %1681 = vst.msk [vmem:[#allocation2 + $0x68] sm:$0xff] %vm267, %v1649
          %1682 = vst.msk [vmem:[#allocation2 + $0x70] sm:$0xff] %vm267, %v1650
          %1683 = vst.msk [vmem:[#allocation2 + $0x78] sm:$0xff] %vm267, %v1651
          %1684 = vst.msk [vmem:[#allocation2 + $0x80] sm:$0xff] %vm267, %v1652
          %1685 = vst.msk [vmem:[#allocation2 + $0x88] sm:$0xff] %vm267, %v1653
          %1686 = vst.msk [vmem:[#allocation2 + $0x90] sm:$0xff] %vm267, %v1654
          %1687 = vst.msk [vmem:[#allocation2 + $0x98] sm:$0xff] %vm267, %v1655
          %1688 = vst.msk [vmem:[#allocation2 + $0xa0] sm:$0xff] %vm267, %v1656
          %1689 = vst.msk [vmem:[#allocation2 + $0xa8] sm:$0xff] %vm267, %v1657
          %1690 = vst.msk [vmem:[#allocation2 + $0xb0] sm:$0xff] %vm267, %v1658
          %1691 = vst.msk [vmem:[#allocation2 + $0xb8] sm:$0xff] %vm267, %v1659
          %1692 = vst.msk [vmem:[#allocation2 + $0xc0] sm:$0xff] %vm267, %v1660
          %1693 = vst.msk [vmem:[#allocation2 + $0xc8] sm:$0xff] %vm267, %v1661
          %1694 = vst.msk [vmem:[#allocation2 + $0xd0] sm:$0xff] %vm267, %v1662
          %1695 = vst.msk [vmem:[#allocation2 + $0xd8] sm:$0xff] %vm267, %v1663
          %1696 = vst.msk [vmem:[#allocation2 + $0xe0] sm:$0xff] %vm267, %v1664
          %1697 = vst.msk [vmem:[#allocation2 + $0xe8] sm:$0xff] %vm267, %v1665
          %1698 = vst.msk [vmem:[#allocation2 + $0xf0] sm:$0xff] %vm267, %v1666
          %1699 = vst.msk [vmem:[#allocation2 + $0xf8] sm:$0xff] %vm267, %v1667
        $region40: #{tpu_custom_call.1} parent=35 // pred_fallthru
          _
        %p1700 = scmp.eq.s32.totalorder %s25, 1
        // Predicated region
        $region41: #{tpu_custom_call.1} parent=35 // pred_check
          %p1701 = pneg %p1700
        $region42: #{tpu_custom_call.1} parent=35 // pred_check_branch
          %1703 = sbr.rel (%p1701) target = $region44
        $region43: #{tpu_custom_call.1} parent=35 // pred_region
          %s1704 = scalar_lea.vmem %s251, 12
          %v1705 = vld [vmem:[%s1704] sm:$0xf]
          %v1706 = vld [vmem:[%s1704 + $0x4] sm:$0xf]
          %v1707 = vld [vmem:[%s1704 + $0x8] sm:$0xf]
          %v1708 = vld [vmem:[%s1704 + $0xc] sm:$0xf]
          %v1709 = vld [vmem:[%s1704 + $0x10] sm:$0xf]
          %v1710 = vld [vmem:[%s1704 + $0x14] sm:$0xf]
          %v1711 = vld [vmem:[%s1704 + $0x18] sm:$0xf]
          %v1712 = vld [vmem:[%s1704 + $0x1c] sm:$0xf]
          %v1713 = vld [vmem:[%s1704 + $0x20] sm:$0xf]
          %v1714 = vld [vmem:[%s1704 + $0x24] sm:$0xf]
          %v1715 = vld [vmem:[%s1704 + $0x28] sm:$0xf]
          %v1716 = vld [vmem:[%s1704 + $0x2c] sm:$0xf]
          %v1717 = vld [vmem:[%s1704 + $0x30] sm:$0xf]
          %v1718 = vld [vmem:[%s1704 + $0x34] sm:$0xf]
          %v1719 = vld [vmem:[%s1704 + $0x38] sm:$0xf]
          %v1720 = vld [vmem:[%s1704 + $0x3c] sm:$0xf]
          %v1721 = vld [vmem:[%s1704 + $0x40] sm:$0xf]
          %v1722 = vld [vmem:[%s1704 + $0x44] sm:$0xf]
          %v1723 = vld [vmem:[%s1704 + $0x48] sm:$0xf]
          %v1724 = vld [vmem:[%s1704 + $0x4c] sm:$0xf]
          %v1725 = vld [vmem:[%s1704 + $0x50] sm:$0xf]
          %v1726 = vld [vmem:[%s1704 + $0x54] sm:$0xf]
          %v1727 = vld [vmem:[%s1704 + $0x58] sm:$0xf]
          %v1728 = vld [vmem:[%s1704 + $0x5c] sm:$0xf]
          %v1729 = vld [vmem:[%s1704 + $0x60] sm:$0xf]
          %v1730 = vld [vmem:[%s1704 + $0x64] sm:$0xf]
          %v1731 = vld [vmem:[%s1704 + $0x68] sm:$0xf]
          %v1732 = vld [vmem:[%s1704 + $0x6c] sm:$0xf]
          %v1733 = vld [vmem:[%s1704 + $0x70] sm:$0xf]
          %v1734 = vld [vmem:[%s1704 + $0x74] sm:$0xf]
          %v1735 = vld [vmem:[%s1704 + $0x78] sm:$0xf]
          %v1736 = vld [vmem:[%s1704 + $0x7c] sm:$0xf]
          %v1737 = vld [vmem:[%s1704 + $0x80] sm:$0xf]
          %v1738 = vld [vmem:[%s1704 + $0x84] sm:$0xf]
          %v1739 = vld [vmem:[%s1704 + $0x88] sm:$0xf]
          %v1740 = vld [vmem:[%s1704 + $0x8c] sm:$0xf]
          %v1741 = vld [vmem:[%s1704 + $0x90] sm:$0xf]
          %v1742 = vld [vmem:[%s1704 + $0x94] sm:$0xf]
          %v1743 = vld [vmem:[%s1704 + $0x98] sm:$0xf]
          %v1744 = vld [vmem:[%s1704 + $0x9c] sm:$0xf]
          %v1745 = vld [vmem:[%s1704 + $0xa0] sm:$0xf]
          %v1746 = vld [vmem:[%s1704 + $0xa4] sm:$0xf]
          %v1747 = vld [vmem:[%s1704 + $0xa8] sm:$0xf]
          %v1748 = vld [vmem:[%s1704 + $0xac] sm:$0xf]
          %v1749 = vld [vmem:[%s1704 + $0xb0] sm:$0xf]
          %v1750 = vld [vmem:[%s1704 + $0xb4] sm:$0xf]
          %v1751 = vld [vmem:[%s1704 + $0xb8] sm:$0xf]
          %v1752 = vld [vmem:[%s1704 + $0xbc] sm:$0xf]
          %s1753 = scalar_lea.vmem %s255, 6
          %v1754 = vld [vmem:[%s1753] sm:$0x3]
          %v1803 = vunpack.c.l.b16 %v1705
          %v1804 = vunpack.c.l.b16 %v1706
          %v1805 = vunpack.c.l.b16 %v1707
          %v1806 = vunpack.c.l.b16 %v1708
          %v1807 = vunpack.c.l.b16 %v1709
          %v1808 = vunpack.c.l.b16 %v1710
          %v1809 = vunpack.c.l.b16 %v1711
          %v1810 = vunpack.c.l.b16 %v1712
          %v1811 = vunpack.c.l.b16 %v1713
          %v1812 = vunpack.c.l.b16 %v1714
          %v1813 = vunpack.c.l.b16 %v1715
          %v1814 = vunpack.c.l.b16 %v1716
          %v1815 = vunpack.c.l.b16 %v1717
          %v1816 = vunpack.c.l.b16 %v1718
          %v1817 = vunpack.c.l.b16 %v1719
          %v1818 = vunpack.c.l.b16 %v1720
          %v1819 = vunpack.c.l.b16 %v1721
          %v1820 = vunpack.c.l.b16 %v1722
          %v1821 = vunpack.c.l.b16 %v1723
          %v1822 = vunpack.c.l.b16 %v1724
          %v1823 = vunpack.c.l.b16 %v1725
          %v1824 = vunpack.c.l.b16 %v1726
          %v1825 = vunpack.c.l.b16 %v1727
          %v1826 = vunpack.c.l.b16 %v1728
          %v1827 = vunpack.c.l.b16 %v1729
          %v1828 = vunpack.c.l.b16 %v1730
          %v1829 = vunpack.c.l.b16 %v1731
          %v1830 = vunpack.c.l.b16 %v1732
          %v1831 = vunpack.c.l.b16 %v1733
          %v1832 = vunpack.c.l.b16 %v1734
          %v1833 = vunpack.c.l.b16 %v1735
          %v1834 = vunpack.c.l.b16 %v1736
          %v1835 = vunpack.c.l.b16 %v1737
          %v1836 = vunpack.c.l.b16 %v1738
          %v1837 = vunpack.c.l.b16 %v1739
          %v1838 = vunpack.c.l.b16 %v1740
          %v1839 = vunpack.c.l.b16 %v1741
          %v1840 = vunpack.c.l.b16 %v1742
          %v1841 = vunpack.c.l.b16 %v1743
          %v1842 = vunpack.c.l.b16 %v1744
          %v1843 = vunpack.c.l.b16 %v1745
          %v1844 = vunpack.c.l.b16 %v1746
          %v1845 = vunpack.c.l.b16 %v1747
          %v1846 = vunpack.c.l.b16 %v1748
          %v1847 = vunpack.c.l.b16 %v1749
          %v1848 = vunpack.c.l.b16 %v1750
          %v1849 = vunpack.c.l.b16 %v1751
          %v1850 = vunpack.c.l.b16 %v1752
          %v1851 = vpack.c.b16 %v1804, %v1803
          %v1852 = vpack.c.b16 %v1806, %v1805
          %v1853 = vpack.c.b16 %v1808, %v1807
          %v1854 = vpack.c.b16 %v1810, %v1809
          %v1855 = vpack.c.b16 %v1812, %v1811
          %v1856 = vpack.c.b16 %v1814, %v1813
          %v1857 = vpack.c.b16 %v1816, %v1815
          %v1858 = vpack.c.b16 %v1818, %v1817
          %v1859 = vpack.c.b16 %v1820, %v1819
          %v1860 = vpack.c.b16 %v1822, %v1821
          %v1861 = vpack.c.b16 %v1824, %v1823
          %v1862 = vpack.c.b16 %v1826, %v1825
          %v1863 = vpack.c.b16 %v1828, %v1827
          %v1864 = vpack.c.b16 %v1830, %v1829
          %v1865 = vpack.c.b16 %v1832, %v1831
          %v1866 = vpack.c.b16 %v1834, %v1833
          %v1867 = vpack.c.b16 %v1836, %v1835
          %v1868 = vpack.c.b16 %v1838, %v1837
          %v1869 = vpack.c.b16 %v1840, %v1839
          %v1870 = vpack.c.b16 %v1842, %v1841
          %v1871 = vpack.c.b16 %v1844, %v1843
          %v1872 = vpack.c.b16 %v1846, %v1845
          %v1873 = vpack.c.b16 %v1848, %v1847
          %v1874 = vpack.c.b16 %v1850, %v1849
          %vm1875 = vcmask 23552
          %v1877 = vsel %vm1875, %v1851, 0
          %v1880 = vsel %vm1875, %v1852, 0
          %v1883 = vsel %vm1875, %v1853, 0
          %v1886 = vsel %vm1875, %v1854, 0
          %v1889 = vsel %vm1875, %v1855, 0
          %v1892 = vsel %vm1875, %v1856, 0
          %v1895 = vsel %vm1875, %v1857, 0
          %v1898 = vsel %vm1875, %v1858, 0
          %v1901 = vsel %vm1875, %v1859, 0
          %v1904 = vsel %vm1875, %v1860, 0
          %v1907 = vsel %vm1875, %v1861, 0
          %v1910 = vsel %vm1875, %v1862, 0
          %v1913 = vsel %vm1875, %v1863, 0
          %v1916 = vsel %vm1875, %v1864, 0
          %v1919 = vsel %vm1875, %v1865, 0
          %v1922 = vsel %vm1875, %v1866, 0
          %v1925 = vsel %vm1875, %v1867, 0
          %v1928 = vsel %vm1875, %v1868, 0
          %v1931 = vsel %vm1875, %v1869, 0
          %v1934 = vsel %vm1875, %v1870, 0
          %v1937 = vsel %vm1875, %v1871, 0
          %v1940 = vsel %vm1875, %v1872, 0
          %v1943 = vsel %vm1875, %v1873, 0
          %v1946 = vsel %vm1875, %v1874, 0
          %vm1948 = vcmask 1040384
          %vm1949 = vcmask 1041408
          %v1950 = vsel %vm1948, 4294967295, 65535
          %v1951 = vsel %vm1949, %v1950, 0
          %v1953 = vand.u32 %v1754, %v1951
          %1955 = vmatprep.subr.bf16.mxu0 0
          %1956 = vmatpush1.bf16.msra.mxu0 0
          %1957 = vmatprep.subr.bf16.mxu0 0
          %1958 = vmatpush1.bf16.msra.mxu0 0
          %1959 = vmatprep.subr.bf16.mxu0 0
          %1960 = vmatpush1.bf16.msra.mxu0 0
          %1961 = vmatprep.subr.bf16.mxu0 0
          %1962 = vmatpush1.bf16.msra.mxu0 0
          %1963 = vmatprep.subr.bf16.mxu0 0
          %1964 = vmatpush1.bf16.msra.mxu0 0
          %1965 = vmatprep.subr.bf16.mxu0 0
          %1966 = vmatpush1.bf16.msra.mxu0 0
          %1967 = vmatprep.subr.bf16.mxu0 0
          %1968 = vmatpush1.bf16.msra.mxu0 0
          %1969 = vmatprep.subr.bf16.mxu0 0
          %1970 = vmatpush1.bf16.msra.mxu0 %v1953
          %1971 = vmatprep.subr.bf16.mxu0 0
          %1972 = vmatpush2.bf16.msra.mxu0 0
          %1973 = vmatprep.subr.bf16.mxu0 0
          %1974 = vmatpush2.bf16.msra.mxu0 0
          %1975 = vmatprep.subr.bf16.mxu0 0
          %1976 = vmatpush2.bf16.msra.mxu0 0
          %1977 = vmatprep.subr.bf16.mxu0 0
          %1978 = vmatpush2.bf16.msra.mxu0 0
          %1979 = vmatprep.subr.bf16.mxu0 0
          %1980 = vmatpush2.bf16.msra.mxu0 0
          %1981 = vmatprep.subr.bf16.mxu0 0
          %1982 = vmatpush2.bf16.msra.mxu0 0
          %1983 = vmatprep.subr.bf16.mxu0 0
          %1984 = vmatpush2.bf16.msra.mxu0 0
          %1985 = vmatprep.subr.bf16.mxu0 0
          %1986 = vmatpush2.bf16.msra.mxu0 0
          %1987 = vmatprep.mubr.bf16.mxu0 0
          %1988 = vmatmul.mubr.bf16.gmra.mxu0 %v1877
          %v1989 = vpop.f32.mrf.mxu0
          %v1990 = vadd.f32 0.0, %v1989
          %v1991 = vpop.f32.mrf.mxu0
          %v1992 = vpop.f32.mrf.mxu0
          %v1993 = vadd.f32 0.0, %v1992
          %v1994 = vpop.f32.mrf.mxu0
          %1995 = vmatprep.mubr.bf16.mxu0 0
          %1996 = vmatmul.mubr.bf16.gmra.mxu0 %v1880
          %v1997 = vpop.f32.mrf.mxu0
          %v1998 = vpop.f32.mrf.mxu0
          %v1999 = vpop.f32.mrf.mxu0
          %v2000 = vadd.f32 0.0, %v1999
          %v2001 = vpop.f32.mrf.mxu0
          %2002 = vmatprep.mubr.bf16.mxu0 0
          %2003 = vmatmul.mubr.bf16.gmra.mxu0 %v1883
          %v2004 = vpop.f32.mrf.mxu0
          %v2005 = vadd.f32 0.0, %v2004
          %v2006 = vpop.f32.mrf.mxu0
          %v2007 = vpop.f32.mrf.mxu0
          %v2008 = vpop.f32.mrf.mxu0
          %2009 = vmatprep.mubr.bf16.mxu0 0
          %2010 = vmatmul.mubr.bf16.gmra.mxu0 %v1886
          %v2011 = vpop.f32.mrf.mxu0
          %v2012 = vadd.f32 0.0, %v2011
          %v2013 = vpop.f32.mrf.mxu0
          %v2014 = vpop.f32.mrf.mxu0
          %v2015 = vadd.f32 0.0, %v2014
          %v2016 = vpop.f32.mrf.mxu0
          %2017 = vmatprep.mubr.bf16.mxu0 0
          %2018 = vmatmul.mubr.bf16.gmra.mxu0 %v1889
          %v2019 = vpop.f32.mrf.mxu0
          %v2020 = vpop.f32.mrf.mxu0
          %v2021 = vpop.f32.mrf.mxu0
          %v2022 = vadd.f32 0.0, %v2021
          %v2023 = vpop.f32.mrf.mxu0
          %2024 = vmatprep.mubr.bf16.mxu0 0
          %2025 = vmatmul.mubr.bf16.gmra.mxu0 %v1892
          %v2026 = vpop.f32.mrf.mxu0
          %v2027 = vadd.f32 0.0, %v2026
          %v2028 = vpop.f32.mrf.mxu0
          %v2029 = vpop.f32.mrf.mxu0
          %v2030 = vpop.f32.mrf.mxu0
          %2031 = vmatprep.mubr.bf16.mxu0 0
          %2032 = vmatmul.mubr.bf16.gmra.mxu0 %v1895
          %v2033 = vpop.f32.mrf.mxu0
          %v2034 = vadd.f32 0.0, %v2033
          %v2035 = vpop.f32.mrf.mxu0
          %v2036 = vpop.f32.mrf.mxu0
          %v2037 = vadd.f32 0.0, %v2036
          %v2038 = vpop.f32.mrf.mxu0
          %2039 = vmatprep.mubr.bf16.mxu0 0
          %2040 = vmatmul.mubr.bf16.gmra.mxu0 %v1898
          %v2041 = vpop.f32.mrf.mxu0
          %v2042 = vpop.f32.mrf.mxu0
          %v2043 = vpop.f32.mrf.mxu0
          %v2044 = vadd.f32 0.0, %v2043
          %v2045 = vpop.f32.mrf.mxu0
          %2046 = vmatprep.mubr.bf16.mxu0 0
          %2047 = vmatmul.mubr.bf16.gmra.mxu0 %v1901
          %v2048 = vpop.f32.mrf.mxu0
          %v2049 = vadd.f32 0.0, %v2048
          %v2050 = vpop.f32.mrf.mxu0
          %v2051 = vpop.f32.mrf.mxu0
          %v2052 = vpop.f32.mrf.mxu0
          %2053 = vmatprep.mubr.bf16.mxu0 0
          %2054 = vmatmul.mubr.bf16.gmra.mxu0 %v1904
          %v2055 = vpop.f32.mrf.mxu0
          %v2056 = vadd.f32 0.0, %v2055
          %v2057 = vpop.f32.mrf.mxu0
          %v2058 = vpop.f32.mrf.mxu0
          %v2059 = vadd.f32 0.0, %v2058
          %v2060 = vpop.f32.mrf.mxu0
          %2061 = vmatprep.mubr.bf16.mxu0 0
          %2062 = vmatmul.mubr.bf16.gmra.mxu0 %v1907
          %v2063 = vpop.f32.mrf.mxu0
          %v2064 = vpop.f32.mrf.mxu0
          %v2065 = vpop.f32.mrf.mxu0
          %v2066 = vadd.f32 0.0, %v2065
          %v2067 = vpop.f32.mrf.mxu0
          %2068 = vmatprep.mubr.bf16.mxu0 0
          %2069 = vmatmul.mubr.bf16.gmra.mxu0 %v1910
          %v2070 = vpop.f32.mrf.mxu0
          %v2071 = vadd.f32 0.0, %v2070
          %v2072 = vpop.f32.mrf.mxu0
          %v2073 = vpop.f32.mrf.mxu0
          %v2074 = vpop.f32.mrf.mxu0
          %2075 = vmatprep.mubr.bf16.mxu0 0
          %2076 = vmatmul.mubr.bf16.gmra.mxu0 %v1913
          %v2077 = vpop.f32.mrf.mxu0
          %v2078 = vadd.f32 0.0, %v2077
          %v2079 = vpop.f32.mrf.mxu0
          %v2080 = vpop.f32.mrf.mxu0
          %v2081 = vadd.f32 0.0, %v2080
          %v2082 = vpop.f32.mrf.mxu0
          %2083 = vmatprep.mubr.bf16.mxu0 0
          %2084 = vmatmul.mubr.bf16.gmra.mxu0 %v1916
          %v2085 = vpop.f32.mrf.mxu0
          %v2086 = vpop.f32.mrf.mxu0
          %v2087 = vpop.f32.mrf.mxu0
          %v2088 = vadd.f32 0.0, %v2087
          %v2089 = vpop.f32.mrf.mxu0
          %2090 = vmatprep.mubr.bf16.mxu0 0
          %2091 = vmatmul.mubr.bf16.gmra.mxu0 %v1919
          %v2092 = vpop.f32.mrf.mxu0
          %v2093 = vadd.f32 0.0, %v2092
          %v2094 = vpop.f32.mrf.mxu0
          %v2095 = vpop.f32.mrf.mxu0
          %v2096 = vpop.f32.mrf.mxu0
          %2097 = vmatprep.mubr.bf16.mxu0 0
          %2098 = vmatmul.mubr.bf16.gmra.mxu0 %v1922
          %v2099 = vpop.f32.mrf.mxu0
          %v2100 = vadd.f32 0.0, %v2099
          %v2101 = vpop.f32.mrf.mxu0
          %v2102 = vpop.f32.mrf.mxu0
          %v2103 = vadd.f32 0.0, %v2102
          %v2104 = vpop.f32.mrf.mxu0
          %2105 = vmatprep.mubr.bf16.mxu0 0
          %2106 = vmatmul.mubr.bf16.gmra.mxu0 %v1925
          %v2107 = vpop.f32.mrf.mxu0
          %v2108 = vpop.f32.mrf.mxu0
          %v2109 = vpop.f32.mrf.mxu0
          %v2110 = vadd.f32 0.0, %v2109
          %v2111 = vpop.f32.mrf.mxu0
          %2112 = vmatprep.mubr.bf16.mxu0 0
          %2113 = vmatmul.mubr.bf16.gmra.mxu0 %v1928
          %v2114 = vpop.f32.mrf.mxu0
          %v2115 = vadd.f32 0.0, %v2114
          %v2116 = vpop.f32.mrf.mxu0
          %v2117 = vpop.f32.mrf.mxu0
          %v2118 = vpop.f32.mrf.mxu0
          %2119 = vmatprep.mubr.bf16.mxu0 0
          %2120 = vmatmul.mubr.bf16.gmra.mxu0 %v1931
          %v2121 = vpop.f32.mrf.mxu0
          %v2122 = vadd.f32 0.0, %v2121
          %v2123 = vpop.f32.mrf.mxu0
          %v2124 = vpop.f32.mrf.mxu0
          %v2125 = vadd.f32 0.0, %v2124
          %v2126 = vpop.f32.mrf.mxu0
          %2127 = vmatprep.mubr.bf16.mxu0 0
          %2128 = vmatmul.mubr.bf16.gmra.mxu0 %v1934
          %v2129 = vpop.f32.mrf.mxu0
          %v2130 = vpop.f32.mrf.mxu0
          %v2131 = vpop.f32.mrf.mxu0
          %v2132 = vadd.f32 0.0, %v2131
          %v2133 = vpop.f32.mrf.mxu0
          %2134 = vmatprep.mubr.bf16.mxu0 0
          %2135 = vmatmul.mubr.bf16.gmra.mxu0 %v1937
          %v2136 = vpop.f32.mrf.mxu0
          %v2137 = vadd.f32 0.0, %v2136
          %v2138 = vpop.f32.mrf.mxu0
          %v2139 = vpop.f32.mrf.mxu0
          %v2140 = vpop.f32.mrf.mxu0
          %2141 = vmatprep.mubr.bf16.mxu0 0
          %2142 = vmatmul.mubr.bf16.gmra.mxu0 %v1940
          %v2143 = vpop.f32.mrf.mxu0
          %v2144 = vadd.f32 0.0, %v2143
          %v2145 = vpop.f32.mrf.mxu0
          %v2146 = vpop.f32.mrf.mxu0
          %v2147 = vadd.f32 0.0, %v2146
          %v2148 = vpop.f32.mrf.mxu0
          %2149 = vmatprep.mubr.bf16.mxu0 0
          %2150 = vmatmul.mubr.bf16.gmra.mxu0 %v1943
          %v2151 = vpop.f32.mrf.mxu0
          %v2152 = vpop.f32.mrf.mxu0
          %v2153 = vpop.f32.mrf.mxu0
          %v2154 = vadd.f32 0.0, %v2153
          %v2155 = vpop.f32.mrf.mxu0
          %2156 = vmatprep.mubr.bf16.mxu0 0
          %2157 = vmatmul.mubr.bf16.gmra.mxu0 %v1946
          %v2158 = vpop.f32.mrf.mxu0
          %v2159 = vadd.f32 0.0, %v2158
          %v2160 = vpop.f32.mrf.mxu0
          %v2161 = vpop.f32.mrf.mxu0
          %v2162 = vpop.f32.mrf.mxu0
          %2163 = vdwg.mxu0
          %s2164 = scalar_lea.vmem %s255, 8
          %v2165 = vld [vmem:[%s2164] sm:$0x3]
          %v2167 = vand.u32 %v2165, %v1951
          %2169 = vmatprep.subr.bf16.mxu0 0
          %2170 = vmatpush1.bf16.msra.mxu0 0
          %2171 = vmatprep.subr.bf16.mxu0 0
          %2172 = vmatpush1.bf16.msra.mxu0 0
          %2173 = vmatprep.subr.bf16.mxu0 0
          %2174 = vmatpush1.bf16.msra.mxu0 0
          %2175 = vmatprep.subr.bf16.mxu0 0
          %2176 = vmatpush1.bf16.msra.mxu0 0
          %2177 = vmatprep.subr.bf16.mxu0 0
          %2178 = vmatpush1.bf16.msra.mxu0 0
          %2179 = vmatprep.subr.bf16.mxu0 0
          %2180 = vmatpush1.bf16.msra.mxu0 0
          %2181 = vmatprep.subr.bf16.mxu0 0
          %2182 = vmatpush1.bf16.msra.mxu0 0
          %2183 = vmatprep.subr.bf16.mxu0 0
          %2184 = vmatpush1.bf16.msra.mxu0 %v2167
          %2185 = vmatprep.subr.bf16.mxu0 0
          %2186 = vmatpush2.bf16.msra.mxu0 0
          %2187 = vmatprep.subr.bf16.mxu0 0
          %2188 = vmatpush2.bf16.msra.mxu0 0
          %2189 = vmatprep.subr.bf16.mxu0 0
          %2190 = vmatpush2.bf16.msra.mxu0 0
          %2191 = vmatprep.subr.bf16.mxu0 0
          %2192 = vmatpush2.bf16.msra.mxu0 0
          %2193 = vmatprep.subr.bf16.mxu0 0
          %2194 = vmatpush2.bf16.msra.mxu0 0
          %2195 = vmatprep.subr.bf16.mxu0 0
          %2196 = vmatpush2.bf16.msra.mxu0 0
          %2197 = vmatprep.subr.bf16.mxu0 0
          %2198 = vmatpush2.bf16.msra.mxu0 0
          %2199 = vmatprep.subr.bf16.mxu0 0
          %2200 = vmatpush2.bf16.msra.mxu0 0
          %2201 = vmatprep.mubr.bf16.mxu0 0
          %2202 = vmatmul.mubr.bf16.gmra.mxu0 %v1877
          %v2203 = vpop.f32.mrf.mxu0
          %v2204 = vadd.f32 0.0, %v2203
          %v2205 = vpop.f32.mrf.mxu0
          %v2206 = vpop.f32.mrf.mxu0
          %v2207 = vadd.f32 0.0, %v2206
          %v2208 = vpop.f32.mrf.mxu0
          %2209 = vmatprep.mubr.bf16.mxu0 0
          %2210 = vmatmul.mubr.bf16.gmra.mxu0 %v1880
          %v2211 = vpop.f32.mrf.mxu0
          %v2212 = vadd.f32 0.0, %v2211
          %v2213 = vpop.f32.mrf.mxu0
          %v2214 = vpop.f32.mrf.mxu0
          %v2215 = vadd.f32 0.0, %v2214
          %v2216 = vpop.f32.mrf.mxu0
          %2217 = vmatprep.mubr.bf16.mxu0 0
          %2218 = vmatmul.mubr.bf16.gmra.mxu0 %v1883
          %v2219 = vpop.f32.mrf.mxu0
          %v2220 = vadd.f32 0.0, %v2219
          %v2221 = vpop.f32.mrf.mxu0
          %v2222 = vpop.f32.mrf.mxu0
          %v2223 = vadd.f32 0.0, %v2222
          %v2224 = vpop.f32.mrf.mxu0
          %2225 = vmatprep.mubr.bf16.mxu0 0
          %2226 = vmatmul.mubr.bf16.gmra.mxu0 %v1886
          %v2227 = vpop.f32.mrf.mxu0
          %v2228 = vadd.f32 0.0, %v2227
          %v2229 = vpop.f32.mrf.mxu0
          %v2230 = vpop.f32.mrf.mxu0
          %v2231 = vadd.f32 0.0, %v2230
          %v2232 = vpop.f32.mrf.mxu0
          %2233 = vmatprep.mubr.bf16.mxu0 0
          %2234 = vmatmul.mubr.bf16.gmra.mxu0 %v1889
          %v2235 = vpop.f32.mrf.mxu0
          %v2236 = vadd.f32 0.0, %v2235
          %v2237 = vpop.f32.mrf.mxu0
          %v2238 = vpop.f32.mrf.mxu0
          %v2239 = vadd.f32 0.0, %v2238
          %v2240 = vpop.f32.mrf.mxu0
          %2241 = vmatprep.mubr.bf16.mxu0 0
          %2242 = vmatmul.mubr.bf16.gmra.mxu0 %v1892
          %v2243 = vpop.f32.mrf.mxu0
          %v2244 = vadd.f32 0.0, %v2243
          %v2245 = vpop.f32.mrf.mxu0
          %v2246 = vpop.f32.mrf.mxu0
          %v2247 = vadd.f32 0.0, %v2246
          %v2248 = vpop.f32.mrf.mxu0
          %2249 = vmatprep.mubr.bf16.mxu0 0
          %2250 = vmatmul.mubr.bf16.gmra.mxu0 %v1895
          %v2251 = vpop.f32.mrf.mxu0
          %v2252 = vadd.f32 0.0, %v2251
          %v2253 = vpop.f32.mrf.mxu0
          %v2254 = vpop.f32.mrf.mxu0
          %v2255 = vadd.f32 0.0, %v2254
          %v2256 = vpop.f32.mrf.mxu0
          %2257 = vmatprep.mubr.bf16.mxu0 0
          %2258 = vmatmul.mubr.bf16.gmra.mxu0 %v1898
          %v2259 = vpop.f32.mrf.mxu0
          %v2260 = vadd.f32 0.0, %v2259
          %v2261 = vpop.f32.mrf.mxu0
          %v2262 = vpop.f32.mrf.mxu0
          %v2263 = vadd.f32 0.0, %v2262
          %v2264 = vpop.f32.mrf.mxu0
          %2265 = vmatprep.mubr.bf16.mxu0 0
          %2266 = vmatmul.mubr.bf16.gmra.mxu0 %v1901
          %v2267 = vpop.f32.mrf.mxu0
          %v2268 = vadd.f32 0.0, %v2267
          %v2269 = vpop.f32.mrf.mxu0
          %v2270 = vpop.f32.mrf.mxu0
          %v2271 = vadd.f32 0.0, %v2270
          %v2272 = vpop.f32.mrf.mxu0
          %2273 = vmatprep.mubr.bf16.mxu0 0
          %2274 = vmatmul.mubr.bf16.gmra.mxu0 %v1904
          %v2275 = vpop.f32.mrf.mxu0
          %v2276 = vadd.f32 0.0, %v2275
          %v2277 = vpop.f32.mrf.mxu0
          %v2278 = vpop.f32.mrf.mxu0
          %v2279 = vadd.f32 0.0, %v2278
          %v2280 = vpop.f32.mrf.mxu0
          %2281 = vmatprep.mubr.bf16.mxu0 0
          %2282 = vmatmul.mubr.bf16.gmra.mxu0 %v1907
          %v2283 = vpop.f32.mrf.mxu0
          %v2284 = vadd.f32 0.0, %v2283
          %v2285 = vpop.f32.mrf.mxu0
          %v2286 = vpop.f32.mrf.mxu0
          %v2287 = vadd.f32 0.0, %v2286
          %v2288 = vpop.f32.mrf.mxu0
          %2289 = vmatprep.mubr.bf16.mxu0 0
          %2290 = vmatmul.mubr.bf16.gmra.mxu0 %v1910
          %v2291 = vpop.f32.mrf.mxu0
          %v2292 = vadd.f32 0.0, %v2291
          %v2293 = vpop.f32.mrf.mxu0
          %v2294 = vpop.f32.mrf.mxu0
          %v2295 = vadd.f32 0.0, %v2294
          %v2296 = vpop.f32.mrf.mxu0
          %2297 = vmatprep.mubr.bf16.mxu0 0
          %2298 = vmatmul.mubr.bf16.gmra.mxu0 %v1913
          %v2299 = vpop.f32.mrf.mxu0
          %v2300 = vadd.f32 0.0, %v2299
          %v2301 = vpop.f32.mrf.mxu0
          %v2302 = vpop.f32.mrf.mxu0
          %v2303 = vadd.f32 0.0, %v2302
          %v2304 = vpop.f32.mrf.mxu0
          %2305 = vmatprep.mubr.bf16.mxu0 0
          %2306 = vmatmul.mubr.bf16.gmra.mxu0 %v1916
          %v2307 = vpop.f32.mrf.mxu0
          %v2308 = vadd.f32 0.0, %v2307
          %v2309 = vpop.f32.mrf.mxu0
          %v2310 = vpop.f32.mrf.mxu0
          %v2311 = vadd.f32 0.0, %v2310
          %v2312 = vpop.f32.mrf.mxu0
          %2313 = vmatprep.mubr.bf16.mxu0 0
          %2314 = vmatmul.mubr.bf16.gmra.mxu0 %v1919
          %v2315 = vpop.f32.mrf.mxu0
          %v2316 = vadd.f32 0.0, %v2315
          %v2317 = vpop.f32.mrf.mxu0
          %v2318 = vpop.f32.mrf.mxu0
          %v2319 = vadd.f32 0.0, %v2318
          %v2320 = vpop.f32.mrf.mxu0
          %2321 = vmatprep.mubr.bf16.mxu0 0
          %2322 = vmatmul.mubr.bf16.gmra.mxu0 %v1922
          %v2323 = vpop.f32.mrf.mxu0
          %v2324 = vadd.f32 0.0, %v2323
          %v2325 = vpop.f32.mrf.mxu0
          %v2326 = vpop.f32.mrf.mxu0
          %v2327 = vadd.f32 0.0, %v2326
          %v2328 = vpop.f32.mrf.mxu0
          %2329 = vmatprep.mubr.bf16.mxu0 0
          %2330 = vmatmul.mubr.bf16.gmra.mxu0 %v1925
          %v2331 = vpop.f32.mrf.mxu0
          %v2332 = vadd.f32 0.0, %v2331
          %v2333 = vpop.f32.mrf.mxu0
          %v2334 = vpop.f32.mrf.mxu0
          %v2335 = vadd.f32 0.0, %v2334
          %v2336 = vpop.f32.mrf.mxu0
          %2337 = vmatprep.mubr.bf16.mxu0 0
          %2338 = vmatmul.mubr.bf16.gmra.mxu0 %v1928
          %v2339 = vpop.f32.mrf.mxu0
          %v2340 = vadd.f32 0.0, %v2339
          %v2341 = vpop.f32.mrf.mxu0
          %v2342 = vpop.f32.mrf.mxu0
          %v2343 = vadd.f32 0.0, %v2342
          %v2344 = vpop.f32.mrf.mxu0
          %2345 = vmatprep.mubr.bf16.mxu0 0
          %2346 = vmatmul.mubr.bf16.gmra.mxu0 %v1931
          %v2347 = vpop.f32.mrf.mxu0
          %v2348 = vadd.f32 0.0, %v2347
          %v2349 = vpop.f32.mrf.mxu0
          %v2350 = vpop.f32.mrf.mxu0
          %v2351 = vadd.f32 0.0, %v2350
          %v2352 = vpop.f32.mrf.mxu0
          %2353 = vmatprep.mubr.bf16.mxu0 0
          %2354 = vmatmul.mubr.bf16.gmra.mxu0 %v1934
          %v2355 = vpop.f32.mrf.mxu0
          %v2356 = vadd.f32 0.0, %v2355
          %v2357 = vpop.f32.mrf.mxu0
          %v2358 = vpop.f32.mrf.mxu0
          %v2359 = vadd.f32 0.0, %v2358
          %v2360 = vpop.f32.mrf.mxu0
          %2361 = vmatprep.mubr.bf16.mxu0 0
          %2362 = vmatmul.mubr.bf16.gmra.mxu0 %v1937
          %v2363 = vpop.f32.mrf.mxu0
          %v2364 = vadd.f32 0.0, %v2363
          %v2365 = vpop.f32.mrf.mxu0
          %v2366 = vpop.f32.mrf.mxu0
          %v2367 = vadd.f32 0.0, %v2366
          %v2368 = vpop.f32.mrf.mxu0
          %2369 = vmatprep.mubr.bf16.mxu0 0
          %2370 = vmatmul.mubr.bf16.gmra.mxu0 %v1940
          %v2371 = vpop.f32.mrf.mxu0
          %v2372 = vadd.f32 0.0, %v2371
          %v2373 = vpop.f32.mrf.mxu0
          %v2374 = vpop.f32.mrf.mxu0
          %v2375 = vadd.f32 0.0, %v2374
          %v2376 = vpop.f32.mrf.mxu0
          %2377 = vmatprep.mubr.bf16.mxu0 0
          %2378 = vmatmul.mubr.bf16.gmra.mxu0 %v1943
          %v2379 = vpop.f32.mrf.mxu0
          %v2380 = vadd.f32 0.0, %v2379
          %v2381 = vpop.f32.mrf.mxu0
          %v2382 = vpop.f32.mrf.mxu0
          %v2383 = vadd.f32 0.0, %v2382
          %v2384 = vpop.f32.mrf.mxu0
          %2385 = vmatprep.mubr.bf16.mxu0 0
          %2386 = vmatmul.mubr.bf16.gmra.mxu0 %v1946
          %v2387 = vpop.f32.mrf.mxu0
          %v2388 = vadd.f32 0.0, %v2387
          %v2389 = vpop.f32.mrf.mxu0
          %v2390 = vpop.f32.mrf.mxu0
          %v2391 = vadd.f32 0.0, %v2390
          %v2392 = vpop.f32.mrf.mxu0
          %2393 = vdwg.mxu0
          %vm2442 = vcmask 1046528
          %v2443 = vrot.slane %v2204, 1
          %v2444 = vrot.slane %v2207, 1
          %v2445 = vsel %vm2442, %v2443, %v2444
          %v2446 = vrot.slane %v2212, 1
          %v2447 = vsel %vm2442, %v2444, %v2446
          %v2448 = vrot.slane %v2215, 1
          %v2449 = vrot.slane %v2220, 1
          %v2450 = vsel %vm2442, %v2448, %v2449
          %v2451 = vrot.slane %v2223, 1
          %v2452 = vsel %vm2442, %v2449, %v2451
          %v2453 = vrot.slane %v2228, 1
          %v2454 = vrot.slane %v2231, 1
          %v2455 = vsel %vm2442, %v2453, %v2454
          %v2456 = vrot.slane %v2236, 1
          %v2457 = vsel %vm2442, %v2454, %v2456
          %v2458 = vrot.slane %v2239, 1
          %v2459 = vrot.slane %v2244, 1
          %v2460 = vsel %vm2442, %v2458, %v2459
          %v2461 = vrot.slane %v2247, 1
          %v2462 = vsel %vm2442, %v2459, %v2461
          %v2463 = vrot.slane %v2252, 1
          %v2464 = vrot.slane %v2255, 1
          %v2465 = vsel %vm2442, %v2463, %v2464
          %v2466 = vrot.slane %v2260, 1
          %v2467 = vsel %vm2442, %v2464, %v2466
          %v2468 = vrot.slane %v2263, 1
          %v2469 = vrot.slane %v2268, 1
          %v2470 = vsel %vm2442, %v2468, %v2469
          %v2471 = vrot.slane %v2271, 1
          %v2472 = vsel %vm2442, %v2469, %v2471
          %v2473 = vrot.slane %v2276, 1
          %v2474 = vrot.slane %v2279, 1
          %v2475 = vsel %vm2442, %v2473, %v2474
          %v2476 = vrot.slane %v2284, 1
          %v2477 = vsel %vm2442, %v2474, %v2476
          %v2478 = vrot.slane %v2287, 1
          %v2479 = vrot.slane %v2292, 1
          %v2480 = vsel %vm2442, %v2478, %v2479
          %v2481 = vrot.slane %v2295, 1
          %v2482 = vsel %vm2442, %v2479, %v2481
          %v2483 = vrot.slane %v2300, 1
          %v2484 = vrot.slane %v2303, 1
          %v2485 = vsel %vm2442, %v2483, %v2484
          %v2486 = vrot.slane %v2308, 1
          %v2487 = vsel %vm2442, %v2484, %v2486
          %v2488 = vrot.slane %v2311, 1
          %v2489 = vrot.slane %v2316, 1
          %v2490 = vsel %vm2442, %v2488, %v2489
          %v2491 = vrot.slane %v2319, 1
          %v2492 = vsel %vm2442, %v2489, %v2491
          %v2493 = vrot.slane %v2324, 1
          %v2494 = vrot.slane %v2327, 1
          %v2495 = vsel %vm2442, %v2493, %v2494
          %v2496 = vrot.slane %v2332, 1
          %v2497 = vsel %vm2442, %v2494, %v2496
          %v2498 = vrot.slane %v2335, 1
          %v2499 = vrot.slane %v2340, 1
          %v2500 = vsel %vm2442, %v2498, %v2499
          %v2501 = vrot.slane %v2343, 1
          %v2502 = vsel %vm2442, %v2499, %v2501
          %v2503 = vrot.slane %v2348, 1
          %v2504 = vrot.slane %v2351, 1
          %v2505 = vsel %vm2442, %v2503, %v2504
          %v2506 = vrot.slane %v2356, 1
          %v2507 = vsel %vm2442, %v2504, %v2506
          %v2508 = vrot.slane %v2359, 1
          %v2509 = vrot.slane %v2364, 1
          %v2510 = vsel %vm2442, %v2508, %v2509
          %v2511 = vrot.slane %v2367, 1
          %v2512 = vsel %vm2442, %v2509, %v2511
          %v2513 = vrot.slane %v2372, 1
          %v2514 = vrot.slane %v2375, 1
          %v2515 = vsel %vm2442, %v2513, %v2514
          %v2516 = vrot.slane %v2380, 1
          %v2517 = vsel %vm2442, %v2514, %v2516
          %v2518 = vrot.slane %v2383, 1
          %v2519 = vrot.slane %v2388, 1
          %v2520 = vsel %vm2442, %v2518, %v2519
          %v2521 = vrot.slane %v2391, 1
          %v2522 = vsel %vm2442, %v2519, %v2521
          %v2555 = vadd.f32 %v1990, %v2445
          %v2556 = vadd.f32 %v1993, %v2447
          %v2557 = vadd.f32 %v2000, %v2450
          %v2558 = vadd.f32 %v2005, %v2452
          %v2559 = vadd.f32 %v2012, %v2455
          %v2560 = vadd.f32 %v2015, %v2457
          %v2561 = vadd.f32 %v2022, %v2460
          %v2562 = vadd.f32 %v2027, %v2462
          %v2563 = vadd.f32 %v2034, %v2465
          %v2564 = vadd.f32 %v2037, %v2467
          %v2565 = vadd.f32 %v2044, %v2470
          %v2566 = vadd.f32 %v2049, %v2472
          %v2567 = vadd.f32 %v2056, %v2475
          %v2568 = vadd.f32 %v2059, %v2477
          %v2569 = vadd.f32 %v2066, %v2480
          %v2570 = vadd.f32 %v2071, %v2482
          %v2571 = vadd.f32 %v2078, %v2485
          %v2572 = vadd.f32 %v2081, %v2487
          %v2573 = vadd.f32 %v2088, %v2490
          %v2574 = vadd.f32 %v2093, %v2492
          %v2575 = vadd.f32 %v2100, %v2495
          %v2576 = vadd.f32 %v2103, %v2497
          %v2577 = vadd.f32 %v2110, %v2500
          %v2578 = vadd.f32 %v2115, %v2502
          %v2579 = vadd.f32 %v2122, %v2505
          %v2580 = vadd.f32 %v2125, %v2507
          %v2581 = vadd.f32 %v2132, %v2510
          %v2582 = vadd.f32 %v2137, %v2512
          %v2583 = vadd.f32 %v2144, %v2515
          %v2584 = vadd.f32 %v2147, %v2517
          %v2585 = vadd.f32 %v2154, %v2520
          %v2586 = vadd.f32 %v2159, %v2522
          %s2587 = scalar_lea.vmem %s255, 10
          %v2588 = vld [vmem:[%s2587] sm:$0x3]
          %v2590 = vand.u32 %v2588, %v1951
          %2592 = vmatprep.subr.bf16.mxu0 0
          %2593 = vmatpush1.bf16.msra.mxu0 0
          %2594 = vmatprep.subr.bf16.mxu0 0
          %2595 = vmatpush1.bf16.msra.mxu0 0
          %2596 = vmatprep.subr.bf16.mxu0 0
          %2597 = vmatpush1.bf16.msra.mxu0 0
          %2598 = vmatprep.subr.bf16.mxu0 0
          %2599 = vmatpush1.bf16.msra.mxu0 0
          %2600 = vmatprep.subr.bf16.mxu0 0
          %2601 = vmatpush1.bf16.msra.mxu0 0
          %2602 = vmatprep.subr.bf16.mxu0 0
          %2603 = vmatpush1.bf16.msra.mxu0 0
          %2604 = vmatprep.subr.bf16.mxu0 0
          %2605 = vmatpush1.bf16.msra.mxu0 0
          %2606 = vmatprep.subr.bf16.mxu0 0
          %2607 = vmatpush1.bf16.msra.mxu0 %v2590
          %2608 = vmatprep.subr.bf16.mxu0 0
          %2609 = vmatpush2.bf16.msra.mxu0 0
          %2610 = vmatprep.subr.bf16.mxu0 0
          %2611 = vmatpush2.bf16.msra.mxu0 0
          %2612 = vmatprep.subr.bf16.mxu0 0
          %2613 = vmatpush2.bf16.msra.mxu0 0
          %2614 = vmatprep.subr.bf16.mxu0 0
          %2615 = vmatpush2.bf16.msra.mxu0 0
          %2616 = vmatprep.subr.bf16.mxu0 0
          %2617 = vmatpush2.bf16.msra.mxu0 0
          %2618 = vmatprep.subr.bf16.mxu0 0
          %2619 = vmatpush2.bf16.msra.mxu0 0
          %2620 = vmatprep.subr.bf16.mxu0 0
          %2621 = vmatpush2.bf16.msra.mxu0 0
          %2622 = vmatprep.subr.bf16.mxu0 0
          %2623 = vmatpush2.bf16.msra.mxu0 0
          %2624 = vmatprep.mubr.bf16.mxu0 0
          %2625 = vmatmul.mubr.bf16.gmra.mxu0 %v1877
          %v2626 = vpop.f32.mrf.mxu0
          %v2627 = vadd.f32 0.0, %v2626
          %v2628 = vpop.f32.mrf.mxu0
          %v2629 = vpop.f32.mrf.mxu0
          %v2630 = vadd.f32 0.0, %v2629
          %v2631 = vpop.f32.mrf.mxu0
          %2632 = vmatprep.mubr.bf16.mxu0 0
          %2633 = vmatmul.mubr.bf16.gmra.mxu0 %v1880
          %v2634 = vpop.f32.mrf.mxu0
          %v2635 = vadd.f32 0.0, %v2634
          %v2636 = vpop.f32.mrf.mxu0
          %v2637 = vpop.f32.mrf.mxu0
          %v2638 = vadd.f32 0.0, %v2637
          %v2639 = vpop.f32.mrf.mxu0
          %2640 = vmatprep.mubr.bf16.mxu0 0
          %2641 = vmatmul.mubr.bf16.gmra.mxu0 %v1883
          %v2642 = vpop.f32.mrf.mxu0
          %v2643 = vadd.f32 0.0, %v2642
          %v2644 = vpop.f32.mrf.mxu0
          %v2645 = vpop.f32.mrf.mxu0
          %v2646 = vadd.f32 0.0, %v2645
          %v2647 = vpop.f32.mrf.mxu0
          %2648 = vmatprep.mubr.bf16.mxu0 0
          %2649 = vmatmul.mubr.bf16.gmra.mxu0 %v1886
          %v2650 = vpop.f32.mrf.mxu0
          %v2651 = vadd.f32 0.0, %v2650
          %v2652 = vpop.f32.mrf.mxu0
          %v2653 = vpop.f32.mrf.mxu0
          %v2654 = vadd.f32 0.0, %v2653
          %v2655 = vpop.f32.mrf.mxu0
          %2656 = vmatprep.mubr.bf16.mxu0 0
          %2657 = vmatmul.mubr.bf16.gmra.mxu0 %v1889
          %v2658 = vpop.f32.mrf.mxu0
          %v2659 = vadd.f32 0.0, %v2658
          %v2660 = vpop.f32.mrf.mxu0
          %v2661 = vpop.f32.mrf.mxu0
          %v2662 = vadd.f32 0.0, %v2661
          %v2663 = vpop.f32.mrf.mxu0
          %2664 = vmatprep.mubr.bf16.mxu0 0
          %2665 = vmatmul.mubr.bf16.gmra.mxu0 %v1892
          %v2666 = vpop.f32.mrf.mxu0
          %v2667 = vadd.f32 0.0, %v2666
          %v2668 = vpop.f32.mrf.mxu0
          %v2669 = vpop.f32.mrf.mxu0
          %v2670 = vadd.f32 0.0, %v2669
          %v2671 = vpop.f32.mrf.mxu0
          %2672 = vmatprep.mubr.bf16.mxu0 0
          %2673 = vmatmul.mubr.bf16.gmra.mxu0 %v1895
          %v2674 = vpop.f32.mrf.mxu0
          %v2675 = vadd.f32 0.0, %v2674
          %v2676 = vpop.f32.mrf.mxu0
          %v2677 = vpop.f32.mrf.mxu0
          %v2678 = vadd.f32 0.0, %v2677
          %v2679 = vpop.f32.mrf.mxu0
          %2680 = vmatprep.mubr.bf16.mxu0 0
          %2681 = vmatmul.mubr.bf16.gmra.mxu0 %v1898
          %v2682 = vpop.f32.mrf.mxu0
          %v2683 = vadd.f32 0.0, %v2682
          %v2684 = vpop.f32.mrf.mxu0
          %v2685 = vpop.f32.mrf.mxu0
          %v2686 = vadd.f32 0.0, %v2685
          %v2687 = vpop.f32.mrf.mxu0
          %2688 = vmatprep.mubr.bf16.mxu0 0
          %2689 = vmatmul.mubr.bf16.gmra.mxu0 %v1901
          %v2690 = vpop.f32.mrf.mxu0
          %v2691 = vadd.f32 0.0, %v2690
          %v2692 = vpop.f32.mrf.mxu0
          %v2693 = vpop.f32.mrf.mxu0
          %v2694 = vadd.f32 0.0, %v2693
          %v2695 = vpop.f32.mrf.mxu0
          %2696 = vmatprep.mubr.bf16.mxu0 0
          %2697 = vmatmul.mubr.bf16.gmra.mxu0 %v1904
          %v2698 = vpop.f32.mrf.mxu0
          %v2699 = vadd.f32 0.0, %v2698
          %v2700 = vpop.f32.mrf.mxu0
          %v2701 = vpop.f32.mrf.mxu0
          %v2702 = vadd.f32 0.0, %v2701
          %v2703 = vpop.f32.mrf.mxu0
          %2704 = vmatprep.mubr.bf16.mxu0 0
          %2705 = vmatmul.mubr.bf16.gmra.mxu0 %v1907
          %v2706 = vpop.f32.mrf.mxu0
          %v2707 = vadd.f32 0.0, %v2706
          %v2708 = vpop.f32.mrf.mxu0
          %v2709 = vpop.f32.mrf.mxu0
          %v2710 = vadd.f32 0.0, %v2709
          %v2711 = vpop.f32.mrf.mxu0
          %2712 = vmatprep.mubr.bf16.mxu0 0
          %2713 = vmatmul.mubr.bf16.gmra.mxu0 %v1910
          %v2714 = vpop.f32.mrf.mxu0
          %v2715 = vadd.f32 0.0, %v2714
          %v2716 = vpop.f32.mrf.mxu0
          %v2717 = vpop.f32.mrf.mxu0
          %v2718 = vadd.f32 0.0, %v2717
          %v2719 = vpop.f32.mrf.mxu0
          %2720 = vmatprep.mubr.bf16.mxu0 0
          %2721 = vmatmul.mubr.bf16.gmra.mxu0 %v1913
          %v2722 = vpop.f32.mrf.mxu0
          %v2723 = vadd.f32 0.0, %v2722
          %v2724 = vpop.f32.mrf.mxu0
          %v2725 = vpop.f32.mrf.mxu0
          %v2726 = vadd.f32 0.0, %v2725
          %v2727 = vpop.f32.mrf.mxu0
          %2728 = vmatprep.mubr.bf16.mxu0 0
          %2729 = vmatmul.mubr.bf16.gmra.mxu0 %v1916
          %v2730 = vpop.f32.mrf.mxu0
          %v2731 = vadd.f32 0.0, %v2730
          %v2732 = vpop.f32.mrf.mxu0
          %v2733 = vpop.f32.mrf.mxu0
          %v2734 = vadd.f32 0.0, %v2733
          %v2735 = vpop.f32.mrf.mxu0
          %2736 = vmatprep.mubr.bf16.mxu0 0
          %2737 = vmatmul.mubr.bf16.gmra.mxu0 %v1919
          %v2738 = vpop.f32.mrf.mxu0
          %v2739 = vadd.f32 0.0, %v2738
          %v2740 = vpop.f32.mrf.mxu0
          %v2741 = vpop.f32.mrf.mxu0
          %v2742 = vadd.f32 0.0, %v2741
          %v2743 = vpop.f32.mrf.mxu0
          %2744 = vmatprep.mubr.bf16.mxu0 0
          %2745 = vmatmul.mubr.bf16.gmra.mxu0 %v1922
          %v2746 = vpop.f32.mrf.mxu0
          %v2747 = vadd.f32 0.0, %v2746
          %v2748 = vpop.f32.mrf.mxu0
          %v2749 = vpop.f32.mrf.mxu0
          %v2750 = vadd.f32 0.0, %v2749
          %v2751 = vpop.f32.mrf.mxu0
          %2752 = vmatprep.mubr.bf16.mxu0 0
          %2753 = vmatmul.mubr.bf16.gmra.mxu0 %v1925
          %v2754 = vpop.f32.mrf.mxu0
          %v2755 = vadd.f32 0.0, %v2754
          %v2756 = vpop.f32.mrf.mxu0
          %v2757 = vpop.f32.mrf.mxu0
          %v2758 = vadd.f32 0.0, %v2757
          %v2759 = vpop.f32.mrf.mxu0
          %2760 = vmatprep.mubr.bf16.mxu0 0
          %2761 = vmatmul.mubr.bf16.gmra.mxu0 %v1928
          %v2762 = vpop.f32.mrf.mxu0
          %v2763 = vadd.f32 0.0, %v2762
          %v2764 = vpop.f32.mrf.mxu0
          %v2765 = vpop.f32.mrf.mxu0
          %v2766 = vadd.f32 0.0, %v2765
          %v2767 = vpop.f32.mrf.mxu0
          %2768 = vmatprep.mubr.bf16.mxu0 0
          %2769 = vmatmul.mubr.bf16.gmra.mxu0 %v1931
          %v2770 = vpop.f32.mrf.mxu0
          %v2771 = vadd.f32 0.0, %v2770
          %v2772 = vpop.f32.mrf.mxu0
          %v2773 = vpop.f32.mrf.mxu0
          %v2774 = vadd.f32 0.0, %v2773
          %v2775 = vpop.f32.mrf.mxu0
          %2776 = vmatprep.mubr.bf16.mxu0 0
          %2777 = vmatmul.mubr.bf16.gmra.mxu0 %v1934
          %v2778 = vpop.f32.mrf.mxu0
          %v2779 = vadd.f32 0.0, %v2778
          %v2780 = vpop.f32.mrf.mxu0
          %v2781 = vpop.f32.mrf.mxu0
          %v2782 = vadd.f32 0.0, %v2781
          %v2783 = vpop.f32.mrf.mxu0
          %2784 = vmatprep.mubr.bf16.mxu0 0
          %2785 = vmatmul.mubr.bf16.gmra.mxu0 %v1937
          %v2786 = vpop.f32.mrf.mxu0
          %v2787 = vadd.f32 0.0, %v2786
          %v2788 = vpop.f32.mrf.mxu0
          %v2789 = vpop.f32.mrf.mxu0
          %v2790 = vadd.f32 0.0, %v2789
          %v2791 = vpop.f32.mrf.mxu0
          %2792 = vmatprep.mubr.bf16.mxu0 0
          %2793 = vmatmul.mubr.bf16.gmra.mxu0 %v1940
          %v2794 = vpop.f32.mrf.mxu0
          %v2795 = vadd.f32 0.0, %v2794
          %v2796 = vpop.f32.mrf.mxu0
          %v2797 = vpop.f32.mrf.mxu0
          %v2798 = vadd.f32 0.0, %v2797
          %v2799 = vpop.f32.mrf.mxu0
          %2800 = vmatprep.mubr.bf16.mxu0 0
          %2801 = vmatmul.mubr.bf16.gmra.mxu0 %v1943
          %v2802 = vpop.f32.mrf.mxu0
          %v2803 = vadd.f32 0.0, %v2802
          %v2804 = vpop.f32.mrf.mxu0
          %v2805 = vpop.f32.mrf.mxu0
          %v2806 = vadd.f32 0.0, %v2805
          %v2807 = vpop.f32.mrf.mxu0
          %2808 = vmatprep.mubr.bf16.mxu0 0
          %2809 = vmatmul.mubr.bf16.gmra.mxu0 %v1946
          %v2810 = vpop.f32.mrf.mxu0
          %v2811 = vadd.f32 0.0, %v2810
          %v2812 = vpop.f32.mrf.mxu0
          %v2813 = vpop.f32.mrf.mxu0
          %v2814 = vadd.f32 0.0, %v2813
          %v2815 = vpop.f32.mrf.mxu0
          %2816 = vdwg.mxu0
          %vm2865 = vcmask 1045504
          %v2866 = vrot.slane %v2627, 2
          %v2867 = vrot.slane %v2630, 2
          %v2868 = vsel %vm2865, %v2866, %v2867
          %v2869 = vrot.slane %v2635, 2
          %v2870 = vsel %vm2865, %v2867, %v2869
          %v2871 = vrot.slane %v2638, 2
          %v2872 = vrot.slane %v2643, 2
          %v2873 = vsel %vm2865, %v2871, %v2872
          %v2874 = vrot.slane %v2646, 2
          %v2875 = vsel %vm2865, %v2872, %v2874
          %v2876 = vrot.slane %v2651, 2
          %v2877 = vrot.slane %v2654, 2
          %v2878 = vsel %vm2865, %v2876, %v2877
          %v2879 = vrot.slane %v2659, 2
          %v2880 = vsel %vm2865, %v2877, %v2879
          %v2881 = vrot.slane %v2662, 2
          %v2882 = vrot.slane %v2667, 2
          %v2883 = vsel %vm2865, %v2881, %v2882
          %v2884 = vrot.slane %v2670, 2
          %v2885 = vsel %vm2865, %v2882, %v2884
          %v2886 = vrot.slane %v2675, 2
          %v2887 = vrot.slane %v2678, 2
          %v2888 = vsel %vm2865, %v2886, %v2887
          %v2889 = vrot.slane %v2683, 2
          %v2890 = vsel %vm2865, %v2887, %v2889
          %v2891 = vrot.slane %v2686, 2
          %v2892 = vrot.slane %v2691, 2
          %v2893 = vsel %vm2865, %v2891, %v2892
          %v2894 = vrot.slane %v2694, 2
          %v2895 = vsel %vm2865, %v2892, %v2894
          %v2896 = vrot.slane %v2699, 2
          %v2897 = vrot.slane %v2702, 2
          %v2898 = vsel %vm2865, %v2896, %v2897
          %v2899 = vrot.slane %v2707, 2
          %v2900 = vsel %vm2865, %v2897, %v2899
          %v2901 = vrot.slane %v2710, 2
          %v2902 = vrot.slane %v2715, 2
          %v2903 = vsel %vm2865, %v2901, %v2902
          %v2904 = vrot.slane %v2718, 2
          %v2905 = vsel %vm2865, %v2902, %v2904
          %v2906 = vrot.slane %v2723, 2
          %v2907 = vrot.slane %v2726, 2
          %v2908 = vsel %vm2865, %v2906, %v2907
          %v2909 = vrot.slane %v2731, 2
          %v2910 = vsel %vm2865, %v2907, %v2909
          %v2911 = vrot.slane %v2734, 2
          %v2912 = vrot.slane %v2739, 2
          %v2913 = vsel %vm2865, %v2911, %v2912
          %v2914 = vrot.slane %v2742, 2
          %v2915 = vsel %vm2865, %v2912, %v2914
          %v2916 = vrot.slane %v2747, 2
          %v2917 = vrot.slane %v2750, 2
          %v2918 = vsel %vm2865, %v2916, %v2917
          %v2919 = vrot.slane %v2755, 2
          %v2920 = vsel %vm2865, %v2917, %v2919
          %v2921 = vrot.slane %v2758, 2
          %v2922 = vrot.slane %v2763, 2
          %v2923 = vsel %vm2865, %v2921, %v2922
          %v2924 = vrot.slane %v2766, 2
          %v2925 = vsel %vm2865, %v2922, %v2924
          %v2926 = vrot.slane %v2771, 2
          %v2927 = vrot.slane %v2774, 2
          %v2928 = vsel %vm2865, %v2926, %v2927
          %v2929 = vrot.slane %v2779, 2
          %v2930 = vsel %vm2865, %v2927, %v2929
          %v2931 = vrot.slane %v2782, 2
          %v2932 = vrot.slane %v2787, 2
          %v2933 = vsel %vm2865, %v2931, %v2932
          %v2934 = vrot.slane %v2790, 2
          %v2935 = vsel %vm2865, %v2932, %v2934
          %v2936 = vrot.slane %v2795, 2
          %v2937 = vrot.slane %v2798, 2
          %v2938 = vsel %vm2865, %v2936, %v2937
          %v2939 = vrot.slane %v2803, 2
          %v2940 = vsel %vm2865, %v2937, %v2939
          %v2941 = vrot.slane %v2806, 2
          %v2942 = vrot.slane %v2811, 2
          %v2943 = vsel %vm2865, %v2941, %v2942
          %v2944 = vrot.slane %v2814, 2
          %v2945 = vsel %vm2865, %v2942, %v2944
          %v2978 = vadd.f32 %v2555, %v2868
          %v2979 = vadd.f32 %v2556, %v2870
          %v2980 = vadd.f32 %v2557, %v2873
          %v2981 = vadd.f32 %v2558, %v2875
          %v2982 = vadd.f32 %v2559, %v2878
          %v2983 = vadd.f32 %v2560, %v2880
          %v2984 = vadd.f32 %v2561, %v2883
          %v2985 = vadd.f32 %v2562, %v2885
          %v2986 = vadd.f32 %v2563, %v2888
          %v2987 = vadd.f32 %v2564, %v2890
          %v2988 = vadd.f32 %v2565, %v2893
          %v2989 = vadd.f32 %v2566, %v2895
          %v2990 = vadd.f32 %v2567, %v2898
          %v2991 = vadd.f32 %v2568, %v2900
          %v2992 = vadd.f32 %v2569, %v2903
          %v2993 = vadd.f32 %v2570, %v2905
          %v2994 = vadd.f32 %v2571, %v2908
          %v2995 = vadd.f32 %v2572, %v2910
          %v2996 = vadd.f32 %v2573, %v2913
          %v2997 = vadd.f32 %v2574, %v2915
          %v2998 = vadd.f32 %v2575, %v2918
          %v2999 = vadd.f32 %v2576, %v2920
          %v3000 = vadd.f32 %v2577, %v2923
          %v3001 = vadd.f32 %v2578, %v2925
          %v3002 = vadd.f32 %v2579, %v2928
          %v3003 = vadd.f32 %v2580, %v2930
          %v3004 = vadd.f32 %v2581, %v2933
          %v3005 = vadd.f32 %v2582, %v2935
          %v3006 = vadd.f32 %v2583, %v2938
          %v3007 = vadd.f32 %v2584, %v2940
          %v3008 = vadd.f32 %v2585, %v2943
          %v3009 = vadd.f32 %v2586, %v2945
          %v3010 = vld [vmem:[#allocation2] sm:$0xff]
          %v3011 = vld [vmem:[#allocation2 + $0x8] sm:$0xff]
          %v3012 = vld [vmem:[#allocation2 + $0x10] sm:$0xff]
          %v3013 = vld [vmem:[#allocation2 + $0x18] sm:$0xff]
          %v3014 = vld [vmem:[#allocation2 + $0x20] sm:$0xff]
          %v3015 = vld [vmem:[#allocation2 + $0x28] sm:$0xff]
          %v3016 = vld [vmem:[#allocation2 + $0x30] sm:$0xff]
          %v3017 = vld [vmem:[#allocation2 + $0x38] sm:$0xff]
          %v3018 = vld [vmem:[#allocation2 + $0x40] sm:$0xff]
          %v3019 = vld [vmem:[#allocation2 + $0x48] sm:$0xff]
          %v3020 = vld [vmem:[#allocation2 + $0x50] sm:$0xff]
          %v3021 = vld [vmem:[#allocation2 + $0x58] sm:$0xff]
          %v3022 = vld [vmem:[#allocation2 + $0x60] sm:$0xff]
          %v3023 = vld [vmem:[#allocation2 + $0x68] sm:$0xff]
          %v3024 = vld [vmem:[#allocation2 + $0x70] sm:$0xff]
          %v3025 = vld [vmem:[#allocation2 + $0x78] sm:$0xff]
          %v3026 = vld [vmem:[#allocation2 + $0x80] sm:$0xff]
          %v3027 = vld [vmem:[#allocation2 + $0x88] sm:$0xff]
          %v3028 = vld [vmem:[#allocation2 + $0x90] sm:$0xff]
          %v3029 = vld [vmem:[#allocation2 + $0x98] sm:$0xff]
          %v3030 = vld [vmem:[#allocation2 + $0xa0] sm:$0xff]
          %v3031 = vld [vmem:[#allocation2 + $0xa8] sm:$0xff]
          %v3032 = vld [vmem:[#allocation2 + $0xb0] sm:$0xff]
          %v3033 = vld [vmem:[#allocation2 + $0xb8] sm:$0xff]
          %v3034 = vld [vmem:[#allocation2 + $0xc0] sm:$0xff]
          %v3035 = vld [vmem:[#allocation2 + $0xc8] sm:$0xff]
          %v3036 = vld [vmem:[#allocation2 + $0xd0] sm:$0xff]
          %v3037 = vld [vmem:[#allocation2 + $0xd8] sm:$0xff]
          %v3038 = vld [vmem:[#allocation2 + $0xe0] sm:$0xff]
          %v3039 = vld [vmem:[#allocation2 + $0xe8] sm:$0xff]
          %v3040 = vld [vmem:[#allocation2 + $0xf0] sm:$0xff]
          %v3041 = vld [vmem:[#allocation2 + $0xf8] sm:$0xff]
          %v3042 = vadd.f32 %v3010, %v2978
          %v3043 = vadd.f32 %v3011, %v2979
          %v3044 = vadd.f32 %v3012, %v2980
          %v3045 = vadd.f32 %v3013, %v2981
          %v3046 = vadd.f32 %v3014, %v2982
          %v3047 = vadd.f32 %v3015, %v2983
          %v3048 = vadd.f32 %v3016, %v2984
          %v3049 = vadd.f32 %v3017, %v2985
          %v3050 = vadd.f32 %v3018, %v2986
          %v3051 = vadd.f32 %v3019, %v2987
          %v3052 = vadd.f32 %v3020, %v2988
          %v3053 = vadd.f32 %v3021, %v2989
          %v3054 = vadd.f32 %v3022, %v2990
          %v3055 = vadd.f32 %v3023, %v2991
          %v3056 = vadd.f32 %v3024, %v2992
          %v3057 = vadd.f32 %v3025, %v2993
          %v3058 = vadd.f32 %v3026, %v2994
          %v3059 = vadd.f32 %v3027, %v2995
          %v3060 = vadd.f32 %v3028, %v2996
          %v3061 = vadd.f32 %v3029, %v2997
          %v3062 = vadd.f32 %v3030, %v2998
          %v3063 = vadd.f32 %v3031, %v2999
          %v3064 = vadd.f32 %v3032, %v3000
          %v3065 = vadd.f32 %v3033, %v3001
          %v3066 = vadd.f32 %v3034, %v3002
          %v3067 = vadd.f32 %v3035, %v3003
          %v3068 = vadd.f32 %v3036, %v3004
          %v3069 = vadd.f32 %v3037, %v3005
          %v3070 = vadd.f32 %v3038, %v3006
          %v3071 = vadd.f32 %v3039, %v3007
          %v3072 = vadd.f32 %v3040, %v3008
          %v3073 = vadd.f32 %v3041, %v3009
          %vm3074 = vcmask 523264
          %3075 = vst.msk [vmem:[#allocation2] sm:$0xff] %vm3074, %v3042
          %3076 = vst.msk [vmem:[#allocation2 + $0x8] sm:$0xff] %vm3074, %v3043
          %3077 = vst.msk [vmem:[#allocation2 + $0x10] sm:$0xff] %vm3074, %v3044
          %3078 = vst.msk [vmem:[#allocation2 + $0x18] sm:$0xff] %vm3074, %v3045
          %3079 = vst.msk [vmem:[#allocation2 + $0x20] sm:$0xff] %vm3074, %v3046
          %3080 = vst.msk [vmem:[#allocation2 + $0x28] sm:$0xff] %vm3074, %v3047
          %3081 = vst.msk [vmem:[#allocation2 + $0x30] sm:$0xff] %vm3074, %v3048
          %3082 = vst.msk [vmem:[#allocation2 + $0x38] sm:$0xff] %vm3074, %v3049
          %3083 = vst.msk [vmem:[#allocation2 + $0x40] sm:$0xff] %vm3074, %v3050
          %3084 = vst.msk [vmem:[#allocation2 + $0x48] sm:$0xff] %vm3074, %v3051
          %3085 = vst.msk [vmem:[#allocation2 + $0x50] sm:$0xff] %vm3074, %v3052
          %3086 = vst.msk [vmem:[#allocation2 + $0x58] sm:$0xff] %vm3074, %v3053
          %3087 = vst.msk [vmem:[#allocation2 + $0x60] sm:$0xff] %vm3074, %v3054
          %3088 = vst.msk [vmem:[#allocation2 + $0x68] sm:$0xff] %vm3074, %v3055
          %3089 = vst.msk [vmem:[#allocation2 + $0x70] sm:$0xff] %vm3074, %v3056
          %3090 = vst.msk [vmem:[#allocation2 + $0x78] sm:$0xff] %vm3074, %v3057
          %3091 = vst.msk [vmem:[#allocation2 + $0x80] sm:$0xff] %vm3074, %v3058
          %3092 = vst.msk [vmem:[#allocation2 + $0x88] sm:$0xff] %vm3074, %v3059
          %3093 = vst.msk [vmem:[#allocation2 + $0x90] sm:$0xff] %vm3074, %v3060
          %3094 = vst.msk [vmem:[#allocation2 + $0x98] sm:$0xff] %vm3074, %v3061
          %3095 = vst.msk [vmem:[#allocation2 + $0xa0] sm:$0xff] %vm3074, %v3062
          %3096 = vst.msk [vmem:[#allocation2 + $0xa8] sm:$0xff] %vm3074, %v3063
          %3097 = vst.msk [vmem:[#allocation2 + $0xb0] sm:$0xff] %vm3074, %v3064
          %3098 = vst.msk [vmem:[#allocation2 + $0xb8] sm:$0xff] %vm3074, %v3065
          %3099 = vst.msk [vmem:[#allocation2 + $0xc0] sm:$0xff] %vm3074, %v3066
          %3100 = vst.msk [vmem:[#allocation2 + $0xc8] sm:$0xff] %vm3074, %v3067
          %3101 = vst.msk [vmem:[#allocation2 + $0xd0] sm:$0xff] %vm3074, %v3068
          %3102 = vst.msk [vmem:[#allocation2 + $0xd8] sm:$0xff] %vm3074, %v3069
          %3103 = vst.msk [vmem:[#allocation2 + $0xe0] sm:$0xff] %vm3074, %v3070
          %3104 = vst.msk [vmem:[#allocation2 + $0xe8] sm:$0xff] %vm3074, %v3071
          %3105 = vst.msk [vmem:[#allocation2 + $0xf0] sm:$0xff] %vm3074, %v3072
          %3106 = vst.msk [vmem:[#allocation2 + $0xf8] sm:$0xff] %vm3074, %v3073
        $region44: #{tpu_custom_call.1} parent=35 // pred_fallthru
          _
        %p3107 = scmp.eq.s32.totalorder %s25, 2
        // Predicated region
        $region45: #{tpu_custom_call.1} parent=35 // pred_check
          %p3108 = pneg %p3107
        $region46: #{tpu_custom_call.1} parent=35 // pred_check_branch
          %3110 = sbr.rel (%p3108) target = $region48
        $region47: #{tpu_custom_call.1} parent=35 // pred_region
          %s3111 = scalar_lea.vmem %s251, 24
          %v3112 = vld [vmem:[%s3111] sm:$0xf]
          %v3113 = vld [vmem:[%s3111 + $0x4] sm:$0xf]
          %v3114 = vld [vmem:[%s3111 + $0x8] sm:$0xf]
          %v3115 = vld [vmem:[%s3111 + $0xc] sm:$0xf]
          %v3116 = vld [vmem:[%s3111 + $0x10] sm:$0xf]
          %v3117 = vld [vmem:[%s3111 + $0x14] sm:$0xf]
          %v3118 = vld [vmem:[%s3111 + $0x18] sm:$0xf]
          %v3119 = vld [vmem:[%s3111 + $0x1c] sm:$0xf]
          %v3120 = vld [vmem:[%s3111 + $0x20] sm:$0xf]
          %v3121 = vld [vmem:[%s3111 + $0x24] sm:$0xf]
          %v3122 = vld [vmem:[%s3111 + $0x28] sm:$0xf]
          %v3123 = vld [vmem:[%s3111 + $0x2c] sm:$0xf]
          %v3124 = vld [vmem:[%s3111 + $0x30] sm:$0xf]
          %v3125 = vld [vmem:[%s3111 + $0x34] sm:$0xf]
          %v3126 = vld [vmem:[%s3111 + $0x38] sm:$0xf]
          %v3127 = vld [vmem:[%s3111 + $0x3c] sm:$0xf]
          %v3128 = vld [vmem:[%s3111 + $0x40] sm:$0xf]
          %v3129 = vld [vmem:[%s3111 + $0x44] sm:$0xf]
          %v3130 = vld [vmem:[%s3111 + $0x48] sm:$0xf]
          %v3131 = vld [vmem:[%s3111 + $0x4c] sm:$0xf]
          %v3132 = vld [vmem:[%s3111 + $0x50] sm:$0xf]
          %v3133 = vld [vmem:[%s3111 + $0x54] sm:$0xf]
          %v3134 = vld [vmem:[%s3111 + $0x58] sm:$0xf]
          %v3135 = vld [vmem:[%s3111 + $0x5c] sm:$0xf]
          %v3136 = vld [vmem:[%s3111 + $0x60] sm:$0xf]
          %v3137 = vld [vmem:[%s3111 + $0x64] sm:$0xf]
          %v3138 = vld [vmem:[%s3111 + $0x68] sm:$0xf]
          %v3139 = vld [vmem:[%s3111 + $0x6c] sm:$0xf]
          %v3140 = vld [vmem:[%s3111 + $0x70] sm:$0xf]
          %v3141 = vld [vmem:[%s3111 + $0x74] sm:$0xf]
          %v3142 = vld [vmem:[%s3111 + $0x78] sm:$0xf]
          %v3143 = vld [vmem:[%s3111 + $0x7c] sm:$0xf]
          %v3144 = vld [vmem:[%s3111 + $0x80] sm:$0xf]
          %v3145 = vld [vmem:[%s3111 + $0x84] sm:$0xf]
          %v3146 = vld [vmem:[%s3111 + $0x88] sm:$0xf]
          %v3147 = vld [vmem:[%s3111 + $0x8c] sm:$0xf]
          %v3148 = vld [vmem:[%s3111 + $0x90] sm:$0xf]
          %v3149 = vld [vmem:[%s3111 + $0x94] sm:$0xf]
          %v3150 = vld [vmem:[%s3111 + $0x98] sm:$0xf]
          %v3151 = vld [vmem:[%s3111 + $0x9c] sm:$0xf]
          %v3152 = vld [vmem:[%s3111 + $0xa0] sm:$0xf]
          %v3153 = vld [vmem:[%s3111 + $0xa4] sm:$0xf]
          %v3154 = vld [vmem:[%s3111 + $0xa8] sm:$0xf]
          %v3155 = vld [vmem:[%s3111 + $0xac] sm:$0xf]
          %v3156 = vld [vmem:[%s3111 + $0xb0] sm:$0xf]
          %v3157 = vld [vmem:[%s3111 + $0xb4] sm:$0xf]
          %v3158 = vld [vmem:[%s3111 + $0xb8] sm:$0xf]
          %v3159 = vld [vmem:[%s3111 + $0xbc] sm:$0xf]
          %s3160 = scalar_lea.vmem %s255, 12
          %v3161 = vld [vmem:[%s3160] sm:$0x3]
          %v3210 = vunpack.c.l.b16 %v3112
          %v3211 = vunpack.c.l.b16 %v3113
          %v3212 = vunpack.c.l.b16 %v3114
          %v3213 = vunpack.c.l.b16 %v3115
          %v3214 = vunpack.c.l.b16 %v3116
          %v3215 = vunpack.c.l.b16 %v3117
          %v3216 = vunpack.c.l.b16 %v3118
          %v3217 = vunpack.c.l.b16 %v3119
          %v3218 = vunpack.c.l.b16 %v3120
          %v3219 = vunpack.c.l.b16 %v3121
          %v3220 = vunpack.c.l.b16 %v3122
          %v3221 = vunpack.c.l.b16 %v3123
          %v3222 = vunpack.c.l.b16 %v3124
          %v3223 = vunpack.c.l.b16 %v3125
          %v3224 = vunpack.c.l.b16 %v3126
          %v3225 = vunpack.c.l.b16 %v3127
          %v3226 = vunpack.c.l.b16 %v3128
          %v3227 = vunpack.c.l.b16 %v3129
          %v3228 = vunpack.c.l.b16 %v3130
          %v3229 = vunpack.c.l.b16 %v3131
          %v3230 = vunpack.c.l.b16 %v3132
          %v3231 = vunpack.c.l.b16 %v3133
          %v3232 = vunpack.c.l.b16 %v3134
          %v3233 = vunpack.c.l.b16 %v3135
          %v3234 = vunpack.c.l.b16 %v3136
          %v3235 = vunpack.c.l.b16 %v3137
          %v3236 = vunpack.c.l.b16 %v3138
          %v3237 = vunpack.c.l.b16 %v3139
          %v3238 = vunpack.c.l.b16 %v3140
          %v3239 = vunpack.c.l.b16 %v3141
          %v3240 = vunpack.c.l.b16 %v3142
          %v3241 = vunpack.c.l.b16 %v3143
          %v3242 = vunpack.c.l.b16 %v3144
          %v3243 = vunpack.c.l.b16 %v3145
          %v3244 = vunpack.c.l.b16 %v3146
          %v3245 = vunpack.c.l.b16 %v3147
          %v3246 = vunpack.c.l.b16 %v3148
          %v3247 = vunpack.c.l.b16 %v3149
          %v3248 = vunpack.c.l.b16 %v3150
          %v3249 = vunpack.c.l.b16 %v3151
          %v3250 = vunpack.c.l.b16 %v3152
          %v3251 = vunpack.c.l.b16 %v3153
          %v3252 = vunpack.c.l.b16 %v3154
          %v3253 = vunpack.c.l.b16 %v3155
          %v3254 = vunpack.c.l.b16 %v3156
          %v3255 = vunpack.c.l.b16 %v3157
          %v3256 = vunpack.c.l.b16 %v3158
          %v3257 = vunpack.c.l.b16 %v3159
          %v3258 = vpack.c.b16 %v3211, %v3210
          %v3259 = vpack.c.b16 %v3213, %v3212
          %v3260 = vpack.c.b16 %v3215, %v3214
          %v3261 = vpack.c.b16 %v3217, %v3216
          %v3262 = vpack.c.b16 %v3219, %v3218
          %v3263 = vpack.c.b16 %v3221, %v3220
          %v3264 = vpack.c.b16 %v3223, %v3222
          %v3265 = vpack.c.b16 %v3225, %v3224
          %v3266 = vpack.c.b16 %v3227, %v3226
          %v3267 = vpack.c.b16 %v3229, %v3228
          %v3268 = vpack.c.b16 %v3231, %v3230
          %v3269 = vpack.c.b16 %v3233, %v3232
          %v3270 = vpack.c.b16 %v3235, %v3234
          %v3271 = vpack.c.b16 %v3237, %v3236
          %v3272 = vpack.c.b16 %v3239, %v3238
          %v3273 = vpack.c.b16 %v3241, %v3240
          %v3274 = vpack.c.b16 %v3243, %v3242
          %v3275 = vpack.c.b16 %v3245, %v3244
          %v3276 = vpack.c.b16 %v3247, %v3246
          %v3277 = vpack.c.b16 %v3249, %v3248
          %v3278 = vpack.c.b16 %v3251, %v3250
          %v3279 = vpack.c.b16 %v3253, %v3252
          %v3280 = vpack.c.b16 %v3255, %v3254
          %v3281 = vpack.c.b16 %v3257, %v3256
          %vm3282 = vcmask 23552
          %v3284 = vsel %vm3282, %v3258, 0
          %v3287 = vsel %vm3282, %v3259, 0
          %v3290 = vsel %vm3282, %v3260, 0
          %v3293 = vsel %vm3282, %v3261, 0
          %v3296 = vsel %vm3282, %v3262, 0
          %v3299 = vsel %vm3282, %v3263, 0
          %v3302 = vsel %vm3282, %v3264, 0
          %v3305 = vsel %vm3282, %v3265, 0
          %v3308 = vsel %vm3282, %v3266, 0
          %v3311 = vsel %vm3282, %v3267, 0
          %v3314 = vsel %vm3282, %v3268, 0
          %v3317 = vsel %vm3282, %v3269, 0
          %v3320 = vsel %vm3282, %v3270, 0
          %v3323 = vsel %vm3282, %v3271, 0
          %v3326 = vsel %vm3282, %v3272, 0
          %v3329 = vsel %vm3282, %v3273, 0
          %v3332 = vsel %vm3282, %v3274, 0
          %v3335 = vsel %vm3282, %v3275, 0
          %v3338 = vsel %vm3282, %v3276, 0
          %v3341 = vsel %vm3282, %v3277, 0
          %v3344 = vsel %vm3282, %v3278, 0
          %v3347 = vsel %vm3282, %v3279, 0
          %v3350 = vsel %vm3282, %v3280, 0
          %v3353 = vsel %vm3282, %v3281, 0
          %vm3355 = vcmask 1040384
          %vm3356 = vcmask 1041408
          %v3357 = vsel %vm3355, 4294967295, 65535
          %v3358 = vsel %vm3356, %v3357, 0
          %v3360 = vand.u32 %v3161, %v3358
          %3362 = vmatprep.subr.bf16.mxu0 0
          %3363 = vmatpush1.bf16.msra.mxu0 0
          %3364 = vmatprep.subr.bf16.mxu0 0
          %3365 = vmatpush1.bf16.msra.mxu0 0
          %3366 = vmatprep.subr.bf16.mxu0 0
          %3367 = vmatpush1.bf16.msra.mxu0 0
          %3368 = vmatprep.subr.bf16.mxu0 0
          %3369 = vmatpush1.bf16.msra.mxu0 0
          %3370 = vmatprep.subr.bf16.mxu0 0
          %3371 = vmatpush1.bf16.msra.mxu0 0
          %3372 = vmatprep.subr.bf16.mxu0 0
          %3373 = vmatpush1.bf16.msra.mxu0 0
          %3374 = vmatprep.subr.bf16.mxu0 0
          %3375 = vmatpush1.bf16.msra.mxu0 0
          %3376 = vmatprep.subr.bf16.mxu0 0
          %3377 = vmatpush1.bf16.msra.mxu0 %v3360
          %3378 = vmatprep.subr.bf16.mxu0 0
          %3379 = vmatpush2.bf16.msra.mxu0 0
          %3380 = vmatprep.subr.bf16.mxu0 0
          %3381 = vmatpush2.bf16.msra.mxu0 0
          %3382 = vmatprep.subr.bf16.mxu0 0
          %3383 = vmatpush2.bf16.msra.mxu0 0
          %3384 = vmatprep.subr.bf16.mxu0 0
          %3385 = vmatpush2.bf16.msra.mxu0 0
          %3386 = vmatprep.subr.bf16.mxu0 0
          %3387 = vmatpush2.bf16.msra.mxu0 0
          %3388 = vmatprep.subr.bf16.mxu0 0
          %3389 = vmatpush2.bf16.msra.mxu0 0
          %3390 = vmatprep.subr.bf16.mxu0 0
          %3391 = vmatpush2.bf16.msra.mxu0 0
          %3392 = vmatprep.subr.bf16.mxu0 0
          %3393 = vmatpush2.bf16.msra.mxu0 0
          %3394 = vmatprep.mubr.bf16.mxu0 0
          %3395 = vmatmul.mubr.bf16.gmra.mxu0 %v3284
          %v3396 = vpop.f32.mrf.mxu0
          %v3397 = vadd.f32 0.0, %v3396
          %v3398 = vpop.f32.mrf.mxu0
          %v3399 = vpop.f32.mrf.mxu0
          %v3400 = vadd.f32 0.0, %v3399
          %v3401 = vpop.f32.mrf.mxu0
          %3402 = vmatprep.mubr.bf16.mxu0 0
          %3403 = vmatmul.mubr.bf16.gmra.mxu0 %v3287
          %v3404 = vpop.f32.mrf.mxu0
          %v3405 = vpop.f32.mrf.mxu0
          %v3406 = vpop.f32.mrf.mxu0
          %v3407 = vadd.f32 0.0, %v3406
          %v3408 = vpop.f32.mrf.mxu0
          %3409 = vmatprep.mubr.bf16.mxu0 0
          %3410 = vmatmul.mubr.bf16.gmra.mxu0 %v3290
          %v3411 = vpop.f32.mrf.mxu0
          %v3412 = vadd.f32 0.0, %v3411
          %v3413 = vpop.f32.mrf.mxu0
          %v3414 = vpop.f32.mrf.mxu0
          %v3415 = vpop.f32.mrf.mxu0
          %3416 = vmatprep.mubr.bf16.mxu0 0
          %3417 = vmatmul.mubr.bf16.gmra.mxu0 %v3293
          %v3418 = vpop.f32.mrf.mxu0
          %v3419 = vadd.f32 0.0, %v3418
          %v3420 = vpop.f32.mrf.mxu0
          %v3421 = vpop.f32.mrf.mxu0
          %v3422 = vadd.f32 0.0, %v3421
          %v3423 = vpop.f32.mrf.mxu0
          %3424 = vmatprep.mubr.bf16.mxu0 0
          %3425 = vmatmul.mubr.bf16.gmra.mxu0 %v3296
          %v3426 = vpop.f32.mrf.mxu0
          %v3427 = vpop.f32.mrf.mxu0
          %v3428 = vpop.f32.mrf.mxu0
          %v3429 = vadd.f32 0.0, %v3428
          %v3430 = vpop.f32.mrf.mxu0
          %3431 = vmatprep.mubr.bf16.mxu0 0
          %3432 = vmatmul.mubr.bf16.gmra.mxu0 %v3299
          %v3433 = vpop.f32.mrf.mxu0
          %v3434 = vadd.f32 0.0, %v3433
          %v3435 = vpop.f32.mrf.mxu0
          %v3436 = vpop.f32.mrf.mxu0
          %v3437 = vpop.f32.mrf.mxu0
          %3438 = vmatprep.mubr.bf16.mxu0 0
          %3439 = vmatmul.mubr.bf16.gmra.mxu0 %v3302
          %v3440 = vpop.f32.mrf.mxu0
          %v3441 = vadd.f32 0.0, %v3440
          %v3442 = vpop.f32.mrf.mxu0
          %v3443 = vpop.f32.mrf.mxu0
          %v3444 = vadd.f32 0.0, %v3443
          %v3445 = vpop.f32.mrf.mxu0
          %3446 = vmatprep.mubr.bf16.mxu0 0
          %3447 = vmatmul.mubr.bf16.gmra.mxu0 %v3305
          %v3448 = vpop.f32.mrf.mxu0
          %v3449 = vpop.f32.mrf.mxu0
          %v3450 = vpop.f32.mrf.mxu0
          %v3451 = vadd.f32 0.0, %v3450
          %v3452 = vpop.f32.mrf.mxu0
          %3453 = vmatprep.mubr.bf16.mxu0 0
          %3454 = vmatmul.mubr.bf16.gmra.mxu0 %v3308
          %v3455 = vpop.f32.mrf.mxu0
          %v3456 = vadd.f32 0.0, %v3455
          %v3457 = vpop.f32.mrf.mxu0
          %v3458 = vpop.f32.mrf.mxu0
          %v3459 = vpop.f32.mrf.mxu0
          %3460 = vmatprep.mubr.bf16.mxu0 0
          %3461 = vmatmul.mubr.bf16.gmra.mxu0 %v3311
          %v3462 = vpop.f32.mrf.mxu0
          %v3463 = vadd.f32 0.0, %v3462
          %v3464 = vpop.f32.mrf.mxu0
          %v3465 = vpop.f32.mrf.mxu0
          %v3466 = vadd.f32 0.0, %v3465
          %v3467 = vpop.f32.mrf.mxu0
          %3468 = vmatprep.mubr.bf16.mxu0 0
          %3469 = vmatmul.mubr.bf16.gmra.mxu0 %v3314
          %v3470 = vpop.f32.mrf.mxu0
          %v3471 = vpop.f32.mrf.mxu0
          %v3472 = vpop.f32.mrf.mxu0
          %v3473 = vadd.f32 0.0, %v3472
          %v3474 = vpop.f32.mrf.mxu0
          %3475 = vmatprep.mubr.bf16.mxu0 0
          %3476 = vmatmul.mubr.bf16.gmra.mxu0 %v3317
          %v3477 = vpop.f32.mrf.mxu0
          %v3478 = vadd.f32 0.0, %v3477
          %v3479 = vpop.f32.mrf.mxu0
          %v3480 = vpop.f32.mrf.mxu0
          %v3481 = vpop.f32.mrf.mxu0
          %3482 = vmatprep.mubr.bf16.mxu0 0
          %3483 = vmatmul.mubr.bf16.gmra.mxu0 %v3320
          %v3484 = vpop.f32.mrf.mxu0
          %v3485 = vadd.f32 0.0, %v3484
          %v3486 = vpop.f32.mrf.mxu0
          %v3487 = vpop.f32.mrf.mxu0
          %v3488 = vadd.f32 0.0, %v3487
          %v3489 = vpop.f32.mrf.mxu0
          %3490 = vmatprep.mubr.bf16.mxu0 0
          %3491 = vmatmul.mubr.bf16.gmra.mxu0 %v3323
          %v3492 = vpop.f32.mrf.mxu0
          %v3493 = vpop.f32.mrf.mxu0
          %v3494 = vpop.f32.mrf.mxu0
          %v3495 = vadd.f32 0.0, %v3494
          %v3496 = vpop.f32.mrf.mxu0
          %3497 = vmatprep.mubr.bf16.mxu0 0
          %3498 = vmatmul.mubr.bf16.gmra.mxu0 %v3326
          %v3499 = vpop.f32.mrf.mxu0
          %v3500 = vadd.f32 0.0, %v3499
          %v3501 = vpop.f32.mrf.mxu0
          %v3502 = vpop.f32.mrf.mxu0
          %v3503 = vpop.f32.mrf.mxu0
          %3504 = vmatprep.mubr.bf16.mxu0 0
          %3505 = vmatmul.mubr.bf16.gmra.mxu0 %v3329
          %v3506 = vpop.f32.mrf.mxu0
          %v3507 = vadd.f32 0.0, %v3506
          %v3508 = vpop.f32.mrf.mxu0
          %v3509 = vpop.f32.mrf.mxu0
          %v3510 = vadd.f32 0.0, %v3509
          %v3511 = vpop.f32.mrf.mxu0
          %3512 = vmatprep.mubr.bf16.mxu0 0
          %3513 = vmatmul.mubr.bf16.gmra.mxu0 %v3332
          %v3514 = vpop.f32.mrf.mxu0
          %v3515 = vpop.f32.mrf.mxu0
          %v3516 = vpop.f32.mrf.mxu0
          %v3517 = vadd.f32 0.0, %v3516
          %v3518 = vpop.f32.mrf.mxu0
          %3519 = vmatprep.mubr.bf16.mxu0 0
          %3520 = vmatmul.mubr.bf16.gmra.mxu0 %v3335
          %v3521 = vpop.f32.mrf.mxu0
          %v3522 = vadd.f32 0.0, %v3521
          %v3523 = vpop.f32.mrf.mxu0
          %v3524 = vpop.f32.mrf.mxu0
          %v3525 = vpop.f32.mrf.mxu0
          %3526 = vmatprep.mubr.bf16.mxu0 0
          %3527 = vmatmul.mubr.bf16.gmra.mxu0 %v3338
          %v3528 = vpop.f32.mrf.mxu0
          %v3529 = vadd.f32 0.0, %v3528
          %v3530 = vpop.f32.mrf.mxu0
          %v3531 = vpop.f32.mrf.mxu0
          %v3532 = vadd.f32 0.0, %v3531
          %v3533 = vpop.f32.mrf.mxu0
          %3534 = vmatprep.mubr.bf16.mxu0 0
          %3535 = vmatmul.mubr.bf16.gmra.mxu0 %v3341
          %v3536 = vpop.f32.mrf.mxu0
          %v3537 = vpop.f32.mrf.mxu0
          %v3538 = vpop.f32.mrf.mxu0
          %v3539 = vadd.f32 0.0, %v3538
          %v3540 = vpop.f32.mrf.mxu0
          %3541 = vmatprep.mubr.bf16.mxu0 0
          %3542 = vmatmul.mubr.bf16.gmra.mxu0 %v3344
          %v3543 = vpop.f32.mrf.mxu0
          %v3544 = vadd.f32 0.0, %v3543
          %v3545 = vpop.f32.mrf.mxu0
          %v3546 = vpop.f32.mrf.mxu0
          %v3547 = vpop.f32.mrf.mxu0
          %3548 = vmatprep.mubr.bf16.mxu0 0
          %3549 = vmatmul.mubr.bf16.gmra.mxu0 %v3347
          %v3550 = vpop.f32.mrf.mxu0
          %v3551 = vadd.f32 0.0, %v3550
          %v3552 = vpop.f32.mrf.mxu0
          %v3553 = vpop.f32.mrf.mxu0
          %v3554 = vadd.f32 0.0, %v3553
          %v3555 = vpop.f32.mrf.mxu0
          %3556 = vmatprep.mubr.bf16.mxu0 0
          %3557 = vmatmul.mubr.bf16.gmra.mxu0 %v3350
          %v3558 = vpop.f32.mrf.mxu0
          %v3559 = vpop.f32.mrf.mxu0
          %v3560 = vpop.f32.mrf.mxu0
          %v3561 = vadd.f32 0.0, %v3560
          %v3562 = vpop.f32.mrf.mxu0
          %3563 = vmatprep.mubr.bf16.mxu0 0
          %3564 = vmatmul.mubr.bf16.gmra.mxu0 %v3353
          %v3565 = vpop.f32.mrf.mxu0
          %v3566 = vadd.f32 0.0, %v3565
          %v3567 = vpop.f32.mrf.mxu0
          %v3568 = vpop.f32.mrf.mxu0
          %v3569 = vpop.f32.mrf.mxu0
          %3570 = vdwg.mxu0
          %s3571 = scalar_lea.vmem %s255, 14
          %v3572 = vld [vmem:[%s3571] sm:$0x3]
          %v3574 = vand.u32 %v3572, %v3358
          %3576 = vmatprep.subr.bf16.mxu0 0
          %3577 = vmatpush1.bf16.msra.mxu0 0
          %3578 = vmatprep.subr.bf16.mxu0 0
          %3579 = vmatpush1.bf16.msra.mxu0 0
          %3580 = vmatprep.subr.bf16.mxu0 0
          %3581 = vmatpush1.bf16.msra.mxu0 0
          %3582 = vmatprep.subr.bf16.mxu0 0
          %3583 = vmatpush1.bf16.msra.mxu0 0
          %3584 = vmatprep.subr.bf16.mxu0 0
          %3585 = vmatpush1.bf16.msra.mxu0 0
          %3586 = vmatprep.subr.bf16.mxu0 0
          %3587 = vmatpush1.bf16.msra.mxu0 0
          %3588 = vmatprep.subr.bf16.mxu0 0
          %3589 = vmatpush1.bf16.msra.mxu0 0
          %3590 = vmatprep.subr.bf16.mxu0 0
          %3591 = vmatpush1.bf16.msra.mxu0 %v3574
          %3592 = vmatprep.subr.bf16.mxu0 0
          %3593 = vmatpush2.bf16.msra.mxu0 0
          %3594 = vmatprep.subr.bf16.mxu0 0
          %3595 = vmatpush2.bf16.msra.mxu0 0
          %3596 = vmatprep.subr.bf16.mxu0 0
          %3597 = vmatpush2.bf16.msra.mxu0 0
          %3598 = vmatprep.subr.bf16.mxu0 0
          %3599 = vmatpush2.bf16.msra.mxu0 0
          %3600 = vmatprep.subr.bf16.mxu0 0
          %3601 = vmatpush2.bf16.msra.mxu0 0
          %3602 = vmatprep.subr.bf16.mxu0 0
          %3603 = vmatpush2.bf16.msra.mxu0 0
          %3604 = vmatprep.subr.bf16.mxu0 0
          %3605 = vmatpush2.bf16.msra.mxu0 0
          %3606 = vmatprep.subr.bf16.mxu0 0
          %3607 = vmatpush2.bf16.msra.mxu0 0
          %3608 = vmatprep.mubr.bf16.mxu0 0
          %3609 = vmatmul.mubr.bf16.gmra.mxu0 %v3284
          %v3610 = vpop.f32.mrf.mxu0
          %v3611 = vadd.f32 0.0, %v3610
          %v3612 = vpop.f32.mrf.mxu0
          %v3613 = vpop.f32.mrf.mxu0
          %v3614 = vadd.f32 0.0, %v3613
          %v3615 = vpop.f32.mrf.mxu0
          %3616 = vmatprep.mubr.bf16.mxu0 0
          %3617 = vmatmul.mubr.bf16.gmra.mxu0 %v3287
          %v3618 = vpop.f32.mrf.mxu0
          %v3619 = vadd.f32 0.0, %v3618
          %v3620 = vpop.f32.mrf.mxu0
          %v3621 = vpop.f32.mrf.mxu0
          %v3622 = vadd.f32 0.0, %v3621
          %v3623 = vpop.f32.mrf.mxu0
          %3624 = vmatprep.mubr.bf16.mxu0 0
          %3625 = vmatmul.mubr.bf16.gmra.mxu0 %v3290
          %v3626 = vpop.f32.mrf.mxu0
          %v3627 = vadd.f32 0.0, %v3626
          %v3628 = vpop.f32.mrf.mxu0
          %v3629 = vpop.f32.mrf.mxu0
          %v3630 = vadd.f32 0.0, %v3629
          %v3631 = vpop.f32.mrf.mxu0
          %3632 = vmatprep.mubr.bf16.mxu0 0
          %3633 = vmatmul.mubr.bf16.gmra.mxu0 %v3293
          %v3634 = vpop.f32.mrf.mxu0
          %v3635 = vadd.f32 0.0, %v3634
          %v3636 = vpop.f32.mrf.mxu0
          %v3637 = vpop.f32.mrf.mxu0
          %v3638 = vadd.f32 0.0, %v3637
          %v3639 = vpop.f32.mrf.mxu0
          %3640 = vmatprep.mubr.bf16.mxu0 0
          %3641 = vmatmul.mubr.bf16.gmra.mxu0 %v3296
          %v3642 = vpop.f32.mrf.mxu0
          %v3643 = vadd.f32 0.0, %v3642
          %v3644 = vpop.f32.mrf.mxu0
          %v3645 = vpop.f32.mrf.mxu0
          %v3646 = vadd.f32 0.0, %v3645
          %v3647 = vpop.f32.mrf.mxu0
          %3648 = vmatprep.mubr.bf16.mxu0 0
          %3649 = vmatmul.mubr.bf16.gmra.mxu0 %v3299
          %v3650 = vpop.f32.mrf.mxu0
          %v3651 = vadd.f32 0.0, %v3650
          %v3652 = vpop.f32.mrf.mxu0
          %v3653 = vpop.f32.mrf.mxu0
          %v3654 = vadd.f32 0.0, %v3653
          %v3655 = vpop.f32.mrf.mxu0
          %3656 = vmatprep.mubr.bf16.mxu0 0
          %3657 = vmatmul.mubr.bf16.gmra.mxu0 %v3302
          %v3658 = vpop.f32.mrf.mxu0
          %v3659 = vadd.f32 0.0, %v3658
          %v3660 = vpop.f32.mrf.mxu0
          %v3661 = vpop.f32.mrf.mxu0
          %v3662 = vadd.f32 0.0, %v3661
          %v3663 = vpop.f32.mrf.mxu0
          %3664 = vmatprep.mubr.bf16.mxu0 0
          %3665 = vmatmul.mubr.bf16.gmra.mxu0 %v3305
          %v3666 = vpop.f32.mrf.mxu0
          %v3667 = vadd.f32 0.0, %v3666
          %v3668 = vpop.f32.mrf.mxu0
          %v3669 = vpop.f32.mrf.mxu0
          %v3670 = vadd.f32 0.0, %v3669
          %v3671 = vpop.f32.mrf.mxu0
          %3672 = vmatprep.mubr.bf16.mxu0 0
          %3673 = vmatmul.mubr.bf16.gmra.mxu0 %v3308
          %v3674 = vpop.f32.mrf.mxu0
          %v3675 = vadd.f32 0.0, %v3674
          %v3676 = vpop.f32.mrf.mxu0
          %v3677 = vpop.f32.mrf.mxu0
          %v3678 = vadd.f32 0.0, %v3677
          %v3679 = vpop.f32.mrf.mxu0
          %3680 = vmatprep.mubr.bf16.mxu0 0
          %3681 = vmatmul.mubr.bf16.gmra.mxu0 %v3311
          %v3682 = vpop.f32.mrf.mxu0
          %v3683 = vadd.f32 0.0, %v3682
          %v3684 = vpop.f32.mrf.mxu0
          %v3685 = vpop.f32.mrf.mxu0
          %v3686 = vadd.f32 0.0, %v3685
          %v3687 = vpop.f32.mrf.mxu0
          %3688 = vmatprep.mubr.bf16.mxu0 0
          %3689 = vmatmul.mubr.bf16.gmra.mxu0 %v3314
          %v3690 = vpop.f32.mrf.mxu0
          %v3691 = vadd.f32 0.0, %v3690
          %v3692 = vpop.f32.mrf.mxu0
          %v3693 = vpop.f32.mrf.mxu0
          %v3694 = vadd.f32 0.0, %v3693
          %v3695 = vpop.f32.mrf.mxu0
          %3696 = vmatprep.mubr.bf16.mxu0 0
          %3697 = vmatmul.mubr.bf16.gmra.mxu0 %v3317
          %v3698 = vpop.f32.mrf.mxu0
          %v3699 = vadd.f32 0.0, %v3698
          %v3700 = vpop.f32.mrf.mxu0
          %v3701 = vpop.f32.mrf.mxu0
          %v3702 = vadd.f32 0.0, %v3701
          %v3703 = vpop.f32.mrf.mxu0
          %3704 = vmatprep.mubr.bf16.mxu0 0
          %3705 = vmatmul.mubr.bf16.gmra.mxu0 %v3320
          %v3706 = vpop.f32.mrf.mxu0
          %v3707 = vadd.f32 0.0, %v3706
          %v3708 = vpop.f32.mrf.mxu0
          %v3709 = vpop.f32.mrf.mxu0
          %v3710 = vadd.f32 0.0, %v3709
          %v3711 = vpop.f32.mrf.mxu0
          %3712 = vmatprep.mubr.bf16.mxu0 0
          %3713 = vmatmul.mubr.bf16.gmra.mxu0 %v3323
          %v3714 = vpop.f32.mrf.mxu0
          %v3715 = vadd.f32 0.0, %v3714
          %v3716 = vpop.f32.mrf.mxu0
          %v3717 = vpop.f32.mrf.mxu0
          %v3718 = vadd.f32 0.0, %v3717
          %v3719 = vpop.f32.mrf.mxu0
          %3720 = vmatprep.mubr.bf16.mxu0 0
          %3721 = vmatmul.mubr.bf16.gmra.mxu0 %v3326
          %v3722 = vpop.f32.mrf.mxu0
          %v3723 = vadd.f32 0.0, %v3722
          %v3724 = vpop.f32.mrf.mxu0
          %v3725 = vpop.f32.mrf.mxu0
          %v3726 = vadd.f32 0.0, %v3725
          %v3727 = vpop.f32.mrf.mxu0
          %3728 = vmatprep.mubr.bf16.mxu0 0
          %3729 = vmatmul.mubr.bf16.gmra.mxu0 %v3329
          %v3730 = vpop.f32.mrf.mxu0
          %v3731 = vadd.f32 0.0, %v3730
          %v3732 = vpop.f32.mrf.mxu0
          %v3733 = vpop.f32.mrf.mxu0
          %v3734 = vadd.f32 0.0, %v3733
          %v3735 = vpop.f32.mrf.mxu0
          %3736 = vmatprep.mubr.bf16.mxu0 0
          %3737 = vmatmul.mubr.bf16.gmra.mxu0 %v3332
          %v3738 = vpop.f32.mrf.mxu0
          %v3739 = vadd.f32 0.0, %v3738
          %v3740 = vpop.f32.mrf.mxu0
          %v3741 = vpop.f32.mrf.mxu0
          %v3742 = vadd.f32 0.0, %v3741
          %v3743 = vpop.f32.mrf.mxu0
          %3744 = vmatprep.mubr.bf16.mxu0 0
          %3745 = vmatmul.mubr.bf16.gmra.mxu0 %v3335
          %v3746 = vpop.f32.mrf.mxu0
          %v3747 = vadd.f32 0.0, %v3746
          %v3748 = vpop.f32.mrf.mxu0
          %v3749 = vpop.f32.mrf.mxu0
          %v3750 = vadd.f32 0.0, %v3749
          %v3751 = vpop.f32.mrf.mxu0
          %3752 = vmatprep.mubr.bf16.mxu0 0
          %3753 = vmatmul.mubr.bf16.gmra.mxu0 %v3338
          %v3754 = vpop.f32.mrf.mxu0
          %v3755 = vadd.f32 0.0, %v3754
          %v3756 = vpop.f32.mrf.mxu0
          %v3757 = vpop.f32.mrf.mxu0
          %v3758 = vadd.f32 0.0, %v3757
          %v3759 = vpop.f32.mrf.mxu0
          %3760 = vmatprep.mubr.bf16.mxu0 0
          %3761 = vmatmul.mubr.bf16.gmra.mxu0 %v3341
          %v3762 = vpop.f32.mrf.mxu0
          %v3763 = vadd.f32 0.0, %v3762
          %v3764 = vpop.f32.mrf.mxu0
          %v3765 = vpop.f32.mrf.mxu0
          %v3766 = vadd.f32 0.0, %v3765
          %v3767 = vpop.f32.mrf.mxu0
          %3768 = vmatprep.mubr.bf16.mxu0 0
          %3769 = vmatmul.mubr.bf16.gmra.mxu0 %v3344
          %v3770 = vpop.f32.mrf.mxu0
          %v3771 = vadd.f32 0.0, %v3770
          %v3772 = vpop.f32.mrf.mxu0
          %v3773 = vpop.f32.mrf.mxu0
          %v3774 = vadd.f32 0.0, %v3773
          %v3775 = vpop.f32.mrf.mxu0
          %3776 = vmatprep.mubr.bf16.mxu0 0
          %3777 = vmatmul.mubr.bf16.gmra.mxu0 %v3347
          %v3778 = vpop.f32.mrf.mxu0
          %v3779 = vadd.f32 0.0, %v3778
          %v3780 = vpop.f32.mrf.mxu0
          %v3781 = vpop.f32.mrf.mxu0
          %v3782 = vadd.f32 0.0, %v3781
          %v3783 = vpop.f32.mrf.mxu0
          %3784 = vmatprep.mubr.bf16.mxu0 0
          %3785 = vmatmul.mubr.bf16.gmra.mxu0 %v3350
          %v3786 = vpop.f32.mrf.mxu0
          %v3787 = vadd.f32 0.0, %v3786
          %v3788 = vpop.f32.mrf.mxu0
          %v3789 = vpop.f32.mrf.mxu0
          %v3790 = vadd.f32 0.0, %v3789
          %v3791 = vpop.f32.mrf.mxu0
          %3792 = vmatprep.mubr.bf16.mxu0 0
          %3793 = vmatmul.mubr.bf16.gmra.mxu0 %v3353
          %v3794 = vpop.f32.mrf.mxu0
          %v3795 = vadd.f32 0.0, %v3794
          %v3796 = vpop.f32.mrf.mxu0
          %v3797 = vpop.f32.mrf.mxu0
          %v3798 = vadd.f32 0.0, %v3797
          %v3799 = vpop.f32.mrf.mxu0
          %3800 = vdwg.mxu0
          %vm3849 = vcmask 1046528
          %v3850 = vrot.slane %v3611, 1
          %v3851 = vrot.slane %v3614, 1
          %v3852 = vsel %vm3849, %v3850, %v3851
          %v3853 = vrot.slane %v3619, 1
          %v3854 = vsel %vm3849, %v3851, %v3853
          %v3855 = vrot.slane %v3622, 1
          %v3856 = vrot.slane %v3627, 1
          %v3857 = vsel %vm3849, %v3855, %v3856
          %v3858 = vrot.slane %v3630, 1
          %v3859 = vsel %vm3849, %v3856, %v3858
          %v3860 = vrot.slane %v3635, 1
          %v3861 = vrot.slane %v3638, 1
          %v3862 = vsel %vm3849, %v3860, %v3861
          %v3863 = vrot.slane %v3643, 1
          %v3864 = vsel %vm3849, %v3861, %v3863
          %v3865 = vrot.slane %v3646, 1
          %v3866 = vrot.slane %v3651, 1
          %v3867 = vsel %vm3849, %v3865, %v3866
          %v3868 = vrot.slane %v3654, 1
          %v3869 = vsel %vm3849, %v3866, %v3868
          %v3870 = vrot.slane %v3659, 1
          %v3871 = vrot.slane %v3662, 1
          %v3872 = vsel %vm3849, %v3870, %v3871
          %v3873 = vrot.slane %v3667, 1
          %v3874 = vsel %vm3849, %v3871, %v3873
          %v3875 = vrot.slane %v3670, 1
          %v3876 = vrot.slane %v3675, 1
          %v3877 = vsel %vm3849, %v3875, %v3876
          %v3878 = vrot.slane %v3678, 1
          %v3879 = vsel %vm3849, %v3876, %v3878
          %v3880 = vrot.slane %v3683, 1
          %v3881 = vrot.slane %v3686, 1
          %v3882 = vsel %vm3849, %v3880, %v3881
          %v3883 = vrot.slane %v3691, 1
          %v3884 = vsel %vm3849, %v3881, %v3883
          %v3885 = vrot.slane %v3694, 1
          %v3886 = vrot.slane %v3699, 1
          %v3887 = vsel %vm3849, %v3885, %v3886
          %v3888 = vrot.slane %v3702, 1
          %v3889 = vsel %vm3849, %v3886, %v3888
          %v3890 = vrot.slane %v3707, 1
          %v3891 = vrot.slane %v3710, 1
          %v3892 = vsel %vm3849, %v3890, %v3891
          %v3893 = vrot.slane %v3715, 1
          %v3894 = vsel %vm3849, %v3891, %v3893
          %v3895 = vrot.slane %v3718, 1
          %v3896 = vrot.slane %v3723, 1
          %v3897 = vsel %vm3849, %v3895, %v3896
          %v3898 = vrot.slane %v3726, 1
          %v3899 = vsel %vm3849, %v3896, %v3898
          %v3900 = vrot.slane %v3731, 1
          %v3901 = vrot.slane %v3734, 1
          %v3902 = vsel %vm3849, %v3900, %v3901
          %v3903 = vrot.slane %v3739, 1
          %v3904 = vsel %vm3849, %v3901, %v3903
          %v3905 = vrot.slane %v3742, 1
          %v3906 = vrot.slane %v3747, 1
          %v3907 = vsel %vm3849, %v3905, %v3906
          %v3908 = vrot.slane %v3750, 1
          %v3909 = vsel %vm3849, %v3906, %v3908
          %v3910 = vrot.slane %v3755, 1
          %v3911 = vrot.slane %v3758, 1
          %v3912 = vsel %vm3849, %v3910, %v3911
          %v3913 = vrot.slane %v3763, 1
          %v3914 = vsel %vm3849, %v3911, %v3913
          %v3915 = vrot.slane %v3766, 1
          %v3916 = vrot.slane %v3771, 1
          %v3917 = vsel %vm3849, %v3915, %v3916
          %v3918 = vrot.slane %v3774, 1
          %v3919 = vsel %vm3849, %v3916, %v3918
          %v3920 = vrot.slane %v3779, 1
          %v3921 = vrot.slane %v3782, 1
          %v3922 = vsel %vm3849, %v3920, %v3921
          %v3923 = vrot.slane %v3787, 1
          %v3924 = vsel %vm3849, %v3921, %v3923
          %v3925 = vrot.slane %v3790, 1
          %v3926 = vrot.slane %v3795, 1
          %v3927 = vsel %vm3849, %v3925, %v3926
          %v3928 = vrot.slane %v3798, 1
          %v3929 = vsel %vm3849, %v3926, %v3928
          %v3962 = vadd.f32 %v3397, %v3852
          %v3963 = vadd.f32 %v3400, %v3854
          %v3964 = vadd.f32 %v3407, %v3857
          %v3965 = vadd.f32 %v3412, %v3859
          %v3966 = vadd.f32 %v3419, %v3862
          %v3967 = vadd.f32 %v3422, %v3864
          %v3968 = vadd.f32 %v3429, %v3867
          %v3969 = vadd.f32 %v3434, %v3869
          %v3970 = vadd.f32 %v3441, %v3872
          %v3971 = vadd.f32 %v3444, %v3874
          %v3972 = vadd.f32 %v3451, %v3877
          %v3973 = vadd.f32 %v3456, %v3879
          %v3974 = vadd.f32 %v3463, %v3882
          %v3975 = vadd.f32 %v3466, %v3884
          %v3976 = vadd.f32 %v3473, %v3887
          %v3977 = vadd.f32 %v3478, %v3889
          %v3978 = vadd.f32 %v3485, %v3892
          %v3979 = vadd.f32 %v3488, %v3894
          %v3980 = vadd.f32 %v3495, %v3897
          %v3981 = vadd.f32 %v3500, %v3899
          %v3982 = vadd.f32 %v3507, %v3902
          %v3983 = vadd.f32 %v3510, %v3904
          %v3984 = vadd.f32 %v3517, %v3907
          %v3985 = vadd.f32 %v3522, %v3909
          %v3986 = vadd.f32 %v3529, %v3912
          %v3987 = vadd.f32 %v3532, %v3914
          %v3988 = vadd.f32 %v3539, %v3917
          %v3989 = vadd.f32 %v3544, %v3919
          %v3990 = vadd.f32 %v3551, %v3922
          %v3991 = vadd.f32 %v3554, %v3924
          %v3992 = vadd.f32 %v3561, %v3927
          %v3993 = vadd.f32 %v3566, %v3929
          %s3994 = scalar_lea.vmem %s255, 16
          %v3995 = vld [vmem:[%s3994] sm:$0x3]
          %v3997 = vand.u32 %v3995, %v3358
          %3999 = vmatprep.subr.bf16.mxu0 0
          %4000 = vmatpush1.bf16.msra.mxu0 0
          %4001 = vmatprep.subr.bf16.mxu0 0
          %4002 = vmatpush1.bf16.msra.mxu0 0
          %4003 = vmatprep.subr.bf16.mxu0 0
          %4004 = vmatpush1.bf16.msra.mxu0 0
          %4005 = vmatprep.subr.bf16.mxu0 0
          %4006 = vmatpush1.bf16.msra.mxu0 0
          %4007 = vmatprep.subr.bf16.mxu0 0
          %4008 = vmatpush1.bf16.msra.mxu0 0
          %4009 = vmatprep.subr.bf16.mxu0 0
          %4010 = vmatpush1.bf16.msra.mxu0 0
          %4011 = vmatprep.subr.bf16.mxu0 0
          %4012 = vmatpush1.bf16.msra.mxu0 0
          %4013 = vmatprep.subr.bf16.mxu0 0
          %4014 = vmatpush1.bf16.msra.mxu0 %v3997
          %4015 = vmatprep.subr.bf16.mxu0 0
          %4016 = vmatpush2.bf16.msra.mxu0 0
          %4017 = vmatprep.subr.bf16.mxu0 0
          %4018 = vmatpush2.bf16.msra.mxu0 0
          %4019 = vmatprep.subr.bf16.mxu0 0
          %4020 = vmatpush2.bf16.msra.mxu0 0
          %4021 = vmatprep.subr.bf16.mxu0 0
          %4022 = vmatpush2.bf16.msra.mxu0 0
          %4023 = vmatprep.subr.bf16.mxu0 0
          %4024 = vmatpush2.bf16.msra.mxu0 0
          %4025 = vmatprep.subr.bf16.mxu0 0
          %4026 = vmatpush2.bf16.msra.mxu0 0
          %4027 = vmatprep.subr.bf16.mxu0 0
          %4028 = vmatpush2.bf16.msra.mxu0 0
          %4029 = vmatprep.subr.bf16.mxu0 0
          %4030 = vmatpush2.bf16.msra.mxu0 0
          %4031 = vmatprep.mubr.bf16.mxu0 0
          %4032 = vmatmul.mubr.bf16.gmra.mxu0 %v3284
          %v4033 = vpop.f32.mrf.mxu0
          %v4034 = vadd.f32 0.0, %v4033
          %v4035 = vpop.f32.mrf.mxu0
          %v4036 = vpop.f32.mrf.mxu0
          %v4037 = vadd.f32 0.0, %v4036
          %v4038 = vpop.f32.mrf.mxu0
          %4039 = vmatprep.mubr.bf16.mxu0 0
          %4040 = vmatmul.mubr.bf16.gmra.mxu0 %v3287
          %v4041 = vpop.f32.mrf.mxu0
          %v4042 = vadd.f32 0.0, %v4041
          %v4043 = vpop.f32.mrf.mxu0
          %v4044 = vpop.f32.mrf.mxu0
          %v4045 = vadd.f32 0.0, %v4044
          %v4046 = vpop.f32.mrf.mxu0
          %4047 = vmatprep.mubr.bf16.mxu0 0
          %4048 = vmatmul.mubr.bf16.gmra.mxu0 %v3290
          %v4049 = vpop.f32.mrf.mxu0
          %v4050 = vadd.f32 0.0, %v4049
          %v4051 = vpop.f32.mrf.mxu0
          %v4052 = vpop.f32.mrf.mxu0
          %v4053 = vadd.f32 0.0, %v4052
          %v4054 = vpop.f32.mrf.mxu0
          %4055 = vmatprep.mubr.bf16.mxu0 0
          %4056 = vmatmul.mubr.bf16.gmra.mxu0 %v3293
          %v4057 = vpop.f32.mrf.mxu0
          %v4058 = vadd.f32 0.0, %v4057
          %v4059 = vpop.f32.mrf.mxu0
          %v4060 = vpop.f32.mrf.mxu0
          %v4061 = vadd.f32 0.0, %v4060
          %v4062 = vpop.f32.mrf.mxu0
          %4063 = vmatprep.mubr.bf16.mxu0 0
          %4064 = vmatmul.mubr.bf16.gmra.mxu0 %v3296
          %v4065 = vpop.f32.mrf.mxu0
          %v4066 = vadd.f32 0.0, %v4065
          %v4067 = vpop.f32.mrf.mxu0
          %v4068 = vpop.f32.mrf.mxu0
          %v4069 = vadd.f32 0.0, %v4068
          %v4070 = vpop.f32.mrf.mxu0
          %4071 = vmatprep.mubr.bf16.mxu0 0
          %4072 = vmatmul.mubr.bf16.gmra.mxu0 %v3299
          %v4073 = vpop.f32.mrf.mxu0
          %v4074 = vadd.f32 0.0, %v4073
          %v4075 = vpop.f32.mrf.mxu0
          %v4076 = vpop.f32.mrf.mxu0
          %v4077 = vadd.f32 0.0, %v4076
          %v4078 = vpop.f32.mrf.mxu0
          %4079 = vmatprep.mubr.bf16.mxu0 0
          %4080 = vmatmul.mubr.bf16.gmra.mxu0 %v3302
          %v4081 = vpop.f32.mrf.mxu0
          %v4082 = vadd.f32 0.0, %v4081
          %v4083 = vpop.f32.mrf.mxu0
          %v4084 = vpop.f32.mrf.mxu0
          %v4085 = vadd.f32 0.0, %v4084
          %v4086 = vpop.f32.mrf.mxu0
          %4087 = vmatprep.mubr.bf16.mxu0 0
          %4088 = vmatmul.mubr.bf16.gmra.mxu0 %v3305
          %v4089 = vpop.f32.mrf.mxu0
          %v4090 = vadd.f32 0.0, %v4089
          %v4091 = vpop.f32.mrf.mxu0
          %v4092 = vpop.f32.mrf.mxu0
          %v4093 = vadd.f32 0.0, %v4092
          %v4094 = vpop.f32.mrf.mxu0
          %4095 = vmatprep.mubr.bf16.mxu0 0
          %4096 = vmatmul.mubr.bf16.gmra.mxu0 %v3308
          %v4097 = vpop.f32.mrf.mxu0
          %v4098 = vadd.f32 0.0, %v4097
          %v4099 = vpop.f32.mrf.mxu0
          %v4100 = vpop.f32.mrf.mxu0
          %v4101 = vadd.f32 0.0, %v4100
          %v4102 = vpop.f32.mrf.mxu0
          %4103 = vmatprep.mubr.bf16.mxu0 0
          %4104 = vmatmul.mubr.bf16.gmra.mxu0 %v3311
          %v4105 = vpop.f32.mrf.mxu0
          %v4106 = vadd.f32 0.0, %v4105
          %v4107 = vpop.f32.mrf.mxu0
          %v4108 = vpop.f32.mrf.mxu0
          %v4109 = vadd.f32 0.0, %v4108
          %v4110 = vpop.f32.mrf.mxu0
          %4111 = vmatprep.mubr.bf16.mxu0 0
          %4112 = vmatmul.mubr.bf16.gmra.mxu0 %v3314
          %v4113 = vpop.f32.mrf.mxu0
          %v4114 = vadd.f32 0.0, %v4113
          %v4115 = vpop.f32.mrf.mxu0
          %v4116 = vpop.f32.mrf.mxu0
          %v4117 = vadd.f32 0.0, %v4116
          %v4118 = vpop.f32.mrf.mxu0
          %4119 = vmatprep.mubr.bf16.mxu0 0
          %4120 = vmatmul.mubr.bf16.gmra.mxu0 %v3317
          %v4121 = vpop.f32.mrf.mxu0
          %v4122 = vadd.f32 0.0, %v4121
          %v4123 = vpop.f32.mrf.mxu0
          %v4124 = vpop.f32.mrf.mxu0
          %v4125 = vadd.f32 0.0, %v4124
          %v4126 = vpop.f32.mrf.mxu0
          %4127 = vmatprep.mubr.bf16.mxu0 0
          %4128 = vmatmul.mubr.bf16.gmra.mxu0 %v3320
          %v4129 = vpop.f32.mrf.mxu0
          %v4130 = vadd.f32 0.0, %v4129
          %v4131 = vpop.f32.mrf.mxu0
          %v4132 = vpop.f32.mrf.mxu0
          %v4133 = vadd.f32 0.0, %v4132
          %v4134 = vpop.f32.mrf.mxu0
          %4135 = vmatprep.mubr.bf16.mxu0 0
          %4136 = vmatmul.mubr.bf16.gmra.mxu0 %v3323
          %v4137 = vpop.f32.mrf.mxu0
          %v4138 = vadd.f32 0.0, %v4137
          %v4139 = vpop.f32.mrf.mxu0
          %v4140 = vpop.f32.mrf.mxu0
          %v4141 = vadd.f32 0.0, %v4140
          %v4142 = vpop.f32.mrf.mxu0
          %4143 = vmatprep.mubr.bf16.mxu0 0
          %4144 = vmatmul.mubr.bf16.gmra.mxu0 %v3326
          %v4145 = vpop.f32.mrf.mxu0
          %v4146 = vadd.f32 0.0, %v4145
          %v4147 = vpop.f32.mrf.mxu0
          %v4148 = vpop.f32.mrf.mxu0
          %v4149 = vadd.f32 0.0, %v4148
          %v4150 = vpop.f32.mrf.mxu0
          %4151 = vmatprep.mubr.bf16.mxu0 0
          %4152 = vmatmul.mubr.bf16.gmra.mxu0 %v3329
          %v4153 = vpop.f32.mrf.mxu0
          %v4154 = vadd.f32 0.0, %v4153
          %v4155 = vpop.f32.mrf.mxu0
          %v4156 = vpop.f32.mrf.mxu0
          %v4157 = vadd.f32 0.0, %v4156
          %v4158 = vpop.f32.mrf.mxu0
          %4159 = vmatprep.mubr.bf16.mxu0 0
          %4160 = vmatmul.mubr.bf16.gmra.mxu0 %v3332
          %v4161 = vpop.f32.mrf.mxu0
          %v4162 = vadd.f32 0.0, %v4161
          %v4163 = vpop.f32.mrf.mxu0
          %v4164 = vpop.f32.mrf.mxu0
          %v4165 = vadd.f32 0.0, %v4164
          %v4166 = vpop.f32.mrf.mxu0
          %4167 = vmatprep.mubr.bf16.mxu0 0
          %4168 = vmatmul.mubr.bf16.gmra.mxu0 %v3335
          %v4169 = vpop.f32.mrf.mxu0
          %v4170 = vadd.f32 0.0, %v4169
          %v4171 = vpop.f32.mrf.mxu0
          %v4172 = vpop.f32.mrf.mxu0
          %v4173 = vadd.f32 0.0, %v4172
          %v4174 = vpop.f32.mrf.mxu0
          %4175 = vmatprep.mubr.bf16.mxu0 0
          %4176 = vmatmul.mubr.bf16.gmra.mxu0 %v3338
          %v4177 = vpop.f32.mrf.mxu0
          %v4178 = vadd.f32 0.0, %v4177
          %v4179 = vpop.f32.mrf.mxu0
          %v4180 = vpop.f32.mrf.mxu0
          %v4181 = vadd.f32 0.0, %v4180
          %v4182 = vpop.f32.mrf.mxu0
          %4183 = vmatprep.mubr.bf16.mxu0 0
          %4184 = vmatmul.mubr.bf16.gmra.mxu0 %v3341
          %v4185 = vpop.f32.mrf.mxu0
          %v4186 = vadd.f32 0.0, %v4185
          %v4187 = vpop.f32.mrf.mxu0
          %v4188 = vpop.f32.mrf.mxu0
          %v4189 = vadd.f32 0.0, %v4188
          %v4190 = vpop.f32.mrf.mxu0
          %4191 = vmatprep.mubr.bf16.mxu0 0
          %4192 = vmatmul.mubr.bf16.gmra.mxu0 %v3344
          %v4193 = vpop.f32.mrf.mxu0
          %v4194 = vadd.f32 0.0, %v4193
          %v4195 = vpop.f32.mrf.mxu0
          %v4196 = vpop.f32.mrf.mxu0
          %v4197 = vadd.f32 0.0, %v4196
          %v4198 = vpop.f32.mrf.mxu0
          %4199 = vmatprep.mubr.bf16.mxu0 0
          %4200 = vmatmul.mubr.bf16.gmra.mxu0 %v3347
          %v4201 = vpop.f32.mrf.mxu0
          %v4202 = vadd.f32 0.0, %v4201
          %v4203 = vpop.f32.mrf.mxu0
          %v4204 = vpop.f32.mrf.mxu0
          %v4205 = vadd.f32 0.0, %v4204
          %v4206 = vpop.f32.mrf.mxu0
          %4207 = vmatprep.mubr.bf16.mxu0 0
          %4208 = vmatmul.mubr.bf16.gmra.mxu0 %v3350
          %v4209 = vpop.f32.mrf.mxu0
          %v4210 = vadd.f32 0.0, %v4209
          %v4211 = vpop.f32.mrf.mxu0
          %v4212 = vpop.f32.mrf.mxu0
          %v4213 = vadd.f32 0.0, %v4212
          %v4214 = vpop.f32.mrf.mxu0
          %4215 = vmatprep.mubr.bf16.mxu0 0
          %4216 = vmatmul.mubr.bf16.gmra.mxu0 %v3353
          %v4217 = vpop.f32.mrf.mxu0
          %v4218 = vadd.f32 0.0, %v4217
          %v4219 = vpop.f32.mrf.mxu0
          %v4220 = vpop.f32.mrf.mxu0
          %v4221 = vadd.f32 0.0, %v4220
          %v4222 = vpop.f32.mrf.mxu0
          %4223 = vdwg.mxu0
          %vm4272 = vcmask 1045504
          %v4273 = vrot.slane %v4034, 2
          %v4274 = vrot.slane %v4037, 2
          %v4275 = vsel %vm4272, %v4273, %v4274
          %v4276 = vrot.slane %v4042, 2
          %v4277 = vsel %vm4272, %v4274, %v4276
          %v4278 = vrot.slane %v4045, 2
          %v4279 = vrot.slane %v4050, 2
          %v4280 = vsel %vm4272, %v4278, %v4279
          %v4281 = vrot.slane %v4053, 2
          %v4282 = vsel %vm4272, %v4279, %v4281
          %v4283 = vrot.slane %v4058, 2
          %v4284 = vrot.slane %v4061, 2
          %v4285 = vsel %vm4272, %v4283, %v4284
          %v4286 = vrot.slane %v4066, 2
          %v4287 = vsel %vm4272, %v4284, %v4286
          %v4288 = vrot.slane %v4069, 2
          %v4289 = vrot.slane %v4074, 2
          %v4290 = vsel %vm4272, %v4288, %v4289
          %v4291 = vrot.slane %v4077, 2
          %v4292 = vsel %vm4272, %v4289, %v4291
          %v4293 = vrot.slane %v4082, 2
          %v4294 = vrot.slane %v4085, 2
          %v4295 = vsel %vm4272, %v4293, %v4294
          %v4296 = vrot.slane %v4090, 2
          %v4297 = vsel %vm4272, %v4294, %v4296
          %v4298 = vrot.slane %v4093, 2
          %v4299 = vrot.slane %v4098, 2
          %v4300 = vsel %vm4272, %v4298, %v4299
          %v4301 = vrot.slane %v4101, 2
          %v4302 = vsel %vm4272, %v4299, %v4301
          %v4303 = vrot.slane %v4106, 2
          %v4304 = vrot.slane %v4109, 2
          %v4305 = vsel %vm4272, %v4303, %v4304
          %v4306 = vrot.slane %v4114, 2
          %v4307 = vsel %vm4272, %v4304, %v4306
          %v4308 = vrot.slane %v4117, 2
          %v4309 = vrot.slane %v4122, 2
          %v4310 = vsel %vm4272, %v4308, %v4309
          %v4311 = vrot.slane %v4125, 2
          %v4312 = vsel %vm4272, %v4309, %v4311
          %v4313 = vrot.slane %v4130, 2
          %v4314 = vrot.slane %v4133, 2
          %v4315 = vsel %vm4272, %v4313, %v4314
          %v4316 = vrot.slane %v4138, 2
          %v4317 = vsel %vm4272, %v4314, %v4316
          %v4318 = vrot.slane %v4141, 2
          %v4319 = vrot.slane %v4146, 2
          %v4320 = vsel %vm4272, %v4318, %v4319
          %v4321 = vrot.slane %v4149, 2
          %v4322 = vsel %vm4272, %v4319, %v4321
          %v4323 = vrot.slane %v4154, 2
          %v4324 = vrot.slane %v4157, 2
          %v4325 = vsel %vm4272, %v4323, %v4324
          %v4326 = vrot.slane %v4162, 2
          %v4327 = vsel %vm4272, %v4324, %v4326
          %v4328 = vrot.slane %v4165, 2
          %v4329 = vrot.slane %v4170, 2
          %v4330 = vsel %vm4272, %v4328, %v4329
          %v4331 = vrot.slane %v4173, 2
          %v4332 = vsel %vm4272, %v4329, %v4331
          %v4333 = vrot.slane %v4178, 2
          %v4334 = vrot.slane %v4181, 2
          %v4335 = vsel %vm4272, %v4333, %v4334
          %v4336 = vrot.slane %v4186, 2
          %v4337 = vsel %vm4272, %v4334, %v4336
          %v4338 = vrot.slane %v4189, 2
          %v4339 = vrot.slane %v4194, 2
          %v4340 = vsel %vm4272, %v4338, %v4339
          %v4341 = vrot.slane %v4197, 2
          %v4342 = vsel %vm4272, %v4339, %v4341
          %v4343 = vrot.slane %v4202, 2
          %v4344 = vrot.slane %v4205, 2
          %v4345 = vsel %vm4272, %v4343, %v4344
          %v4346 = vrot.slane %v4210, 2
          %v4347 = vsel %vm4272, %v4344, %v4346
          %v4348 = vrot.slane %v4213, 2
          %v4349 = vrot.slane %v4218, 2
          %v4350 = vsel %vm4272, %v4348, %v4349
          %v4351 = vrot.slane %v4221, 2
          %v4352 = vsel %vm4272, %v4349, %v4351
          %v4385 = vadd.f32 %v3962, %v4275
          %v4386 = vadd.f32 %v3963, %v4277
          %v4387 = vadd.f32 %v3964, %v4280
          %v4388 = vadd.f32 %v3965, %v4282
          %v4389 = vadd.f32 %v3966, %v4285
          %v4390 = vadd.f32 %v3967, %v4287
          %v4391 = vadd.f32 %v3968, %v4290
          %v4392 = vadd.f32 %v3969, %v4292
          %v4393 = vadd.f32 %v3970, %v4295
          %v4394 = vadd.f32 %v3971, %v4297
          %v4395 = vadd.f32 %v3972, %v4300
          %v4396 = vadd.f32 %v3973, %v4302
          %v4397 = vadd.f32 %v3974, %v4305
          %v4398 = vadd.f32 %v3975, %v4307
          %v4399 = vadd.f32 %v3976, %v4310
          %v4400 = vadd.f32 %v3977, %v4312
          %v4401 = vadd.f32 %v3978, %v4315
          %v4402 = vadd.f32 %v3979, %v4317
          %v4403 = vadd.f32 %v3980, %v4320
          %v4404 = vadd.f32 %v3981, %v4322
          %v4405 = vadd.f32 %v3982, %v4325
          %v4406 = vadd.f32 %v3983, %v4327
          %v4407 = vadd.f32 %v3984, %v4330
          %v4408 = vadd.f32 %v3985, %v4332
          %v4409 = vadd.f32 %v3986, %v4335
          %v4410 = vadd.f32 %v3987, %v4337
          %v4411 = vadd.f32 %v3988, %v4340
          %v4412 = vadd.f32 %v3989, %v4342
          %v4413 = vadd.f32 %v3990, %v4345
          %v4414 = vadd.f32 %v3991, %v4347
          %v4415 = vadd.f32 %v3992, %v4350
          %v4416 = vadd.f32 %v3993, %v4352
          %v4417 = vld [vmem:[#allocation2] sm:$0xff]
          %v4418 = vld [vmem:[#allocation2 + $0x8] sm:$0xff]
          %v4419 = vld [vmem:[#allocation2 + $0x10] sm:$0xff]
          %v4420 = vld [vmem:[#allocation2 + $0x18] sm:$0xff]
          %v4421 = vld [vmem:[#allocation2 + $0x20] sm:$0xff]
          %v4422 = vld [vmem:[#allocation2 + $0x28] sm:$0xff]
          %v4423 = vld [vmem:[#allocation2 + $0x30] sm:$0xff]
          %v4424 = vld [vmem:[#allocation2 + $0x38] sm:$0xff]
          %v4425 = vld [vmem:[#allocation2 + $0x40] sm:$0xff]
          %v4426 = vld [vmem:[#allocation2 + $0x48] sm:$0xff]
          %v4427 = vld [vmem:[#allocation2 + $0x50] sm:$0xff]
          %v4428 = vld [vmem:[#allocation2 + $0x58] sm:$0xff]
          %v4429 = vld [vmem:[#allocation2 + $0x60] sm:$0xff]
          %v4430 = vld [vmem:[#allocation2 + $0x68] sm:$0xff]
          %v4431 = vld [vmem:[#allocation2 + $0x70] sm:$0xff]
          %v4432 = vld [vmem:[#allocation2 + $0x78] sm:$0xff]
          %v4433 = vld [vmem:[#allocation2 + $0x80] sm:$0xff]
          %v4434 = vld [vmem:[#allocation2 + $0x88] sm:$0xff]
          %v4435 = vld [vmem:[#allocation2 + $0x90] sm:$0xff]
          %v4436 = vld [vmem:[#allocation2 + $0x98] sm:$0xff]
          %v4437 = vld [vmem:[#allocation2 + $0xa0] sm:$0xff]
          %v4438 = vld [vmem:[#allocation2 + $0xa8] sm:$0xff]
          %v4439 = vld [vmem:[#allocation2 + $0xb0] sm:$0xff]
          %v4440 = vld [vmem:[#allocation2 + $0xb8] sm:$0xff]
          %v4441 = vld [vmem:[#allocation2 + $0xc0] sm:$0xff]
          %v4442 = vld [vmem:[#allocation2 + $0xc8] sm:$0xff]
          %v4443 = vld [vmem:[#allocation2 + $0xd0] sm:$0xff]
          %v4444 = vld [vmem:[#allocation2 + $0xd8] sm:$0xff]
          %v4445 = vld [vmem:[#allocation2 + $0xe0] sm:$0xff]
          %v4446 = vld [vmem:[#allocation2 + $0xe8] sm:$0xff]
          %v4447 = vld [vmem:[#allocation2 + $0xf0] sm:$0xff]
          %v4448 = vld [vmem:[#allocation2 + $0xf8] sm:$0xff]
          %v4449 = vadd.f32 %v4417, %v4385
          %v4450 = vadd.f32 %v4418, %v4386
          %v4451 = vadd.f32 %v4419, %v4387
          %v4452 = vadd.f32 %v4420, %v4388
          %v4453 = vadd.f32 %v4421, %v4389
          %v4454 = vadd.f32 %v4422, %v4390
          %v4455 = vadd.f32 %v4423, %v4391
          %v4456 = vadd.f32 %v4424, %v4392
          %v4457 = vadd.f32 %v4425, %v4393
          %v4458 = vadd.f32 %v4426, %v4394
          %v4459 = vadd.f32 %v4427, %v4395
          %v4460 = vadd.f32 %v4428, %v4396
          %v4461 = vadd.f32 %v4429, %v4397
          %v4462 = vadd.f32 %v4430, %v4398
          %v4463 = vadd.f32 %v4431, %v4399
          %v4464 = vadd.f32 %v4432, %v4400
          %v4465 = vadd.f32 %v4433, %v4401
          %v4466 = vadd.f32 %v4434, %v4402
          %v4467 = vadd.f32 %v4435, %v4403
          %v4468 = vadd.f32 %v4436, %v4404
          %v4469 = vadd.f32 %v4437, %v4405
          %v4470 = vadd.f32 %v4438, %v4406
          %v4471 = vadd.f32 %v4439, %v4407
          %v4472 = vadd.f32 %v4440, %v4408
          %v4473 = vadd.f32 %v4441, %v4409
          %v4474 = vadd.f32 %v4442, %v4410
          %v4475 = vadd.f32 %v4443, %v4411
          %v4476 = vadd.f32 %v4444, %v4412
          %v4477 = vadd.f32 %v4445, %v4413
          %v4478 = vadd.f32 %v4446, %v4414
          %v4479 = vadd.f32 %v4447, %v4415
          %v4480 = vadd.f32 %v4448, %v4416
          %vm4481 = vcmask 523264
          %4482 = vst.msk [vmem:[#allocation2] sm:$0xff] %vm4481, %v4449
          %4483 = vst.msk [vmem:[#allocation2 + $0x8] sm:$0xff] %vm4481, %v4450
          %4484 = vst.msk [vmem:[#allocation2 + $0x10] sm:$0xff] %vm4481, %v4451
          %4485 = vst.msk [vmem:[#allocation2 + $0x18] sm:$0xff] %vm4481, %v4452
          %4486 = vst.msk [vmem:[#allocation2 + $0x20] sm:$0xff] %vm4481, %v4453
          %4487 = vst.msk [vmem:[#allocation2 + $0x28] sm:$0xff] %vm4481, %v4454
          %4488 = vst.msk [vmem:[#allocation2 + $0x30] sm:$0xff] %vm4481, %v4455
          %4489 = vst.msk [vmem:[#allocation2 + $0x38] sm:$0xff] %vm4481, %v4456
          %4490 = vst.msk [vmem:[#allocation2 + $0x40] sm:$0xff] %vm4481, %v4457
          %4491 = vst.msk [vmem:[#allocation2 + $0x48] sm:$0xff] %vm4481, %v4458
          %4492 = vst.msk [vmem:[#allocation2 + $0x50] sm:$0xff] %vm4481, %v4459
          %4493 = vst.msk [vmem:[#allocation2 + $0x58] sm:$0xff] %vm4481, %v4460
          %4494 = vst.msk [vmem:[#allocation2 + $0x60] sm:$0xff] %vm4481, %v4461
          %4495 = vst.msk [vmem:[#allocation2 + $0x68] sm:$0xff] %vm4481, %v4462
          %4496 = vst.msk [vmem:[#allocation2 + $0x70] sm:$0xff] %vm4481, %v4463
          %4497 = vst.msk [vmem:[#allocation2 + $0x78] sm:$0xff] %vm4481, %v4464
          %4498 = vst.msk [vmem:[#allocation2 + $0x80] sm:$0xff] %vm4481, %v4465
          %4499 = vst.msk [vmem:[#allocation2 + $0x88] sm:$0xff] %vm4481, %v4466
          %4500 = vst.msk [vmem:[#allocation2 + $0x90] sm:$0xff] %vm4481, %v4467
          %4501 = vst.msk [vmem:[#allocation2 + $0x98] sm:$0xff] %vm4481, %v4468
          %4502 = vst.msk [vmem:[#allocation2 + $0xa0] sm:$0xff] %vm4481, %v4469
          %4503 = vst.msk [vmem:[#allocation2 + $0xa8] sm:$0xff] %vm4481, %v4470
          %4504 = vst.msk [vmem:[#allocation2 + $0xb0] sm:$0xff] %vm4481, %v4471
          %4505 = vst.msk [vmem:[#allocation2 + $0xb8] sm:$0xff] %vm4481, %v4472
          %4506 = vst.msk [vmem:[#allocation2 + $0xc0] sm:$0xff] %vm4481, %v4473
          %4507 = vst.msk [vmem:[#allocation2 + $0xc8] sm:$0xff] %vm4481, %v4474
          %4508 = vst.msk [vmem:[#allocation2 + $0xd0] sm:$0xff] %vm4481, %v4475
          %4509 = vst.msk [vmem:[#allocation2 + $0xd8] sm:$0xff] %vm4481, %v4476
          %4510 = vst.msk [vmem:[#allocation2 + $0xe0] sm:$0xff] %vm4481, %v4477
          %4511 = vst.msk [vmem:[#allocation2 + $0xe8] sm:$0xff] %vm4481, %v4478
          %4512 = vst.msk [vmem:[#allocation2 + $0xf0] sm:$0xff] %vm4481, %v4479
          %4513 = vst.msk [vmem:[#allocation2 + $0xf8] sm:$0xff] %vm4481, %v4480
          %v4514 = vld [vmem:[#allocation2] sm:$0xff]
          %v4515 = vld [vmem:[#allocation2 + $0x8] sm:$0xff]
          %v4516 = vld [vmem:[#allocation2 + $0x10] sm:$0xff]
          %v4517 = vld [vmem:[#allocation2 + $0x18] sm:$0xff]
          %v4518 = vld [vmem:[#allocation2 + $0x20] sm:$0xff]
          %v4519 = vld [vmem:[#allocation2 + $0x28] sm:$0xff]
          %v4520 = vld [vmem:[#allocation2 + $0x30] sm:$0xff]
          %v4521 = vld [vmem:[#allocation2 + $0x38] sm:$0xff]
          %v4522 = vld [vmem:[#allocation2 + $0x40] sm:$0xff]
          %v4523 = vld [vmem:[#allocation2 + $0x48] sm:$0xff]
          %v4524 = vld [vmem:[#allocation2 + $0x50] sm:$0xff]
          %v4525 = vld [vmem:[#allocation2 + $0x58] sm:$0xff]
          %v4526 = vld [vmem:[#allocation2 + $0x60] sm:$0xff]
          %v4527 = vld [vmem:[#allocation2 + $0x68] sm:$0xff]
          %v4528 = vld [vmem:[#allocation2 + $0x70] sm:$0xff]
          %v4529 = vld [vmem:[#allocation2 + $0x78] sm:$0xff]
          %v4530 = vld [vmem:[#allocation2 + $0x80] sm:$0xff]
          %v4531 = vld [vmem:[#allocation2 + $0x88] sm:$0xff]
          %v4532 = vld [vmem:[#allocation2 + $0x90] sm:$0xff]
          %v4533 = vld [vmem:[#allocation2 + $0x98] sm:$0xff]
          %v4534 = vld [vmem:[#allocation2 + $0xa0] sm:$0xff]
          %v4535 = vld [vmem:[#allocation2 + $0xa8] sm:$0xff]
          %v4536 = vld [vmem:[#allocation2 + $0xb0] sm:$0xff]
          %v4537 = vld [vmem:[#allocation2 + $0xb8] sm:$0xff]
          %v4538 = vld [vmem:[#allocation2 + $0xc0] sm:$0xff]
          %v4539 = vld [vmem:[#allocation2 + $0xc8] sm:$0xff]
          %v4540 = vld [vmem:[#allocation2 + $0xd0] sm:$0xff]
          %v4541 = vld [vmem:[#allocation2 + $0xd8] sm:$0xff]
          %v4542 = vld [vmem:[#allocation2 + $0xe0] sm:$0xff]
          %v4543 = vld [vmem:[#allocation2 + $0xe8] sm:$0xff]
          %v4544 = vld [vmem:[#allocation2 + $0xf0] sm:$0xff]
          %v4545 = vld [vmem:[#allocation2 + $0xf8] sm:$0xff]
          %v4546 = vld [vmem:[%s258] sm:$0x1]
          %v4548 = vlaneseq
          %v4549 = vshrl.u32 %v4548, 7
          %v4550 = vsub.s32 0, %v4549
          %v4551 = vrot.slane %v4546, %v4550
          %v4553 = vmul.f32 %v4514, %v4551
          %v4554 = vmul.f32 %v4515, %v4551
          %v4555 = vmul.f32 %v4516, %v4551
          %v4556 = vmul.f32 %v4517, %v4551
          %v4557 = vmul.f32 %v4518, %v4551
          %v4558 = vmul.f32 %v4519, %v4551
          %v4559 = vmul.f32 %v4520, %v4551
          %v4560 = vmul.f32 %v4521, %v4551
          %v4561 = vmul.f32 %v4522, %v4551
          %v4562 = vmul.f32 %v4523, %v4551
          %v4563 = vmul.f32 %v4524, %v4551
          %v4564 = vmul.f32 %v4525, %v4551
          %v4565 = vmul.f32 %v4526, %v4551
          %v4566 = vmul.f32 %v4527, %v4551
          %v4567 = vmul.f32 %v4528, %v4551
          %v4568 = vmul.f32 %v4529, %v4551
          %v4569 = vmul.f32 %v4530, %v4551
          %v4570 = vmul.f32 %v4531, %v4551
          %v4571 = vmul.f32 %v4532, %v4551
          %v4572 = vmul.f32 %v4533, %v4551
          %v4573 = vmul.f32 %v4534, %v4551
          %v4574 = vmul.f32 %v4535, %v4551
          %v4575 = vmul.f32 %v4536, %v4551
          %v4576 = vmul.f32 %v4537, %v4551
          %v4577 = vmul.f32 %v4538, %v4551
          %v4578 = vmul.f32 %v4539, %v4551
          %v4579 = vmul.f32 %v4540, %v4551
          %v4580 = vmul.f32 %v4541, %v4551
          %v4581 = vmul.f32 %v4542, %v4551
          %v4582 = vmul.f32 %v4543, %v4551
          %v4583 = vmul.f32 %v4544, %v4551
          %v4584 = vmul.f32 %v4545, %v4551
          %v4585 = vld [vmem:[%s261] sm:$0x1]
          %v4587 = vlaneseq
          %v4588 = vshrl.u32 %v4587, 7
          %v4589 = vsub.s32 0, %v4588
          %v4590 = vrot.slane %v4585, %v4589
          %v4592 = vadd.f32 %v4553, %v4590
          %v4593 = vadd.f32 %v4554, %v4590
          %v4594 = vadd.f32 %v4555, %v4590
          %v4595 = vadd.f32 %v4556, %v4590
          %v4596 = vadd.f32 %v4557, %v4590
          %v4597 = vadd.f32 %v4558, %v4590
          %v4598 = vadd.f32 %v4559, %v4590
          %v4599 = vadd.f32 %v4560, %v4590
          %v4600 = vadd.f32 %v4561, %v4590
          %v4601 = vadd.f32 %v4562, %v4590
          %v4602 = vadd.f32 %v4563, %v4590
          %v4603 = vadd.f32 %v4564, %v4590
          %v4604 = vadd.f32 %v4565, %v4590
          %v4605 = vadd.f32 %v4566, %v4590
          %v4606 = vadd.f32 %v4567, %v4590
          %v4607 = vadd.f32 %v4568, %v4590
          %v4608 = vadd.f32 %v4569, %v4590
          %v4609 = vadd.f32 %v4570, %v4590
          %v4610 = vadd.f32 %v4571, %v4590
          %v4611 = vadd.f32 %v4572, %v4590
          %v4612 = vadd.f32 %v4573, %v4590
          %v4613 = vadd.f32 %v4574, %v4590
          %v4614 = vadd.f32 %v4575, %v4590
          %v4615 = vadd.f32 %v4576, %v4590
          %v4616 = vadd.f32 %v4577, %v4590
          %v4617 = vadd.f32 %v4578, %v4590
          %v4618 = vadd.f32 %v4579, %v4590
          %v4619 = vadd.f32 %v4580, %v4590
          %v4620 = vadd.f32 %v4581, %v4590
          %v4621 = vadd.f32 %v4582, %v4590
          %v4622 = vadd.f32 %v4583, %v4590
          %v4623 = vadd.f32 %v4584, %v4590
          %vm4624 = vcmp.ge.f32.partialorder %v4592, 0.0
          %vm4625 = vcmp.ge.f32.partialorder %v4593, 0.0
          %vm4626 = vcmp.ge.f32.partialorder %v4594, 0.0
          %vm4627 = vcmp.ge.f32.partialorder %v4595, 0.0
          %vm4628 = vcmp.ge.f32.partialorder %v4596, 0.0
          %vm4629 = vcmp.ge.f32.partialorder %v4597, 0.0
          %vm4630 = vcmp.ge.f32.partialorder %v4598, 0.0
          %vm4631 = vcmp.ge.f32.partialorder %v4599, 0.0
          %vm4632 = vcmp.ge.f32.partialorder %v4600, 0.0
          %vm4633 = vcmp.ge.f32.partialorder %v4601, 0.0
          %vm4634 = vcmp.ge.f32.partialorder %v4602, 0.0
          %vm4635 = vcmp.ge.f32.partialorder %v4603, 0.0
          %vm4636 = vcmp.ge.f32.partialorder %v4604, 0.0
          %vm4637 = vcmp.ge.f32.partialorder %v4605, 0.0
          %vm4638 = vcmp.ge.f32.partialorder %v4606, 0.0
          %vm4639 = vcmp.ge.f32.partialorder %v4607, 0.0
          %vm4640 = vcmp.ge.f32.partialorder %v4608, 0.0
          %vm4641 = vcmp.ge.f32.partialorder %v4609, 0.0
          %vm4642 = vcmp.ge.f32.partialorder %v4610, 0.0
          %vm4643 = vcmp.ge.f32.partialorder %v4611, 0.0
          %vm4644 = vcmp.ge.f32.partialorder %v4612, 0.0
          %vm4645 = vcmp.ge.f32.partialorder %v4613, 0.0
          %vm4646 = vcmp.ge.f32.partialorder %v4614, 0.0
          %vm4647 = vcmp.ge.f32.partialorder %v4615, 0.0
          %vm4648 = vcmp.ge.f32.partialorder %v4616, 0.0
          %vm4649 = vcmp.ge.f32.partialorder %v4617, 0.0
          %vm4650 = vcmp.ge.f32.partialorder %v4618, 0.0
          %vm4651 = vcmp.ge.f32.partialorder %v4619, 0.0
          %vm4652 = vcmp.ge.f32.partialorder %v4620, 0.0
          %vm4653 = vcmp.ge.f32.partialorder %v4621, 0.0
          %vm4654 = vcmp.ge.f32.partialorder %v4622, 0.0
          %vm4655 = vcmp.ge.f32.partialorder %v4623, 0.0
          %v4656 = vmul.f32 %v4592, 0.2
          %v4657 = vmul.f32 %v4593, 0.2
          %v4658 = vmul.f32 %v4594, 0.2
          %v4659 = vmul.f32 %v4595, 0.2
          %v4660 = vmul.f32 %v4596, 0.2
          %v4661 = vmul.f32 %v4597, 0.2
          %v4662 = vmul.f32 %v4598, 0.2
          %v4663 = vmul.f32 %v4599, 0.2
          %v4664 = vmul.f32 %v4600, 0.2
          %v4665 = vmul.f32 %v4601, 0.2
          %v4666 = vmul.f32 %v4602, 0.2
          %v4667 = vmul.f32 %v4603, 0.2
          %v4668 = vmul.f32 %v4604, 0.2
          %v4669 = vmul.f32 %v4605, 0.2
          %v4670 = vmul.f32 %v4606, 0.2
          %v4671 = vmul.f32 %v4607, 0.2
          %v4672 = vmul.f32 %v4608, 0.2
          %v4673 = vmul.f32 %v4609, 0.2
          %v4674 = vmul.f32 %v4610, 0.2
          %v4675 = vmul.f32 %v4611, 0.2
          %v4676 = vmul.f32 %v4612, 0.2
          %v4677 = vmul.f32 %v4613, 0.2
          %v4678 = vmul.f32 %v4614, 0.2
          %v4679 = vmul.f32 %v4615, 0.2
          %v4680 = vmul.f32 %v4616, 0.2
          %v4681 = vmul.f32 %v4617, 0.2
          %v4682 = vmul.f32 %v4618, 0.2
          %v4683 = vmul.f32 %v4619, 0.2
          %v4684 = vmul.f32 %v4620, 0.2
          %v4685 = vmul.f32 %v4621, 0.2
          %v4686 = vmul.f32 %v4622, 0.2
          %v4687 = vmul.f32 %v4623, 0.2
          %v4688 = vsel %vm4624, %v4592, %v4656
          %v4689 = vsel %vm4625, %v4593, %v4657
          %v4690 = vsel %vm4626, %v4594, %v4658
          %v4691 = vsel %vm4627, %v4595, %v4659
          %v4692 = vsel %vm4628, %v4596, %v4660
          %v4693 = vsel %vm4629, %v4597, %v4661
          %v4694 = vsel %vm4630, %v4598, %v4662
          %v4695 = vsel %vm4631, %v4599, %v4663
          %v4696 = vsel %vm4632, %v4600, %v4664
          %v4697 = vsel %vm4633, %v4601, %v4665
          %v4698 = vsel %vm4634, %v4602, %v4666
          %v4699 = vsel %vm4635, %v4603, %v4667
          %v4700 = vsel %vm4636, %v4604, %v4668
          %v4701 = vsel %vm4637, %v4605, %v4669
          %v4702 = vsel %vm4638, %v4606, %v4670
          %v4703 = vsel %vm4639, %v4607, %v4671
          %v4704 = vsel %vm4640, %v4608, %v4672
          %v4705 = vsel %vm4641, %v4609, %v4673
          %v4706 = vsel %vm4642, %v4610, %v4674
          %v4707 = vsel %vm4643, %v4611, %v4675
          %v4708 = vsel %vm4644, %v4612, %v4676
          %v4709 = vsel %vm4645, %v4613, %v4677
          %v4710 = vsel %vm4646, %v4614, %v4678
          %v4711 = vsel %vm4647, %v4615, %v4679
          %v4712 = vsel %vm4648, %v4616, %v4680
          %v4713 = vsel %vm4649, %v4617, %v4681
          %v4714 = vsel %vm4650, %v4618, %v4682
          %v4715 = vsel %vm4651, %v4619, %v4683
          %v4716 = vsel %vm4652, %v4620, %v4684
          %v4717 = vsel %vm4653, %v4621, %v4685
          %v4718 = vsel %vm4654, %v4622, %v4686
          %v4719 = vsel %vm4655, %v4623, %v4687
          %v4720 = vpack.c.bf16 %v4689, %v4688
          %v4721 = vpack.c.bf16 %v4691, %v4690
          %v4722 = vpack.c.bf16 %v4693, %v4692
          %v4723 = vpack.c.bf16 %v4695, %v4694
          %v4724 = vpack.c.bf16 %v4697, %v4696
          %v4725 = vpack.c.bf16 %v4699, %v4698
          %v4726 = vpack.c.bf16 %v4701, %v4700
          %v4727 = vpack.c.bf16 %v4703, %v4702
          %v4728 = vpack.c.bf16 %v4705, %v4704
          %v4729 = vpack.c.bf16 %v4707, %v4706
          %v4730 = vpack.c.bf16 %v4709, %v4708
          %v4731 = vpack.c.bf16 %v4711, %v4710
          %v4732 = vpack.c.bf16 %v4713, %v4712
          %v4733 = vpack.c.bf16 %v4715, %v4714
          %v4734 = vpack.c.bf16 %v4717, %v4716
          %v4735 = vpack.c.bf16 %v4719, %v4718
          %v4752 = vunpack.c.l.b16 %v4720
          %v4753 = vunpack.c.h.b16 %v4720
          %v4754 = vunpack.c.l.b16 %v4721
          %v4755 = vunpack.c.h.b16 %v4721
          %v4756 = vunpack.c.l.b16 %v4722
          %v4757 = vunpack.c.h.b16 %v4722
          %v4758 = vunpack.c.l.b16 %v4723
          %v4759 = vunpack.c.h.b16 %v4723
          %v4760 = vunpack.c.l.b16 %v4724
          %v4761 = vunpack.c.h.b16 %v4724
          %v4762 = vunpack.c.l.b16 %v4725
          %v4763 = vunpack.c.h.b16 %v4725
          %v4764 = vunpack.c.l.b16 %v4726
          %v4765 = vunpack.c.h.b16 %v4726
          %v4766 = vunpack.c.l.b16 %v4727
          %v4767 = vunpack.c.h.b16 %v4727
          %v4768 = vunpack.c.l.b16 %v4728
          %v4769 = vunpack.c.h.b16 %v4728
          %v4770 = vunpack.c.l.b16 %v4729
          %v4771 = vunpack.c.h.b16 %v4729
          %v4772 = vunpack.c.l.b16 %v4730
          %v4773 = vunpack.c.h.b16 %v4730
          %v4774 = vunpack.c.l.b16 %v4731
          %v4775 = vunpack.c.h.b16 %v4731
          %v4776 = vunpack.c.l.b16 %v4732
          %v4777 = vunpack.c.h.b16 %v4732
          %v4778 = vunpack.c.l.b16 %v4733
          %v4779 = vunpack.c.h.b16 %v4733
          %v4780 = vunpack.c.l.b16 %v4734
          %v4781 = vunpack.c.h.b16 %v4734
          %v4782 = vunpack.c.l.b16 %v4735
          %v4783 = vunpack.c.h.b16 %v4735
          %v4784 = vpack.c.b16 %v4752, %v4752
          %v4785 = vpack.c.b16 %v4753, %v4753
          %v4786 = vpack.c.b16 %v4754, %v4754
          %v4787 = vpack.c.b16 %v4755, %v4755
          %v4788 = vpack.c.b16 %v4756, %v4756
          %v4789 = vpack.c.b16 %v4757, %v4757
          %v4790 = vpack.c.b16 %v4758, %v4758
          %v4791 = vpack.c.b16 %v4759, %v4759
          %v4792 = vpack.c.b16 %v4760, %v4760
          %v4793 = vpack.c.b16 %v4761, %v4761
          %v4794 = vpack.c.b16 %v4762, %v4762
          %v4795 = vpack.c.b16 %v4763, %v4763
          %v4796 = vpack.c.b16 %v4764, %v4764
          %v4797 = vpack.c.b16 %v4765, %v4765
          %v4798 = vpack.c.b16 %v4766, %v4766
          %v4799 = vpack.c.b16 %v4767, %v4767
          %v4800 = vpack.c.b16 %v4768, %v4768
          %v4801 = vpack.c.b16 %v4769, %v4769
          %v4802 = vpack.c.b16 %v4770, %v4770
          %v4803 = vpack.c.b16 %v4771, %v4771
          %v4804 = vpack.c.b16 %v4772, %v4772
          %v4805 = vpack.c.b16 %v4773, %v4773
          %v4806 = vpack.c.b16 %v4774, %v4774
          %v4807 = vpack.c.b16 %v4775, %v4775
          %v4808 = vpack.c.b16 %v4776, %v4776
          %v4809 = vpack.c.b16 %v4777, %v4777
          %v4810 = vpack.c.b16 %v4778, %v4778
          %v4811 = vpack.c.b16 %v4779, %v4779
          %v4812 = vpack.c.b16 %v4780, %v4780
          %v4813 = vpack.c.b16 %v4781, %v4781
          %v4814 = vpack.c.b16 %v4782, %v4782
          %v4815 = vpack.c.b16 %v4783, %v4783
          %vm4848 = vcmask 519168
          %4849 = vst.msk [vmem:[%s246] sm:$0xf] %vm4848, %v4784
          %4850 = vst.msk [vmem:[%s246 + $0x4] sm:$0xf] %vm4848, %v4785
          %4851 = vst.msk [vmem:[%s246 + $0x8] sm:$0xf] %vm4848, %v4786
          %4852 = vst.msk [vmem:[%s246 + $0xc] sm:$0xf] %vm4848, %v4787
          %4853 = vst.msk [vmem:[%s246 + $0x10] sm:$0xf] %vm4848, %v4788
          %4854 = vst.msk [vmem:[%s246 + $0x14] sm:$0xf] %vm4848, %v4789
          %4855 = vst.msk [vmem:[%s246 + $0x18] sm:$0xf] %vm4848, %v4790
          %4856 = vst.msk [vmem:[%s246 + $0x1c] sm:$0xf] %vm4848, %v4791
          %4857 = vst.msk [vmem:[%s246 + $0x20] sm:$0xf] %vm4848, %v4792
          %4858 = vst.msk [vmem:[%s246 + $0x24] sm:$0xf] %vm4848, %v4793
          %4859 = vst.msk [vmem:[%s246 + $0x28] sm:$0xf] %vm4848, %v4794
          %4860 = vst.msk [vmem:[%s246 + $0x2c] sm:$0xf] %vm4848, %v4795
          %4861 = vst.msk [vmem:[%s246 + $0x30] sm:$0xf] %vm4848, %v4796
          %4862 = vst.msk [vmem:[%s246 + $0x34] sm:$0xf] %vm4848, %v4797
          %4863 = vst.msk [vmem:[%s246 + $0x38] sm:$0xf] %vm4848, %v4798
          %4864 = vst.msk [vmem:[%s246 + $0x3c] sm:$0xf] %vm4848, %v4799
          %4865 = vst.msk [vmem:[%s246 + $0x40] sm:$0xf] %vm4848, %v4800
          %4866 = vst.msk [vmem:[%s246 + $0x44] sm:$0xf] %vm4848, %v4801
          %4867 = vst.msk [vmem:[%s246 + $0x48] sm:$0xf] %vm4848, %v4802
          %4868 = vst.msk [vmem:[%s246 + $0x4c] sm:$0xf] %vm4848, %v4803
          %4869 = vst.msk [vmem:[%s246 + $0x50] sm:$0xf] %vm4848, %v4804
          %4870 = vst.msk [vmem:[%s246 + $0x54] sm:$0xf] %vm4848, %v4805
          %4871 = vst.msk [vmem:[%s246 + $0x58] sm:$0xf] %vm4848, %v4806
          %4872 = vst.msk [vmem:[%s246 + $0x5c] sm:$0xf] %vm4848, %v4807
          %4873 = vst.msk [vmem:[%s246 + $0x60] sm:$0xf] %vm4848, %v4808
          %4874 = vst.msk [vmem:[%s246 + $0x64] sm:$0xf] %vm4848, %v4809
          %4875 = vst.msk [vmem:[%s246 + $0x68] sm:$0xf] %vm4848, %v4810
          %4876 = vst.msk [vmem:[%s246 + $0x6c] sm:$0xf] %vm4848, %v4811
          %4877 = vst.msk [vmem:[%s246 + $0x70] sm:$0xf] %vm4848, %v4812
          %4878 = vst.msk [vmem:[%s246 + $0x74] sm:$0xf] %vm4848, %v4813
          %4879 = vst.msk [vmem:[%s246 + $0x78] sm:$0xf] %vm4848, %v4814
          %4880 = vst.msk [vmem:[%s246 + $0x7c] sm:$0xf] %vm4848, %v4815
        $region48: #{tpu_custom_call.1} parent=35 // pred_fallthru
          _
        %s4881 = sand.u32 %s151, 1
        %s4882 = scalar_lea.sflag [#allocation4], %s4881
        %s4883 = sand.u32 %s151, 1
        %s4884 = smul.addr %s4883, 128
        %s4885 = scalar_lea.vmem [#allocation3], %s4884
        // Predicated region
        $region49: #{tpu_custom_call.1} parent=35 // pred_check
          %p4886 = pneg %p161
        $region50: #{tpu_custom_call.1} parent=35 // pred_check_branch
          %4888 = sbr.rel (%p4886) target = $region52
        $region51: #{tpu_custom_call.1} parent=35 // pred_region
          %s4890 = ssub.s32 2048, 2048
          %4891 = vsyncadd %s4882, %s4890
          %s4892 = smul.addr %s24, 32
          %s4893 = sadd.s32 %s23, %s4892
          %s4894 = smul.addr %s4893, 64
          %s4895 = scalar_lea.hbm %s4, %s4894
          %s4896 = sshll.u32 %s4885, 4
          %s4897 = int_to_ptr.vmem [resolvable:$true] %s4896
          %4902 = dma.vmem_to_hbm [thread:$0]  %s4897, 2048, %s4895, %s4882, 64, 64, 4
        $region52: #{tpu_custom_call.1} parent=35 // pred_fallthru
          _
      $region36: #{tpu_custom_call.1} parent=5 // pred_fallthru
        _
      %p4903 = scmp.le.s32.totalorder 2, %s13
      // Predicated region
      $region53: #{tpu_custom_call.1} parent=5 // pred_check
        %p4904 = pneg %p4903
      $region54: #{tpu_custom_call.1} parent=5 // pred_check_branch
        %4906 = sbr.rel (%p4904) target = $region56
      $region55: #{tpu_custom_call.1} parent=5 // pred_region
        %s4907 = ssub.s32 %s13, 2
        // Predicated region
        $region57: #{tpu_custom_call.1} parent=55 // pred_check
          %p4908 = pneg %p167
        $region58: #{tpu_custom_call.1} parent=55 // pred_check_branch
          %4910 = sbr.rel (%p4908) target = $region60
        $region59: #{tpu_custom_call.1} parent=55 // pred_region
          %s4911 = sand.u32 %s152, 1
          %s4912 = scalar_lea.sflag [#allocation4], %s4911
          %s4913 = sand.u32 %s152, 1
          %s4914 = smul.addr %s4913, 128
          %s4915 = scalar_lea.vmem [#allocation3], %s4914
          %4916 = dma.done %s4912, 2048
        $region60: #{tpu_custom_call.1} parent=55 // pred_fallthru
          _
      $region56: #{tpu_custom_call.1} parent=5 // pred_fallthru
        _
    $region6: #{tpu_custom_call.1} parent=1 // loop_footer
      %s17 = sadd.s32 1, %s13
    $region7: #{tpu_custom_call.1} parent=1 // loop_footer_branch
      %12 = sbr.rel target = $region3
    $region8: #{tpu_custom_call.1} parent=1 // loop_exit
      _
    %4917 = vsyncpa [#allocation4], 1
    %s4918 = scalar_lea.sflag [#allocation4], 1
    %4919 = vsyncpa %s4918, 1

</llo_original>
